<compile_context>
chip_gen: v5e
topology: v5e:2x2
jax: 0.10.0
libtpu: 0.0.40
codegen_flags: <defaults>
</compile_context>

<pallas_src>
import jax
import jax.numpy as jnp
from jax.experimental import pallas as pl
from jax.experimental.pallas import tpu as pltpu

NUM_CLASSES = 21
MAX_TN = 4096  # anchor-tile cap (lanes); largest divisor of N <= MAX_TN is used


def _loss_maps_kernel(loc1_ref, loc2_ref, loct_ref, conf_ref, ct_ref, os_ref, ot_ref,
                      obj_ref, ce_ref, part_ref):
    f32 = jnp.float32

    # ---- objectness: 2-class softmax == sigmoid of logit difference ----------
    o0 = os_ref[0:1, :].astype(f32)            # (1, TN)
    o1 = os_ref[1:2, :].astype(f32)            # (1, TN)
    z = o1 - o0
    ez = jnp.exp(-jnp.abs(z))
    log1pe = jnp.log(1.0 + ez)
    sp_neg = jnp.maximum(-z, 0.0) + log1pe     # softplus(-z) = -log p1
    sp_pos = jnp.maximum(z, 0.0) + log1pe      # softplus( z) = -log p0
    p1 = jnp.exp(-sp_neg)                      # softmax(os_pred)[..., 1]
    p0 = jnp.exp(-sp_pos)
    obj_ref[...] = p1

    # focal loss per box (alpha=0.25, gamma=2), masked to os_target > -1,
    # reduced to a scalar inside the kernel.
    ot = ot_ref[...]                           # (1, TN) int32
    neg_log_pt = jnp.where(ot == 1, sp_neg, sp_pos)         # -log pt (stable)
    one_m_pt = jnp.where(ot == 1, p0, p1)                   # 1 - pt
    alpha_t = jnp.where(ot == 0, 0.75, 0.25).astype(f32)    # alpha_t[:,0] = 1-alpha
    focal = alpha_t * neg_log_pt * one_m_pt * one_m_pt
    focal_sum = jnp.sum(jnp.where(ot > -1, focal, 0.0))

    # ---- smooth-L1 per box (masked by pos = conf_target > 0), coord axis = sublanes
    ct = ct_ref[...]                           # (1, TN) int32
    pos = ct > 0
    lt = loct_ref[...].astype(f32)             # (4, TN)

    d1 = loc1_ref[...].astype(f32) - lt
    a1 = jnp.abs(d1)
    s1 = jnp.sum(jnp.where(a1 < 1.0, 0.5 * d1 * d1, a1 - 0.5), axis=0, keepdims=True)
    sl1a_sum = jnp.sum(jnp.where(pos, s1, 0.0))

    d2 = loc2_ref[...].astype(f32) - lt
    a2 = jnp.abs(d2)
    s2 = jnp.sum(jnp.where(a2 < 1.0, 0.5 * d2 * d2, a2 - 0.5), axis=0, keepdims=True)
    sl1b_sum = jnp.sum(jnp.where(pos, s2, 0.0))

    # ---- per-box cross entropy over num_classes (class axis = sublanes) ------
    x = conf_ref[...].astype(f32)              # (C, TN)
    xm = jnp.max(x, axis=0, keepdims=True)
    lse = xm + jnp.log(jnp.sum(jnp.exp(x - xm), axis=0, keepdims=True))
    tgt = jnp.maximum(ct, 0)                   # clamp ignore(-1) -> class 0
    cls_iota = jax.lax.broadcasted_iota(jnp.int32, x.shape, 0)
    x_t = jnp.sum(jnp.where(cls_iota == tgt, x, 0.0), axis=0, keepdims=True)
    ce_ref[...] = lse - x_t                    # -log softmax(x)[target]

    # ---- per-tile partial sums packed into lanes 0..2 of a (1,128) slab ------
    lane = jax.lax.broadcasted_iota(jnp.int32, (1, 128), 1)
    part_ref[...] = (jnp.where(lane == 0, focal_sum, 0.0)
                     + jnp.where(lane == 1, sl1a_sum, 0.0)
                     + jnp.where(lane == 2, sl1b_sum, 0.0))


def compute_loss_maps(loc1, loc2, loc_t, conf_preds, conf_targets, os_pred, os_target):
    B, A, C = conf_preds.shape
    N = B * A
    assert N % 128 == 0, "B*A must be a multiple of 128"
    TN = next(t for t in (MAX_TN, 2048, 1024, 512, 256, 128) if N % t == 0)
    num_tiles = N // TN

    # anchor-last / lane-dense layout; batch folded into the anchor (lane) axis
    def to_feat_major(x):                      # (B, A, d) -> (d, B*A)
        return x.reshape(N, -1).T

    loc1_t = to_feat_major(loc1)
    loc2_t = to_feat_major(loc2)
    loct_t = to_feat_major(loc_t)
    conf_t = to_feat_major(conf_preds)
    os_t = to_feat_major(os_pred)
    ct = conf_targets.reshape(1, N)
    ot = os_target.reshape(1, N)

    def inspec(d):
        return pl.BlockSpec((d, TN), lambda i: (0, i))

    obj_map, ce_map, partials = pl.pallas_call(
        _loss_maps_kernel,
        out_shape=(jax.ShapeDtypeStruct((1, N), jnp.float32),
                   jax.ShapeDtypeStruct((1, N), jnp.float32),
                   jax.ShapeDtypeStruct((1, num_tiles * 128), jnp.float32)),
        grid_spec=pltpu.PrefetchScalarGridSpec(
            num_scalar_prefetch=0,
            grid=(num_tiles,),
            in_specs=[inspec(4), inspec(4), inspec(4), inspec(C), inspec(1),
                      inspec(2), inspec(1)],
            out_specs=[inspec(1), inspec(1),
                       pl.BlockSpec((1, 128), lambda i: (0, i))],
        ),
        compiler_params=pltpu.CompilerParams(
            dimension_semantics=("parallel",)),
    )(loc1_t, loc2_t, loct_t, conf_t, ct, os_t, ot)

    p = partials.reshape(num_tiles, 128)
    os_focal_sum = jnp.sum(p[:, 0])
    sl1a_sum = jnp.sum(p[:, 1])
    sl1b_sum = jnp.sum(p[:, 2])
    return (obj_map.reshape(B, A), ce_map.reshape(B, A),
            os_focal_sum, sl1a_sum, sl1b_sum)


def focal_loss_forward(loc1_preds, loc2_preds, loc_targets, conf_preds, conf_targets,
                       os_pred, os_target):
    B, A = conf_targets.shape

    obj_ness, conf_ce, os_focal_sum, sl1_1_sum, sl1_2_sum = compute_loss_maps(
        loc1_preds, loc2_preds, loc_targets, conf_preds, conf_targets, os_pred, os_target)

    # ----- objectness focal loss -----
    pos_os = os_target > 0
    os_pos = obj_ness > 0.4
    os_loss = os_focal_sum * 10.0
    pos_num = jnp.sum(pos_os).astype(jnp.float32)
    os_loss = jnp.where(pos_num > 0,
                        os_loss / jnp.maximum(pos_num, 1.0),
                        os_loss / 500.0)

    # ----- localisation loss -----
    pos = conf_targets > 0
    ignore = conf_targets < 0
    regression_num = jnp.sum(pos).astype(jnp.float32)
    loc_loss = (sl1_2_sum * 0.5 + sl1_1_sum * 0.35) / jnp.maximum(regression_num, 1.0)

    # ----- hard negative mining (single descending sort + scatter of neg mask) -----
    # TODO(synk): jnp.argsort tie ordering differs from torch.sort; selection may
    # differ on exactly-tied losses.
    cl = jnp.where(pos | ignore, 0.0, conf_ce)            # conf_loss[pos]=0; [ignore]=0
    order = jnp.argsort(-cl, axis=1)                      # descending
    num_pos = jnp.sum(pos.astype(jnp.int32), axis=1)
    num_neg = jnp.clip(3 * num_pos, 1, A - 1)
    lane = jnp.arange(A, dtype=jnp.int32)[None, :]
    neg_sorted = (lane < num_neg[:, None]).astype(jnp.int32)
    neg = jnp.zeros((B, A), jnp.int32).at[
        jnp.arange(B)[:, None], order].set(neg_sorted) > 0  # == (rank < num_neg)

    use_hnm = jnp.sum(os_pos.astype(jnp.int32)) > jnp.sum(pos.astype(jnp.int32)) * 10
    os_pos_sel = jnp.where(use_hnm, os_pos & neg, os_pos)   # os_pos[neg == 0] = 0
    os_pos_sel = os_pos_sel & (~ignore)                     # os_pos[ignore] = 0

    sel = pos | os_pos_sel                                  # conf_preds[pos + os_pos]
    n_sel = jnp.sum(sel.astype(jnp.float32))
    conf_loss = jnp.sum(jnp.where(sel, conf_ce, 0.0)) / jnp.maximum(n_sel, 1.0)

    # `if regression_num == 0: return (0, os_loss, 0)` branch
    # TODO(synk): the torch module's `is_print` host-side print is omitted.
    has_reg = regression_num > 0
    zero = jnp.zeros_like(os_loss)
    return (jnp.where(has_reg, loc_loss, zero),
            os_loss,
            jnp.where(has_reg, conf_loss, zero))


if __name__ == "__main__":
    B, A, C = 2, 4096, NUM_CLASSES

    key = jax.random.PRNGKey(0)
    ks = jax.random.split(key, 7)
    loc1_preds = jax.random.normal(ks[0], (B, A, 4), jnp.float32)
    loc2_preds = jax.random.normal(ks[1], (B, A, 4), jnp.float32)
    loc_targets = jax.random.normal(ks[2], (B, A, 4), jnp.float32)
    conf_preds = jax.random.normal(ks[3], (B, A, C), jnp.float32)
    conf_targets = jax.random.randint(ks[4], (B, A), -1, C, jnp.int32)   # -1 = ignore
    os_pred = jax.random.normal(ks[5], (B, A, 2), jnp.float32)
    os_target = jax.random.randint(ks[6], (B, A), -1, 2, jnp.int32)      # {-1, 0, 1}

    loc_loss, os_loss, conf_loss = jax.jit(focal_loss_forward)(
        loc1_preds, loc2_preds, loc_targets, conf_preds, conf_targets, os_pred, os_target)
    jax.block_until_ready((loc_loss, os_loss, conf_loss))
    print("KERNEL_OK")
</pallas_src>

<mosaic_0001>
module attributes {stable_mosaic.version = 11 : i64} {
  func.func @_loss_maps_kernel(%arg0: i32, %arg1: memref<4x4096xf32, #tpu.memory_space<vmem>>, %arg2: memref<4x4096xf32, #tpu.memory_space<vmem>>, %arg3: memref<4x4096xf32, #tpu.memory_space<vmem>>, %arg4: memref<21x4096xf32, #tpu.memory_space<vmem>>, %arg5: memref<1x4096xi32, #tpu.memory_space<vmem>>, %arg6: memref<2x4096xf32, #tpu.memory_space<vmem>>, %arg7: memref<1x4096xi32, #tpu.memory_space<vmem>>, %arg8: memref<1x4096xf32, #tpu.memory_space<vmem>>, %arg9: memref<1x4096xf32, #tpu.memory_space<vmem>>, %arg10: memref<1x128xf32, #tpu.memory_space<vmem>>) attributes {dimension_semantics = [#tpu.dimension_semantics<parallel>], iteration_bounds = array<i64: 2>, scalar_prefetch = 0 : i64, scratch_operands = 0 : i64, tpu.core_type = #tpu.core_type<tc>, window_params = [{transform_indices = @transform_0, window_bounds = array<i64: 4, 4096>}, {transform_indices = @transform_1, window_bounds = array<i64: 4, 4096>}, {transform_indices = @transform_2, window_bounds = array<i64: 4, 4096>}, {transform_indices = @transform_3, window_bounds = array<i64: 21, 4096>}, {transform_indices = @transform_4, window_bounds = array<i64: 1, 4096>}, {transform_indices = @transform_5, window_bounds = array<i64: 2, 4096>}, {transform_indices = @transform_6, window_bounds = array<i64: 1, 4096>}, {transform_indices = @transform_7, window_bounds = array<i64: 1, 4096>}, {transform_indices = @transform_8, window_bounds = array<i64: 1, 4096>}, {transform_indices = @transform_9, window_bounds = array<i64: 1, 128>}]} {
    %c0 = arith.constant 0 : index
    %c0_0 = arith.constant 0 : index
    %0 = vector.load %arg6[%c0, %c0_0] : memref<2x4096xf32, #tpu.memory_space<vmem>>, vector<1x4096xf32>
    %c1 = arith.constant 1 : index
    %c0_1 = arith.constant 0 : index
    %1 = vector.load %arg6[%c1, %c0_1] : memref<2x4096xf32, #tpu.memory_space<vmem>>, vector<1x4096xf32>
    %2 = arith.subf %1, %0 : vector<1x4096xf32>
    %3 = math.absf %2 : vector<1x4096xf32>
    %cst = arith.constant 0.000000e+00 : f32
    %4 = vector.broadcast %cst : f32 to vector<1x4096xf32>
    %5 = arith.subf %4, %3 : vector<1x4096xf32>
    %6 = math.exp %5 : vector<1x4096xf32>
    %cst_2 = arith.constant 1.000000e+00 : f32
    %7 = vector.broadcast %cst_2 : f32 to vector<1x4096xf32>
    %8 = arith.addf %7, %6 : vector<1x4096xf32>
    %9 = math.log %8 : vector<1x4096xf32>
    %cst_3 = arith.constant 0.000000e+00 : f32
    %10 = vector.broadcast %cst_3 : f32 to vector<1x4096xf32>
    %11 = arith.subf %10, %2 : vector<1x4096xf32>
    %cst_4 = arith.constant 0.000000e+00 : f32
    %12 = vector.broadcast %cst_4 : f32 to vector<1x4096xf32>
    %13 = arith.maximumf %11, %12 : vector<1x4096xf32>
    %14 = arith.addf %13, %9 : vector<1x4096xf32>
    %cst_5 = arith.constant 0.000000e+00 : f32
    %15 = vector.broadcast %cst_5 : f32 to vector<1x4096xf32>
    %16 = arith.maximumf %2, %15 : vector<1x4096xf32>
    %17 = arith.addf %16, %9 : vector<1x4096xf32>
    %cst_6 = arith.constant 0.000000e+00 : f32
    %18 = vector.broadcast %cst_6 : f32 to vector<1x4096xf32>
    %19 = arith.subf %18, %14 : vector<1x4096xf32>
    %20 = math.exp %19 : vector<1x4096xf32>
    %cst_7 = arith.constant 0.000000e+00 : f32
    %21 = vector.broadcast %cst_7 : f32 to vector<1x4096xf32>
    %22 = arith.subf %21, %17 : vector<1x4096xf32>
    %23 = math.exp %22 : vector<1x4096xf32>
    %c0_8 = arith.constant 0 : index
    %c0_9 = arith.constant 0 : index
    %24 = vector.load %arg8[%c0_8, %c0_9] : memref<1x4096xf32, #tpu.memory_space<vmem>>, vector<1x4096xf32>
    tpu.vector_store %arg8[%c0_8, %c0_9], %20 {strides = array<i32>} : memref<1x4096xf32, #tpu.memory_space<vmem>>, vector<1x4096xf32>,
    %c0_10 = arith.constant 0 : index
    %c0_11 = arith.constant 0 : index
    %25 = vector.load %arg7[%c0_10, %c0_11] : memref<1x4096xi32, #tpu.memory_space<vmem>>, vector<1x4096xi32>
    %c1_i32 = arith.constant 1 : i32
    %26 = vector.broadcast %c1_i32 : i32 to vector<1x4096xi32>
    %27 = arith.cmpi eq, %25, %26 : vector<1x4096xi32>
    %28 = arith.select %27, %14, %17 : vector<1x4096xi1>, vector<1x4096xf32>
    %c1_i32_12 = arith.constant 1 : i32
    %29 = vector.broadcast %c1_i32_12 : i32 to vector<1x4096xi32>
    %30 = arith.cmpi eq, %25, %29 : vector<1x4096xi32>
    %31 = arith.select %30, %23, %20 : vector<1x4096xi1>, vector<1x4096xf32>
    %c0_i32 = arith.constant 0 : i32
    %32 = vector.broadcast %c0_i32 : i32 to vector<1x4096xi32>
    %33 = arith.cmpi eq, %25, %32 : vector<1x4096xi32>
    %cst_13 = arith.constant 7.500000e-01 : f32
    %cst_14 = arith.constant 2.500000e-01 : f32
    %34 = vector.broadcast %cst_13 : f32 to vector<1x4096xf32>
    %35 = vector.broadcast %cst_14 : f32 to vector<1x4096xf32>
    %36 = arith.select %33, %34, %35 : vector<1x4096xi1>, vector<1x4096xf32>
    %37 = arith.mulf %36, %28 : vector<1x4096xf32>
    %38 = arith.mulf %37, %31 : vector<1x4096xf32>
    %39 = arith.mulf %38, %31 : vector<1x4096xf32>
    %c-1_i32 = arith.constant -1 : i32
    %40 = vector.broadcast %c-1_i32 : i32 to vector<1x4096xi32>
    %41 = arith.cmpi sgt, %25, %40 : vector<1x4096xi32>
    %cst_15 = arith.constant 0.000000e+00 : f32
    %42 = vector.broadcast %cst_15 : f32 to vector<1x4096xf32>
    %43 = arith.select %41, %39, %42 : vector<1x4096xi1>, vector<1x4096xf32>
    %44 = vector.shape_cast %43 : vector<1x4096xf32> to vector<1x1x4096xf32>
    %cst_16 = arith.constant dense<0.000000e+00> : vector<1xf32>
    %45 = vector.multi_reduction <add>, %44, %cst_16 [1, 2] : vector<1x1x4096xf32> to vector<1xf32>
    %46 = vector.shape_cast %45 : vector<1xf32> to vector<1x1x1xf32>
    %47 = vector.extract %46[0, 0, 0] : f32 from vector<1x1x1xf32>
    %c0_17 = arith.constant 0 : index
    %c0_18 = arith.constant 0 : index
    %48 = vector.load %arg5[%c0_17, %c0_18] : memref<1x4096xi32, #tpu.memory_space<vmem>>, vector<1x4096xi32>
    %c0_i32_19 = arith.constant 0 : i32
    %49 = vector.broadcast %c0_i32_19 : i32 to vector<1x4096xi32>
    %50 = arith.cmpi sgt, %48, %49 : vector<1x4096xi32>
    %c0_20 = arith.constant 0 : index
    %c0_21 = arith.constant 0 : index
    %51 = vector.load %arg3[%c0_20, %c0_21] : memref<4x4096xf32, #tpu.memory_space<vmem>>, vector<4x4096xf32>
    %c0_22 = arith.constant 0 : index
    %c0_23 = arith.constant 0 : index
    %52 = vector.load %arg1[%c0_22, %c0_23] : memref<4x4096xf32, #tpu.memory_space<vmem>>, vector<4x4096xf32>
    %53 = arith.subf %52, %51 : vector<4x4096xf32>
    %54 = math.absf %53 : vector<4x4096xf32>
    %cst_24 = arith.constant 1.000000e+00 : f32
    %55 = vector.broadcast %cst_24 : f32 to vector<4x4096xf32>
    %56 = arith.cmpf olt, %54, %55 : vector<4x4096xf32>
    %cst_25 = arith.constant 5.000000e-01 : f32
    %57 = vector.broadcast %cst_25 : f32 to vector<4x4096xf32>
    %58 = arith.mulf %57, %53 : vector<4x4096xf32>
    %59 = arith.mulf %58, %53 : vector<4x4096xf32>
    %cst_26 = arith.constant 5.000000e-01 : f32
    %60 = vector.broadcast %cst_26 : f32 to vector<4x4096xf32>
    %61 = arith.subf %54, %60 : vector<4x4096xf32>
    %62 = arith.select %56, %59, %61 : vector<4x4096xi1>, vector<4x4096xf32>
    %cst_27 = arith.constant dense<0.000000e+00> : vector<4096xf32>
    %63 = vector.multi_reduction <add>, %62, %cst_27 [0] : vector<4x4096xf32> to vector<4096xf32>
    %64 = vector.shape_cast %63 : vector<4096xf32> to vector<1x4096xf32>
    %cst_28 = arith.constant 0.000000e+00 : f32
    %65 = vector.broadcast %cst_28 : f32 to vector<1x4096xf32>
    %66 = arith.select %50, %64, %65 : vector<1x4096xi1>, vector<1x4096xf32>
    %67 = vector.shape_cast %66 : vector<1x4096xf32> to vector<1x1x4096xf32>
    %cst_29 = arith.constant dense<0.000000e+00> : vector<1xf32>
    %68 = vector.multi_reduction <add>, %67, %cst_29 [1, 2] : vector<1x1x4096xf32> to vector<1xf32>
    %69 = vector.shape_cast %68 : vector<1xf32> to vector<1x1x1xf32>
    %70 = vector.extract %69[0, 0, 0] : f32 from vector<1x1x1xf32>
    %c0_30 = arith.constant 0 : index
    %c0_31 = arith.constant 0 : index
    %71 = vector.load %arg2[%c0_30, %c0_31] : memref<4x4096xf32, #tpu.memory_space<vmem>>, vector<4x4096xf32>
    %72 = arith.subf %71, %51 : vector<4x4096xf32>
    %73 = math.absf %72 : vector<4x4096xf32>
    %cst_32 = arith.constant 1.000000e+00 : f32
    %74 = vector.broadcast %cst_32 : f32 to vector<4x4096xf32>
    %75 = arith.cmpf olt, %73, %74 : vector<4x4096xf32>
    %cst_33 = arith.constant 5.000000e-01 : f32
    %76 = vector.broadcast %cst_33 : f32 to vector<4x4096xf32>
    %77 = arith.mulf %76, %72 : vector<4x4096xf32>
    %78 = arith.mulf %77, %72 : vector<4x4096xf32>
    %cst_34 = arith.constant 5.000000e-01 : f32
    %79 = vector.broadcast %cst_34 : f32 to vector<4x4096xf32>
    %80 = arith.subf %73, %79 : vector<4x4096xf32>
    %81 = arith.select %75, %78, %80 : vector<4x4096xi1>, vector<4x4096xf32>
    %cst_35 = arith.constant dense<0.000000e+00> : vector<4096xf32>
    %82 = vector.multi_reduction <add>, %81, %cst_35 [0] : vector<4x4096xf32> to vector<4096xf32>
    %83 = vector.shape_cast %82 : vector<4096xf32> to vector<1x4096xf32>
    %cst_36 = arith.constant 0.000000e+00 : f32
    %84 = vector.broadcast %cst_36 : f32 to vector<1x4096xf32>
    %85 = arith.select %50, %83, %84 : vector<1x4096xi1>, vector<1x4096xf32>
    %86 = vector.shape_cast %85 : vector<1x4096xf32> to vector<1x1x4096xf32>
    %cst_37 = arith.constant dense<0.000000e+00> : vector<1xf32>
    %87 = vector.multi_reduction <add>, %86, %cst_37 [1, 2] : vector<1x1x4096xf32> to vector<1xf32>
    %88 = vector.shape_cast %87 : vector<1xf32> to vector<1x1x1xf32>
    %89 = vector.extract %88[0, 0, 0] : f32 from vector<1x1x1xf32>
    %c0_38 = arith.constant 0 : index
    %c0_39 = arith.constant 0 : index
    %90 = vector.load %arg4[%c0_38, %c0_39] : memref<21x4096xf32, #tpu.memory_space<vmem>>, vector<21x4096xf32>
    %cst_40 = arith.constant dense<0xFF800000> : vector<4096xf32>
    %91 = vector.multi_reduction <maximumf>, %90, %cst_40 [0] : vector<21x4096xf32> to vector<4096xf32>
    %92 = vector.shape_cast %91 : vector<4096xf32> to vector<1x4096xf32>
    %93 = vector.broadcast %92 : vector<1x4096xf32> to vector<21x4096xf32>
    %94 = arith.subf %90, %93 : vector<21x4096xf32>
    %95 = math.exp %94 : vector<21x4096xf32>
    %cst_41 = arith.constant dense<0.000000e+00> : vector<4096xf32>
    %96 = vector.multi_reduction <add>, %95, %cst_41 [0] : vector<21x4096xf32> to vector<4096xf32>
    %97 = vector.shape_cast %96 : vector<4096xf32> to vector<1x4096xf32>
    %98 = math.log %97 : vector<1x4096xf32>
    %99 = arith.addf %92, %98 : vector<1x4096xf32>
    %c0_i32_42 = arith.constant 0 : i32
    %100 = vector.broadcast %c0_i32_42 : i32 to vector<1x4096xi32>
    %101 = arith.maxsi %48, %100 : vector<1x4096xi32>
    %102 = tpu.iota {dimensions = array<i32: 0>} : vector<21x4096xi32>
    %103 = vector.broadcast %101 : vector<1x4096xi32> to vector<21x4096xi32>
    %104 = arith.cmpi eq, %102, %103 : vector<21x4096xi32>
    %cst_43 = arith.constant 0.000000e+00 : f32
    %105 = vector.broadcast %cst_43 : f32 to vector<21x4096xf32>
    %106 = arith.select %104, %90, %105 : vector<21x4096xi1>, vector<21x4096xf32>
    %cst_44 = arith.constant dense<0.000000e+00> : vector<4096xf32>
    %107 = vector.multi_reduction <add>, %106, %cst_44 [0] : vector<21x4096xf32> to vector<4096xf32>
    %108 = vector.shape_cast %107 : vector<4096xf32> to vector<1x4096xf32>
    %109 = arith.subf %99, %108 : vector<1x4096xf32>
    %c0_45 = arith.constant 0 : index
    %c0_46 = arith.constant 0 : index
    %110 = vector.load %arg9[%c0_45, %c0_46] : memref<1x4096xf32, #tpu.memory_space<vmem>>, vector<1x4096xf32>
    tpu.vector_store %arg9[%c0_45, %c0_46], %109 {strides = array<i32>} : memref<1x4096xf32, #tpu.memory_space<vmem>>, vector<1x4096xf32>,
    %111 = tpu.iota {dimensions = array<i32: 1>} : vector<1x128xi32>
    %c0_i32_47 = arith.constant 0 : i32
    %112 = vector.broadcast %c0_i32_47 : i32 to vector<1x128xi32>
    %113 = arith.cmpi eq, %111, %112 : vector<1x128xi32>
    %cst_48 = arith.constant 0.000000e+00 : f32
    %114 = vector.broadcast %47 : f32 to vector<1x128xf32>
    %115 = vector.broadcast %cst_48 : f32 to vector<1x128xf32>
    %116 = arith.select %113, %114, %115 : vector<1x128xi1>, vector<1x128xf32>
    %c1_i32_49 = arith.constant 1 : i32
    %117 = vector.broadcast %c1_i32_49 : i32 to vector<1x128xi32>
    %118 = arith.cmpi eq, %111, %117 : vector<1x128xi32>
    %cst_50 = arith.constant 0.000000e+00 : f32
    %119 = vector.broadcast %70 : f32 to vector<1x128xf32>
    %120 = vector.broadcast %cst_50 : f32 to vector<1x128xf32>
    %121 = arith.select %118, %119, %120 : vector<1x128xi1>, vector<1x128xf32>
    %122 = arith.addf %116, %121 : vector<1x128xf32>
    %c2_i32 = arith.constant 2 : i32
    %123 = vector.broadcast %c2_i32 : i32 to vector<1x128xi32>
    %124 = arith.cmpi eq, %111, %123 : vector<1x128xi32>
    %cst_51 = arith.constant 0.000000e+00 : f32
    %125 = vector.broadcast %89 : f32 to vector<1x128xf32>
    %126 = vector.broadcast %cst_51 : f32 to vector<1x128xf32>
    %127 = arith.select %124, %125, %126 : vector<1x128xi1>, vector<1x128xf32>
    %128 = arith.addf %122, %127 : vector<1x128xf32>
    %c0_52 = arith.constant 0 : index
    %c0_53 = arith.constant 0 : index
    %129 = vector.load %arg10[%c0_52, %c0_53] : memref<1x128xf32, #tpu.memory_space<vmem>>, vector<1x128xf32>
    tpu.vector_store %arg10[%c0_52, %c0_53], %128 {strides = array<i32>} : memref<1x128xf32, #tpu.memory_space<vmem>>, vector<1x128xf32>,
    return
  }
  func.func @transform_0(%arg0: i32) -> (i32, i32) {
    %c0_i32 = arith.constant 0 : i32
    %c0_i32_0 = arith.constant 0 : i32
    return %c0_i32, %arg0 : i32, i32
  }
  func.func @transform_1(%arg0: i32) -> (i32, i32) {
    %c0_i32 = arith.constant 0 : i32
    %c0_i32_0 = arith.constant 0 : i32
    return %c0_i32, %arg0 : i32, i32
  }
  func.func @transform_2(%arg0: i32) -> (i32, i32) {
    %c0_i32 = arith.constant 0 : i32
    %c0_i32_0 = arith.constant 0 : i32
    return %c0_i32, %arg0 : i32, i32
  }
  func.func @transform_3(%arg0: i32) -> (i32, i32) {
    %c0_i32 = arith.constant 0 : i32
    %c0_i32_0 = arith.constant 0 : i32
    return %c0_i32, %arg0 : i32, i32
  }
  func.func @transform_4(%arg0: i32) -> (i32, i32) {
    %c0_i32 = arith.constant 0 : i32
    %c0_i32_0 = arith.constant 0 : i32
    return %c0_i32, %arg0 : i32, i32
  }
  func.func @transform_5(%arg0: i32) -> (i32, i32) {
    %c0_i32 = arith.constant 0 : i32
    %c0_i32_0 = arith.constant 0 : i32
    return %c0_i32, %arg0 : i32, i32
  }
  func.func @transform_6(%arg0: i32) -> (i32, i32) {
    %c0_i32 = arith.constant 0 : i32
    %c0_i32_0 = arith.constant 0 : i32
    return %c0_i32, %arg0 : i32, i32
  }
  func.func @transform_7(%arg0: i32) -> (i32, i32) {
    %c0_i32 = arith.constant 0 : i32
    %c0_i32_0 = arith.constant 0 : i32
    return %c0_i32, %arg0 : i32, i32
  }
  func.func @transform_8(%arg0: i32) -> (i32, i32) {
    %c0_i32 = arith.constant 0 : i32
    %c0_i32_0 = arith.constant 0 : i32
    return %c0_i32, %arg0 : i32, i32
  }
  func.func @transform_9(%arg0: i32) -> (i32, i32) {
    %c0_i32 = arith.constant 0 : i32
    %c0_i32_0 = arith.constant 0 : i32
    return %c0_i32, %arg0 : i32, i32
  }
}

</mosaic_0001>

<llo_original>
// kernel: focal_loss_forward.1
$region0: #{focal_loss_forward.1}
  #allocation0 [shape = 'u32[]', space=smem, size = 0x4, offset = 0x4, fixed_abs, tag = 'smem constant byte address 0x4 - core index']
  #allocation1 [shape = 'u32[72,128]{1,0:T(1,128)}', space=vmem, size = 0x9000, scoped, tag = 'internal scratch']
  %s0 = inlined_call_operand.vmem [shape: f32[4,8192], index: 0, kind: input, shape index: {}]
  %s1 = inlined_call_operand.vmem [shape: f32[4,8192], index: 1, kind: input, shape index: {}]
  %s2 = inlined_call_operand.vmem [shape: f32[4,8192], index: 2, kind: input, shape index: {}]
  %s3 = inlined_call_operand.vmem [shape: f32[21,8192], index: 3, kind: input, shape index: {}]
  %s4 = inlined_call_operand.vmem [shape: s32[1,8192], index: 4, kind: input, shape index: {}]
  %s5 = inlined_call_operand.vmem [shape: f32[2,8192], index: 5, kind: input, shape index: {}]
  %s6 = inlined_call_operand.vmem [shape: s32[1,8192], index: 6, kind: input, shape index: {}]
  %s7 = inlined_call_operand.vmem [shape: f32[1,8192], index: 7, kind: output, shape index: {0}]
  %s8 = inlined_call_operand.vmem [shape: f32[1,8192], index: 8, kind: output, shape index: {1}]
  %s9 = inlined_call_operand.vmem [shape: f32[1,256], index: 9, kind: output, shape index: {2}]
  %10 = xla_tuple %s7, %s8, %s9
  %s11 = sld [smem:[#allocation0]]
  $region100: #{focal_loss_forward.1} parent=0
    _
  %s13 = ssub.s32 1, %s11
  %s14 = scalar_select 0, %s13, %s11
  $region1: #{focal_loss_forward.1} parent=0
    #allocation2 [shape = 'u8[786432]{0}', space=vmem, size = 0xc0000, scoped, tag = 'input window, operand 3']
    loop: start=0, step=1, limit=4
    $region2: #{focal_loss_forward.1} parent=1 // loop_pre_header
      _
    $region3: #{focal_loss_forward.1} parent=1 // loop_header
      %s16 = sphi 0, %s20
      %p17 = scmp.ge.s32.totalorder %s16, 4
      %s26 = sphi 0, %s28
      %s29 = sphi 0, %s26
      %s30 = sphi 0, %s29
      %s46 = sphi 0, %s30
      %s52 = sphi 0, %s54
      %s55 = sphi 0, %s52
      %s56 = sphi 0, %s55
      %s72 = sphi 0, %s56
      %s78 = sphi 0, %s80
      %s81 = sphi 0, %s78
      %s82 = sphi 0, %s81
      %s98 = sphi 0, %s82
      %s104 = sphi 0, %s106
      %s107 = sphi 0, %s104
      %s108 = sphi 0, %s107
      %s124 = sphi 0, %s108
      %s130 = sphi 0, %s132
      %s133 = sphi 0, %s130
      %s134 = sphi 0, %s133
      %s150 = sphi 0, %s134
      %s156 = sphi 0, %s158
      %s159 = sphi 0, %s156
      %s160 = sphi 0, %s159
      %s176 = sphi 0, %s160
      %s182 = sphi 0, %s184
      %s185 = sphi 0, %s182
      %s186 = sphi 0, %s185
      %s202 = sphi 0, %s186
      %s208 = sphi 0, %s210
      %s211 = sphi 0, %s208
      %s212 = sphi 0, %s211
      %s228 = sphi 0, %s212
      %s234 = sphi 0, %s236
      %s237 = sphi 0, %s234
      %s238 = sphi 0, %s237
      %s254 = sphi 0, %s238
      %s260 = sphi 0, %s262
      %s263 = sphi 0, %s260
      %s264 = sphi 0, %s263
      %s280 = sphi 0, %s264
    $region4: #{focal_loss_forward.1} parent=1 // loop_header_branch
      %19 = sbr.rel (%p17) target = $region8
    $region5: #{focal_loss_forward.1} parent=1 // loop_body
      %s21 = ssub.s32 %s16, 1
      %s22 = ssub.s32 %s16, 2
      %s23 = sadd.s32 %s16, 1
      %s24 = ssub.s32 %s16, %s23
      %p25 = scmp.eq.s32.totalorder %s24, 0
      %s27 = sadd.s32 %s26, 1
      %s28 = scalar_select %p25, %s26, %s27
      %p31 = pneg %p25
      %p32 = scmp.eq.s32.totalorder %s16, 1
      %p33 = por %p31, %p32
      %p34 = scmp.ne.s32.totalorder %s26, %s29
      %p35 = scmp.eq.s32.totalorder %s16, 0
      %p36 = por %p34, %p35
      %p37 = scmp.ne.s32.totalorder %s26, %s29
      %p38 = scmp.eq.s32.totalorder %s21, 1
      %p39 = por %p37, %p38
      %p40 = scmp.ne.s32.totalorder %s29, %s30
      %p41 = scmp.eq.s32.totalorder %s21, 0
      %p42 = por %p40, %p41
      %p43 = scmp.ne.s32.totalorder %s29, %s30
      %p44 = scmp.eq.s32.totalorder %s22, 1
      %p45 = por %p43, %p44
      %p47 = scmp.ne.s32.totalorder %s30, %s46
      %p48 = scmp.eq.s32.totalorder %s22, 0
      %p49 = por %p47, %p48
      %s50 = ssub.s32 %s16, %s23
      %p51 = scmp.eq.s32.totalorder %s50, 0
      %s53 = sadd.s32 %s52, 1
      %s54 = scalar_select %p51, %s52, %s53
      %p57 = pneg %p51
      %p58 = scmp.eq.s32.totalorder %s16, 1
      %p59 = por %p57, %p58
      %p60 = scmp.ne.s32.totalorder %s52, %s55
      %p61 = scmp.eq.s32.totalorder %s16, 0
      %p62 = por %p60, %p61
      %p63 = scmp.ne.s32.totalorder %s52, %s55
      %p64 = scmp.eq.s32.totalorder %s21, 1
      %p65 = por %p63, %p64
      %p66 = scmp.ne.s32.totalorder %s55, %s56
      %p67 = scmp.eq.s32.totalorder %s21, 0
      %p68 = por %p66, %p67
      %p69 = scmp.ne.s32.totalorder %s55, %s56
      %p70 = scmp.eq.s32.totalorder %s22, 1
      %p71 = por %p69, %p70
      %p73 = scmp.ne.s32.totalorder %s56, %s72
      %p74 = scmp.eq.s32.totalorder %s22, 0
      %p75 = por %p73, %p74
      %s76 = ssub.s32 %s16, %s23
      %p77 = scmp.eq.s32.totalorder %s76, 0
      %s79 = sadd.s32 %s78, 1
      %s80 = scalar_select %p77, %s78, %s79
      %p83 = pneg %p77
      %p84 = scmp.eq.s32.totalorder %s16, 1
      %p85 = por %p83, %p84
      %p86 = scmp.ne.s32.totalorder %s78, %s81
      %p87 = scmp.eq.s32.totalorder %s16, 0
      %p88 = por %p86, %p87
      %p89 = scmp.ne.s32.totalorder %s78, %s81
      %p90 = scmp.eq.s32.totalorder %s21, 1
      %p91 = por %p89, %p90
      %p92 = scmp.ne.s32.totalorder %s81, %s82
      %p93 = scmp.eq.s32.totalorder %s21, 0
      %p94 = por %p92, %p93
      %p95 = scmp.ne.s32.totalorder %s81, %s82
      %p96 = scmp.eq.s32.totalorder %s22, 1
      %p97 = por %p95, %p96
      %p99 = scmp.ne.s32.totalorder %s82, %s98
      %p100 = scmp.eq.s32.totalorder %s22, 0
      %p101 = por %p99, %p100
      %s102 = ssub.s32 %s16, %s23
      %p103 = scmp.eq.s32.totalorder %s102, 0
      %s105 = sadd.s32 %s104, 1
      %s106 = scalar_select %p103, %s104, %s105
      %p109 = pneg %p103
      %p110 = scmp.eq.s32.totalorder %s16, 1
      %p111 = por %p109, %p110
      %p112 = scmp.ne.s32.totalorder %s104, %s107
      %p113 = scmp.eq.s32.totalorder %s16, 0
      %p114 = por %p112, %p113
      %p115 = scmp.ne.s32.totalorder %s104, %s107
      %p116 = scmp.eq.s32.totalorder %s21, 1
      %p117 = por %p115, %p116
      %p118 = scmp.ne.s32.totalorder %s107, %s108
      %p119 = scmp.eq.s32.totalorder %s21, 0
      %p120 = por %p118, %p119
      %p121 = scmp.ne.s32.totalorder %s107, %s108
      %p122 = scmp.eq.s32.totalorder %s22, 1
      %p123 = por %p121, %p122
      %p125 = scmp.ne.s32.totalorder %s108, %s124
      %p126 = scmp.eq.s32.totalorder %s22, 0
      %p127 = por %p125, %p126
      %s128 = ssub.s32 %s16, %s23
      %p129 = scmp.eq.s32.totalorder %s128, 0
      %s131 = sadd.s32 %s130, 1
      %s132 = scalar_select %p129, %s130, %s131
      %p135 = pneg %p129
      %p136 = scmp.eq.s32.totalorder %s16, 1
      %p137 = por %p135, %p136
      %p138 = scmp.ne.s32.totalorder %s130, %s133
      %p139 = scmp.eq.s32.totalorder %s16, 0
      %p140 = por %p138, %p139
      %p141 = scmp.ne.s32.totalorder %s130, %s133
      %p142 = scmp.eq.s32.totalorder %s21, 1
      %p143 = por %p141, %p142
      %p144 = scmp.ne.s32.totalorder %s133, %s134
      %p145 = scmp.eq.s32.totalorder %s21, 0
      %p146 = por %p144, %p145
      %p147 = scmp.ne.s32.totalorder %s133, %s134
      %p148 = scmp.eq.s32.totalorder %s22, 1
      %p149 = por %p147, %p148
      %p151 = scmp.ne.s32.totalorder %s134, %s150
      %p152 = scmp.eq.s32.totalorder %s22, 0
      %p153 = por %p151, %p152
      %s154 = ssub.s32 %s16, %s23
      %p155 = scmp.eq.s32.totalorder %s154, 0
      %s157 = sadd.s32 %s156, 1
      %s158 = scalar_select %p155, %s156, %s157
      %p161 = pneg %p155
      %p162 = scmp.eq.s32.totalorder %s16, 1
      %p163 = por %p161, %p162
      %p164 = scmp.ne.s32.totalorder %s156, %s159
      %p165 = scmp.eq.s32.totalorder %s16, 0
      %p166 = por %p164, %p165
      %p167 = scmp.ne.s32.totalorder %s156, %s159
      %p168 = scmp.eq.s32.totalorder %s21, 1
      %p169 = por %p167, %p168
      %p170 = scmp.ne.s32.totalorder %s159, %s160
      %p171 = scmp.eq.s32.totalorder %s21, 0
      %p172 = por %p170, %p171
      %p173 = scmp.ne.s32.totalorder %s159, %s160
      %p174 = scmp.eq.s32.totalorder %s22, 1
      %p175 = por %p173, %p174
      %p177 = scmp.ne.s32.totalorder %s160, %s176
      %p178 = scmp.eq.s32.totalorder %s22, 0
      %p179 = por %p177, %p178
      %s180 = ssub.s32 %s16, %s23
      %p181 = scmp.eq.s32.totalorder %s180, 0
      %s183 = sadd.s32 %s182, 1
      %s184 = scalar_select %p181, %s182, %s183
      %p187 = pneg %p181
      %p188 = scmp.eq.s32.totalorder %s16, 1
      %p189 = por %p187, %p188
      %p190 = scmp.ne.s32.totalorder %s182, %s185
      %p191 = scmp.eq.s32.totalorder %s16, 0
      %p192 = por %p190, %p191
      %p193 = scmp.ne.s32.totalorder %s182, %s185
      %p194 = scmp.eq.s32.totalorder %s21, 1
      %p195 = por %p193, %p194
      %p196 = scmp.ne.s32.totalorder %s185, %s186
      %p197 = scmp.eq.s32.totalorder %s21, 0
      %p198 = por %p196, %p197
      %p199 = scmp.ne.s32.totalorder %s185, %s186
      %p200 = scmp.eq.s32.totalorder %s22, 1
      %p201 = por %p199, %p200
      %p203 = scmp.ne.s32.totalorder %s186, %s202
      %p204 = scmp.eq.s32.totalorder %s22, 0
      %p205 = por %p203, %p204
      %s206 = ssub.s32 %s16, %s23
      %p207 = scmp.eq.s32.totalorder %s206, 0
      %s209 = sadd.s32 %s208, 1
      %s210 = scalar_select %p207, %s208, %s209
      %p213 = pneg %p207
      %p214 = scmp.eq.s32.totalorder %s16, 1
      %p215 = por %p213, %p214
      %p216 = scmp.ne.s32.totalorder %s208, %s211
      %p217 = scmp.eq.s32.totalorder %s16, 0
      %p218 = por %p216, %p217
      %p219 = scmp.ne.s32.totalorder %s208, %s211
      %p220 = scmp.eq.s32.totalorder %s21, 1
      %p221 = por %p219, %p220
      %p222 = scmp.ne.s32.totalorder %s211, %s212
      %p223 = scmp.eq.s32.totalorder %s21, 0
      %p224 = por %p222, %p223
      %p225 = scmp.ne.s32.totalorder %s211, %s212
      %p226 = scmp.eq.s32.totalorder %s22, 1
      %p227 = por %p225, %p226
      %p229 = scmp.ne.s32.totalorder %s212, %s228
      %p230 = scmp.eq.s32.totalorder %s22, 0
      %p231 = por %p229, %p230
      %s232 = ssub.s32 %s16, %s23
      %p233 = scmp.eq.s32.totalorder %s232, 0
      %s235 = sadd.s32 %s234, 1
      %s236 = scalar_select %p233, %s234, %s235
      %p239 = pneg %p233
      %p240 = scmp.eq.s32.totalorder %s16, 1
      %p241 = por %p239, %p240
      %p242 = scmp.ne.s32.totalorder %s234, %s237
      %p243 = scmp.eq.s32.totalorder %s16, 0
      %p244 = por %p242, %p243
      %p245 = scmp.ne.s32.totalorder %s234, %s237
      %p246 = scmp.eq.s32.totalorder %s21, 1
      %p247 = por %p245, %p246
      %p248 = scmp.ne.s32.totalorder %s237, %s238
      %p249 = scmp.eq.s32.totalorder %s21, 0
      %p250 = por %p248, %p249
      %p251 = scmp.ne.s32.totalorder %s237, %s238
      %p252 = scmp.eq.s32.totalorder %s22, 1
      %p253 = por %p251, %p252
      %p255 = scmp.ne.s32.totalorder %s238, %s254
      %p256 = scmp.eq.s32.totalorder %s22, 0
      %p257 = por %p255, %p256
      %s258 = ssub.s32 %s16, %s23
      %p259 = scmp.eq.s32.totalorder %s258, 0
      %s261 = sadd.s32 %s260, 1
      %s262 = scalar_select %p259, %s260, %s261
      %p265 = pneg %p259
      %p266 = scmp.eq.s32.totalorder %s16, 1
      %p267 = por %p265, %p266
      %p268 = scmp.ne.s32.totalorder %s260, %s263
      %p269 = scmp.eq.s32.totalorder %s16, 0
      %p270 = por %p268, %p269
      %p271 = scmp.ne.s32.totalorder %s260, %s263
      %p272 = scmp.eq.s32.totalorder %s21, 1
      %p273 = por %p271, %p272
      %p274 = scmp.ne.s32.totalorder %s263, %s264
      %p275 = scmp.eq.s32.totalorder %s21, 0
      %p276 = por %p274, %p275
      %p277 = scmp.ne.s32.totalorder %s263, %s264
      %p278 = scmp.eq.s32.totalorder %s22, 1
      %p279 = por %p277, %p278
      %p281 = scmp.ne.s32.totalorder %s264, %s280
      %p282 = scmp.eq.s32.totalorder %s22, 0
      %p283 = por %p281, %p282
      %p284 = scmp.le.s32.totalorder 1, %s16
      %p285 = scmp.lt.s32.totalorder %s16, 3
      %p286 = pnand %p284, %p285
      %p287 = pneg %p286
      // Predicated region
      $region9: #{focal_loss_forward.1} parent=5 // pred_check
        _
      $region10: #{focal_loss_forward.1} parent=5 // pred_check_branch
        %289 = sbr.rel (%p286) target = $region12
      $region11: #{focal_loss_forward.1} parent=5 // pred_region
        %s290 = ssub.s32 %s16, 1
      $region12: #{focal_loss_forward.1} parent=5 // pred_fallthru
        _
      %p291 = scmp.lt.s32.totalorder %s16, 2
      // Predicated region
      $region13: #{focal_loss_forward.1} parent=5 // pred_check
        %p292 = pneg %p291
      $region14: #{focal_loss_forward.1} parent=5 // pred_check_branch
        %294 = sbr.rel (%p292) target = $region16
      $region15: #{focal_loss_forward.1} parent=5 // pred_region
        // Predicated region
        $region17: #{focal_loss_forward.1} parent=15 // pred_check
          %p295 = pneg %p36
        $region18: #{focal_loss_forward.1} parent=15 // pred_check_branch
          %297 = sbr.rel (%p295) target = $region20
        $region19: #{focal_loss_forward.1} parent=15 // pred_region
          %s298 = smul.u32 32, %s16
          %p299 = scmp.lt.s32.totalorder %s298, 63
          %s300 = scalar_select %p299, %s298, 63
          %s301 = smul.addr %s300, 4
          %s302 = scalar_lea.vmem %s0, %s301
          %s303 = smul.u32 32, %s16
        $region20: #{focal_loss_forward.1} parent=15 // pred_fallthru
          _
        // Predicated region
        $region21: #{focal_loss_forward.1} parent=15 // pred_check
          %p304 = pneg %p62
        $region22: #{focal_loss_forward.1} parent=15 // pred_check_branch
          %306 = sbr.rel (%p304) target = $region24
        $region23: #{focal_loss_forward.1} parent=15 // pred_region
          %s307 = smul.u32 32, %s16
          %p308 = scmp.lt.s32.totalorder %s307, 63
          %s309 = scalar_select %p308, %s307, 63
          %s310 = smul.addr %s309, 4
          %s311 = scalar_lea.vmem %s1, %s310
          %s312 = smul.u32 32, %s16
        $region24: #{focal_loss_forward.1} parent=15 // pred_fallthru
          _
        // Predicated region
        $region25: #{focal_loss_forward.1} parent=15 // pred_check
          %p313 = pneg %p88
        $region26: #{focal_loss_forward.1} parent=15 // pred_check_branch
          %315 = sbr.rel (%p313) target = $region28
        $region27: #{focal_loss_forward.1} parent=15 // pred_region
          %s316 = smul.u32 32, %s16
          %p317 = scmp.lt.s32.totalorder %s316, 63
          %s318 = scalar_select %p317, %s316, 63
          %s319 = smul.addr %s318, 4
          %s320 = scalar_lea.vmem %s2, %s319
          %s321 = smul.u32 32, %s16
        $region28: #{focal_loss_forward.1} parent=15 // pred_fallthru
          _
        // Predicated region
        $region29: #{focal_loss_forward.1} parent=15 // pred_check
          %p322 = pneg %p114
        $region30: #{focal_loss_forward.1} parent=15 // pred_check_branch
          %324 = sbr.rel (%p322) target = $region32
        $region31: #{focal_loss_forward.1} parent=15 // pred_region
          %s325 = sand.u32 %s104, 1
          %s326 = sand.u32 %s104, 1
          %s327 = smul.addr %s326, 768
          %s328 = scalar_lea.vmem [#allocation2], %s327
          %s329 = smul.u32 32, %s16
          %s330 = smul.addr %s329, 8
          %s331 = scalar_lea.vmem %s3, %s330
          // Predicated region
          $region33: #{focal_loss_forward.1} parent=31 // pred_check
            _
          $region34: #{focal_loss_forward.1} parent=31 // pred_check_branch
            %333 = sbr.rel (0) target = $region36
          $region35: #{focal_loss_forward.1} parent=31 // pred_region
            // Predicated region
            $region37: #{focal_loss_forward.1} parent=35 // pred_check
              _
            $region38: #{focal_loss_forward.1} parent=35 // pred_check_branch
              %335 = sbr.rel (0) target = $region40
            $region39: #{focal_loss_forward.1} parent=35 // pred_region
              loop: start=0, step=1, limit=1
              $region41: #{focal_loss_forward.1} parent=39 // loop_pre_header
                _
              $region42: #{focal_loss_forward.1} parent=39 // loop_header
                %s337 = sphi 0, %s341
                %p338 = scmp.ge.s32.totalorder %s337, 1
                %s342 = sphi %s331, %s331
                %s343 = sphi %s328, %s328
              $region43: #{focal_loss_forward.1} parent=39 // loop_header_branch
                %340 = sbr.rel (%p338) target = $region47
              $region44: #{focal_loss_forward.1} parent=39 // loop_body
                %v344 = vld [vmem:[%s342] sm:$0xff]
                %345 = vst [vmem:[%s343] sm:$0xff] %v344
                %v346 = vld [vmem:[%s342 + $0x8] sm:$0xff]
                %347 = vst [vmem:[%s343 + $0x8] sm:$0xff] %v346
                %v348 = vld [vmem:[%s342 + $0x10] sm:$0xff]
                %349 = vst [vmem:[%s343 + $0x10] sm:$0xff] %v348
                %v350 = vld [vmem:[%s342 + $0x18] sm:$0xff]
                %351 = vst [vmem:[%s343 + $0x18] sm:$0xff] %v350
                %v352 = vld [vmem:[%s342 + $0x20] sm:$0xff]
                %353 = vst [vmem:[%s343 + $0x20] sm:$0xff] %v352
                %v354 = vld [vmem:[%s342 + $0x28] sm:$0xff]
                %355 = vst [vmem:[%s343 + $0x28] sm:$0xff] %v354
                %v356 = vld [vmem:[%s342 + $0x30] sm:$0xff]
                %357 = vst [vmem:[%s343 + $0x30] sm:$0xff] %v356
                %v358 = vld [vmem:[%s342 + $0x38] sm:$0xff]
                %359 = vst [vmem:[%s343 + $0x38] sm:$0xff] %v358
                %v360 = vld [vmem:[%s342 + $0x40] sm:$0xff]
                %361 = vst [vmem:[%s343 + $0x40] sm:$0xff] %v360
                %v362 = vld [vmem:[%s342 + $0x48] sm:$0xff]
                %363 = vst [vmem:[%s343 + $0x48] sm:$0xff] %v362
                %v364 = vld [vmem:[%s342 + $0x50] sm:$0xff]
                %365 = vst [vmem:[%s343 + $0x50] sm:$0xff] %v364
                %v366 = vld [vmem:[%s342 + $0x58] sm:$0xff]
                %367 = vst [vmem:[%s343 + $0x58] sm:$0xff] %v366
                %v368 = vld [vmem:[%s342 + $0x60] sm:$0xff]
                %369 = vst [vmem:[%s343 + $0x60] sm:$0xff] %v368
                %v370 = vld [vmem:[%s342 + $0x68] sm:$0xff]
                %371 = vst [vmem:[%s343 + $0x68] sm:$0xff] %v370
                %v372 = vld [vmem:[%s342 + $0x70] sm:$0xff]
                %373 = vst [vmem:[%s343 + $0x70] sm:$0xff] %v372
                %v374 = vld [vmem:[%s342 + $0x78] sm:$0xff]
                %375 = vst [vmem:[%s343 + $0x78] sm:$0xff] %v374
                %v376 = vld [vmem:[%s342 + $0x80] sm:$0xff]
                %377 = vst [vmem:[%s343 + $0x80] sm:$0xff] %v376
                %v378 = vld [vmem:[%s342 + $0x88] sm:$0xff]
                %379 = vst [vmem:[%s343 + $0x88] sm:$0xff] %v378
                %v380 = vld [vmem:[%s342 + $0x90] sm:$0xff]
                %381 = vst [vmem:[%s343 + $0x90] sm:$0xff] %v380
                %v382 = vld [vmem:[%s342 + $0x98] sm:$0xff]
                %383 = vst [vmem:[%s343 + $0x98] sm:$0xff] %v382
                %v384 = vld [vmem:[%s342 + $0xa0] sm:$0xff]
                %385 = vst [vmem:[%s343 + $0xa0] sm:$0xff] %v384
                %v386 = vld [vmem:[%s342 + $0xa8] sm:$0xff]
                %387 = vst [vmem:[%s343 + $0xa8] sm:$0xff] %v386
                %v388 = vld [vmem:[%s342 + $0xb0] sm:$0xff]
                %389 = vst [vmem:[%s343 + $0xb0] sm:$0xff] %v388
                %v390 = vld [vmem:[%s342 + $0xb8] sm:$0xff]
                %391 = vst [vmem:[%s343 + $0xb8] sm:$0xff] %v390
                %v392 = vld [vmem:[%s342 + $0xc0] sm:$0xff]
                %393 = vst [vmem:[%s343 + $0xc0] sm:$0xff] %v392
                %v394 = vld [vmem:[%s342 + $0xc8] sm:$0xff]
                %395 = vst [vmem:[%s343 + $0xc8] sm:$0xff] %v394
                %v396 = vld [vmem:[%s342 + $0xd0] sm:$0xff]
                %397 = vst [vmem:[%s343 + $0xd0] sm:$0xff] %v396
                %v398 = vld [vmem:[%s342 + $0xd8] sm:$0xff]
                %399 = vst [vmem:[%s343 + $0xd8] sm:$0xff] %v398
                %v400 = vld [vmem:[%s342 + $0xe0] sm:$0xff]
                %401 = vst [vmem:[%s343 + $0xe0] sm:$0xff] %v400
                %v402 = vld [vmem:[%s342 + $0xe8] sm:$0xff]
                %403 = vst [vmem:[%s343 + $0xe8] sm:$0xff] %v402
                %v404 = vld [vmem:[%s342 + $0xf0] sm:$0xff]
                %405 = vst [vmem:[%s343 + $0xf0] sm:$0xff] %v404
                %v406 = vld [vmem:[%s342 + $0xf8] sm:$0xff]
                %407 = vst [vmem:[%s343 + $0xf8] sm:$0xff] %v406
                %v408 = vld [vmem:[%s342 + $0x200] sm:$0xff]
                %409 = vst [vmem:[%s343 + $0x100] sm:$0xff] %v408
                %v410 = vld [vmem:[%s342 + $0x208] sm:$0xff]
                %411 = vst [vmem:[%s343 + $0x108] sm:$0xff] %v410
                %v412 = vld [vmem:[%s342 + $0x210] sm:$0xff]
                %413 = vst [vmem:[%s343 + $0x110] sm:$0xff] %v412
                %v414 = vld [vmem:[%s342 + $0x218] sm:$0xff]
                %415 = vst [vmem:[%s343 + $0x118] sm:$0xff] %v414
                %v416 = vld [vmem:[%s342 + $0x220] sm:$0xff]
                %417 = vst [vmem:[%s343 + $0x120] sm:$0xff] %v416
                %v418 = vld [vmem:[%s342 + $0x228] sm:$0xff]
                %419 = vst [vmem:[%s343 + $0x128] sm:$0xff] %v418
                %v420 = vld [vmem:[%s342 + $0x230] sm:$0xff]
                %421 = vst [vmem:[%s343 + $0x130] sm:$0xff] %v420
                %v422 = vld [vmem:[%s342 + $0x238] sm:$0xff]
                %423 = vst [vmem:[%s343 + $0x138] sm:$0xff] %v422
                %v424 = vld [vmem:[%s342 + $0x240] sm:$0xff]
                %425 = vst [vmem:[%s343 + $0x140] sm:$0xff] %v424
                %v426 = vld [vmem:[%s342 + $0x248] sm:$0xff]
                %427 = vst [vmem:[%s343 + $0x148] sm:$0xff] %v426
                %v428 = vld [vmem:[%s342 + $0x250] sm:$0xff]
                %429 = vst [vmem:[%s343 + $0x150] sm:$0xff] %v428
                %v430 = vld [vmem:[%s342 + $0x258] sm:$0xff]
                %431 = vst [vmem:[%s343 + $0x158] sm:$0xff] %v430
                %v432 = vld [vmem:[%s342 + $0x260] sm:$0xff]
                %433 = vst [vmem:[%s343 + $0x160] sm:$0xff] %v432
                %v434 = vld [vmem:[%s342 + $0x268] sm:$0xff]
                %435 = vst [vmem:[%s343 + $0x168] sm:$0xff] %v434
                %v436 = vld [vmem:[%s342 + $0x270] sm:$0xff]
                %437 = vst [vmem:[%s343 + $0x170] sm:$0xff] %v436
                %v438 = vld [vmem:[%s342 + $0x278] sm:$0xff]
                %439 = vst [vmem:[%s343 + $0x178] sm:$0xff] %v438
                %v440 = vld [vmem:[%s342 + $0x280] sm:$0xff]
                %441 = vst [vmem:[%s343 + $0x180] sm:$0xff] %v440
                %v442 = vld [vmem:[%s342 + $0x288] sm:$0xff]
                %443 = vst [vmem:[%s343 + $0x188] sm:$0xff] %v442
                %v444 = vld [vmem:[%s342 + $0x290] sm:$0xff]
                %445 = vst [vmem:[%s343 + $0x190] sm:$0xff] %v444
                %v446 = vld [vmem:[%s342 + $0x298] sm:$0xff]
                %447 = vst [vmem:[%s343 + $0x198] sm:$0xff] %v446
                %v448 = vld [vmem:[%s342 + $0x2a0] sm:$0xff]
                %449 = vst [vmem:[%s343 + $0x1a0] sm:$0xff] %v448
                %v450 = vld [vmem:[%s342 + $0x2a8] sm:$0xff]
                %451 = vst [vmem:[%s343 + $0x1a8] sm:$0xff] %v450
                %v452 = vld [vmem:[%s342 + $0x2b0] sm:$0xff]
                %453 = vst [vmem:[%s343 + $0x1b0] sm:$0xff] %v452
                %v454 = vld [vmem:[%s342 + $0x2b8] sm:$0xff]
                %455 = vst [vmem:[%s343 + $0x1b8] sm:$0xff] %v454
                %v456 = vld [vmem:[%s342 + $0x2c0] sm:$0xff]
                %457 = vst [vmem:[%s343 + $0x1c0] sm:$0xff] %v456
                %v458 = vld [vmem:[%s342 + $0x2c8] sm:$0xff]
                %459 = vst [vmem:[%s343 + $0x1c8] sm:$0xff] %v458
                %v460 = vld [vmem:[%s342 + $0x2d0] sm:$0xff]
                %461 = vst [vmem:[%s343 + $0x1d0] sm:$0xff] %v460
                %v462 = vld [vmem:[%s342 + $0x2d8] sm:$0xff]
                %463 = vst [vmem:[%s343 + $0x1d8] sm:$0xff] %v462
                %v464 = vld [vmem:[%s342 + $0x2e0] sm:$0xff]
                %465 = vst [vmem:[%s343 + $0x1e0] sm:$0xff] %v464
                %v466 = vld [vmem:[%s342 + $0x2e8] sm:$0xff]
                %467 = vst [vmem:[%s343 + $0x1e8] sm:$0xff] %v466
                %v468 = vld [vmem:[%s342 + $0x2f0] sm:$0xff]
                %469 = vst [vmem:[%s343 + $0x1f0] sm:$0xff] %v468
                %v470 = vld [vmem:[%s342 + $0x2f8] sm:$0xff]
                %471 = vst [vmem:[%s343 + $0x1f8] sm:$0xff] %v470
                %v472 = vld [vmem:[%s342 + $0x400] sm:$0xff]
                %473 = vst [vmem:[%s343 + $0x200] sm:$0xff] %v472
                %v474 = vld [vmem:[%s342 + $0x408] sm:$0xff]
                %475 = vst [vmem:[%s343 + $0x208] sm:$0xff] %v474
                %v476 = vld [vmem:[%s342 + $0x410] sm:$0xff]
                %477 = vst [vmem:[%s343 + $0x210] sm:$0xff] %v476
                %v478 = vld [vmem:[%s342 + $0x418] sm:$0xff]
                %479 = vst [vmem:[%s343 + $0x218] sm:$0xff] %v478
                %v480 = vld [vmem:[%s342 + $0x420] sm:$0xff]
                %481 = vst [vmem:[%s343 + $0x220] sm:$0xff] %v480
                %v482 = vld [vmem:[%s342 + $0x428] sm:$0xff]
                %483 = vst [vmem:[%s343 + $0x228] sm:$0xff] %v482
                %v484 = vld [vmem:[%s342 + $0x430] sm:$0xff]
                %485 = vst [vmem:[%s343 + $0x230] sm:$0xff] %v484
                %v486 = vld [vmem:[%s342 + $0x438] sm:$0xff]
                %487 = vst [vmem:[%s343 + $0x238] sm:$0xff] %v486
                %v488 = vld [vmem:[%s342 + $0x440] sm:$0xff]
                %489 = vst [vmem:[%s343 + $0x240] sm:$0xff] %v488
                %v490 = vld [vmem:[%s342 + $0x448] sm:$0xff]
                %491 = vst [vmem:[%s343 + $0x248] sm:$0xff] %v490
                %v492 = vld [vmem:[%s342 + $0x450] sm:$0xff]
                %493 = vst [vmem:[%s343 + $0x250] sm:$0xff] %v492
                %v494 = vld [vmem:[%s342 + $0x458] sm:$0xff]
                %495 = vst [vmem:[%s343 + $0x258] sm:$0xff] %v494
                %v496 = vld [vmem:[%s342 + $0x460] sm:$0xff]
                %497 = vst [vmem:[%s343 + $0x260] sm:$0xff] %v496
                %v498 = vld [vmem:[%s342 + $0x468] sm:$0xff]
                %499 = vst [vmem:[%s343 + $0x268] sm:$0xff] %v498
                %v500 = vld [vmem:[%s342 + $0x470] sm:$0xff]
                %501 = vst [vmem:[%s343 + $0x270] sm:$0xff] %v500
                %v502 = vld [vmem:[%s342 + $0x478] sm:$0xff]
                %503 = vst [vmem:[%s343 + $0x278] sm:$0xff] %v502
                %v504 = vld [vmem:[%s342 + $0x480] sm:$0xff]
                %505 = vst [vmem:[%s343 + $0x280] sm:$0xff] %v504
                %v506 = vld [vmem:[%s342 + $0x488] sm:$0xff]
                %507 = vst [vmem:[%s343 + $0x288] sm:$0xff] %v506
                %v508 = vld [vmem:[%s342 + $0x490] sm:$0xff]
                %509 = vst [vmem:[%s343 + $0x290] sm:$0xff] %v508
                %v510 = vld [vmem:[%s342 + $0x498] sm:$0xff]
                %511 = vst [vmem:[%s343 + $0x298] sm:$0xff] %v510
                %v512 = vld [vmem:[%s342 + $0x4a0] sm:$0xff]
                %513 = vst [vmem:[%s343 + $0x2a0] sm:$0xff] %v512
                %v514 = vld [vmem:[%s342 + $0x4a8] sm:$0xff]
                %515 = vst [vmem:[%s343 + $0x2a8] sm:$0xff] %v514
                %v516 = vld [vmem:[%s342 + $0x4b0] sm:$0xff]
                %517 = vst [vmem:[%s343 + $0x2b0] sm:$0xff] %v516
                %v518 = vld [vmem:[%s342 + $0x4b8] sm:$0xff]
                %519 = vst [vmem:[%s343 + $0x2b8] sm:$0xff] %v518
                %v520 = vld [vmem:[%s342 + $0x4c0] sm:$0xff]
                %521 = vst [vmem:[%s343 + $0x2c0] sm:$0xff] %v520
                %v522 = vld [vmem:[%s342 + $0x4c8] sm:$0xff]
                %523 = vst [vmem:[%s343 + $0x2c8] sm:$0xff] %v522
                %v524 = vld [vmem:[%s342 + $0x4d0] sm:$0xff]
                %525 = vst [vmem:[%s343 + $0x2d0] sm:$0xff] %v524
                %v526 = vld [vmem:[%s342 + $0x4d8] sm:$0xff]
                %527 = vst [vmem:[%s343 + $0x2d8] sm:$0xff] %v526
                %v528 = vld [vmem:[%s342 + $0x4e0] sm:$0xff]
                %529 = vst [vmem:[%s343 + $0x2e0] sm:$0xff] %v528
                %v530 = vld [vmem:[%s342 + $0x4e8] sm:$0xff]
                %531 = vst [vmem:[%s343 + $0x2e8] sm:$0xff] %v530
                %v532 = vld [vmem:[%s342 + $0x4f0] sm:$0xff]
                %533 = vst [vmem:[%s343 + $0x2f0] sm:$0xff] %v532
                %v534 = vld [vmem:[%s342 + $0x4f8] sm:$0xff]
                %535 = vst [vmem:[%s343 + $0x2f8] sm:$0xff] %v534
              $region45: #{focal_loss_forward.1} parent=39 // loop_footer
                %s341 = sadd.s32 1, %s337
              $region46: #{focal_loss_forward.1} parent=39 // loop_footer_branch
                %336 = sbr.rel target = $region42
              $region47: #{focal_loss_forward.1} parent=39 // loop_exit
                _
            $region40: #{focal_loss_forward.1} parent=35 // pred_fallthru
              _
            // Predicated region
            $region48: #{focal_loss_forward.1} parent=35 // pred_check
              _
            $region49: #{focal_loss_forward.1} parent=35 // pred_check_branch
              %537 = sbr.rel target = $region51
            $region50: #{focal_loss_forward.1} parent=35 // pred_region
              _
            $region51: #{focal_loss_forward.1} parent=35 // pred_fallthru
              _
          $region36: #{focal_loss_forward.1} parent=31 // pred_fallthru
            _
          %538 = vnop
        $region32: #{focal_loss_forward.1} parent=15 // pred_fallthru
          _
        // Predicated region
        $region52: #{focal_loss_forward.1} parent=15 // pred_check
          %p539 = pneg %p140
        $region53: #{focal_loss_forward.1} parent=15 // pred_check_branch
          %541 = sbr.rel (%p539) target = $region55
        $region54: #{focal_loss_forward.1} parent=15 // pred_region
          %s542 = smul.u32 32, %s16
          %p543 = scmp.lt.s32.totalorder %s542, 63
          %s544 = scalar_select %p543, %s542, 63
          %s545 = scalar_lea.vmem %s4, %s544
          %s546 = smul.u32 32, %s16
        $region55: #{focal_loss_forward.1} parent=15 // pred_fallthru
          _
        // Predicated region
        $region56: #{focal_loss_forward.1} parent=15 // pred_check
          %p547 = pneg %p166
        $region57: #{focal_loss_forward.1} parent=15 // pred_check_branch
          %549 = sbr.rel (%p547) target = $region59
        $region58: #{focal_loss_forward.1} parent=15 // pred_region
          %s550 = smul.u32 32, %s16
          %p551 = scmp.lt.s32.totalorder %s550, 63
          %s552 = scalar_select %p551, %s550, 63
          %s553 = smul.addr %s552, 2
          %s554 = scalar_lea.vmem %s5, %s553
          %s555 = smul.u32 32, %s16
        $region59: #{focal_loss_forward.1} parent=15 // pred_fallthru
          _
        // Predicated region
        $region60: #{focal_loss_forward.1} parent=15 // pred_check
          %p556 = pneg %p192
        $region61: #{focal_loss_forward.1} parent=15 // pred_check_branch
          %558 = sbr.rel (%p556) target = $region63
        $region62: #{focal_loss_forward.1} parent=15 // pred_region
          %s559 = smul.u32 32, %s16
          %p560 = scmp.lt.s32.totalorder %s559, 63
          %s561 = scalar_select %p560, %s559, 63
          %s562 = scalar_lea.vmem %s6, %s561
          %s563 = smul.u32 32, %s16
        $region63: #{focal_loss_forward.1} parent=15 // pred_fallthru
          _
      $region16: #{focal_loss_forward.1} parent=5 // pred_fallthru
        _
      %p564 = scmp.le.s32.totalorder 1, %s16
      %p565 = scmp.lt.s32.totalorder %s16, 3
      %p566 = pnand %p564, %p565
      %p567 = pneg %p566
      // Predicated region
      $region64: #{focal_loss_forward.1} parent=5 // pred_check
        _
      $region65: #{focal_loss_forward.1} parent=5 // pred_check_branch
        %569 = sbr.rel (%p566) target = $region67
      $region66: #{focal_loss_forward.1} parent=5 // pred_region
        %s570 = ssub.s32 %s16, 1
        %s571 = sand.u32 %s107, 1
        %s572 = sand.u32 %s107, 1
        %s573 = smul.addr %s572, 768
        %s574 = scalar_lea.vmem [#allocation2], %s573
        // Predicated region
        $region68: #{focal_loss_forward.1} parent=66 // pred_check
          %p575 = pneg %p120
        $region69: #{focal_loss_forward.1} parent=66 // pred_check_branch
          %577 = sbr.rel (%p575) target = $region71
        $region70: #{focal_loss_forward.1} parent=66 // pred_region
          _
        $region71: #{focal_loss_forward.1} parent=66 // pred_fallthru
          _
        %s578 = smul.u32 32, %s21
        %p579 = scmp.lt.s32.totalorder %s578, 63
        %s580 = scalar_select %p579, %s578, 63
        %s581 = smul.addr %s580, 4
        %s582 = scalar_lea.vmem %s0, %s581
        %p583 = pneg %p42
        %p584 = pneg %p39
        %s585 = smul.u32 32, %s21
        %p586 = scmp.lt.s32.totalorder %s585, 63
        %s587 = scalar_select %p586, %s585, 63
        %s588 = smul.addr %s587, 4
        %s589 = scalar_lea.vmem %s1, %s588
        %p590 = pneg %p68
        %p591 = pneg %p65
        %s592 = smul.u32 32, %s21
        %p593 = scmp.lt.s32.totalorder %s592, 63
        %s594 = scalar_select %p593, %s592, 63
        %s595 = smul.addr %s594, 4
        %s596 = scalar_lea.vmem %s2, %s595
        %p597 = pneg %p94
        %p598 = pneg %p91
        %s599 = sand.u32 %s107, 1
        %s600 = sand.u32 %s107, 1
        %s601 = smul.addr %s600, 768
        %s602 = scalar_lea.vmem [#allocation2], %s601
        %p603 = pneg %p120
        %p604 = pneg %p117
        %s605 = smul.u32 32, %s21
        %p606 = scmp.lt.s32.totalorder %s605, 63
        %s607 = scalar_select %p606, %s605, 63
        %s608 = scalar_lea.vmem %s4, %s607
        %p609 = pneg %p146
        %p610 = pneg %p143
        %s611 = smul.u32 32, %s21
        %p612 = scmp.lt.s32.totalorder %s611, 63
        %s613 = scalar_select %p612, %s611, 63
        %s614 = smul.addr %s613, 2
        %s615 = scalar_lea.vmem %s5, %s614
        %p616 = pneg %p172
        %p617 = pneg %p169
        %s618 = smul.u32 32, %s21
        %p619 = scmp.lt.s32.totalorder %s618, 63
        %s620 = scalar_select %p619, %s618, 63
        %s621 = scalar_lea.vmem %s6, %s620
        %p622 = pneg %p198
        %p623 = pneg %p195
        %p624 = pneg %p224
        %p625 = pneg %p221
        %s626 = smul.u32 32, %s21
        %p627 = scmp.lt.s32.totalorder %s626, 63
        %s628 = scalar_select %p627, %s626, 63
        %s629 = scalar_lea.vmem %s7, %s628
        %p630 = pneg %p250
        %p631 = pneg %p247
        %s632 = smul.u32 32, %s21
        %p633 = scmp.lt.s32.totalorder %s632, 63
        %s634 = scalar_select %p633, %s632, 63
        %s635 = scalar_lea.vmem %s8, %s634
        %p636 = pneg %p276
        %p637 = pneg %p273
        %p638 = scmp.lt.s32.totalorder %s21, 1
        %s639 = scalar_select %p638, %s21, 1
        %s640 = scalar_lea.vmem %s9, %s639
        %s641 = smul.u32 32, %s21
        %p642 = scmp.lt.s32.totalorder %s641, 63
        %s643 = scalar_select %p642, %s641, 63
        %s644 = smul.addr %s643, 4
        %s645 = scalar_lea.vmem %s0, %s644
        %s646 = smul.u32 32, %s21
        %s647 = smul.u32 32, %s21
        %p648 = scmp.lt.s32.totalorder %s647, 63
        %s649 = scalar_select %p648, %s647, 63
        %s650 = smul.addr %s649, 4
        %s651 = scalar_lea.vmem %s1, %s650
        %s652 = smul.u32 32, %s21
        %s653 = smul.u32 32, %s21
        %p654 = scmp.lt.s32.totalorder %s653, 63
        %s655 = scalar_select %p654, %s653, 63
        %s656 = smul.addr %s655, 4
        %s657 = scalar_lea.vmem %s2, %s656
        %s658 = smul.u32 32, %s21
        %s659 = smul.u32 32, %s21
        %s660 = smul.u32 32, %s21
        %p661 = scmp.lt.s32.totalorder %s660, 63
        %s662 = scalar_select %p661, %s660, 63
        %s663 = scalar_lea.vmem %s4, %s662
        %s664 = smul.u32 32, %s21
        %s665 = smul.u32 32, %s21
        %p666 = scmp.lt.s32.totalorder %s665, 63
        %s667 = scalar_select %p666, %s665, 63
        %s668 = smul.addr %s667, 2
        %s669 = scalar_lea.vmem %s5, %s668
        %s670 = smul.u32 32, %s21
        %s671 = smul.u32 32, %s21
        %p672 = scmp.lt.s32.totalorder %s671, 63
        %s673 = scalar_select %p672, %s671, 63
        %s674 = scalar_lea.vmem %s6, %s673
        %s675 = smul.u32 32, %s21
        %s676 = smul.u32 32, %s21
        %p677 = scmp.lt.s32.totalorder %s676, 63
        %s678 = scalar_select %p677, %s676, 63
        %s679 = scalar_lea.vmem %s7, %s678
        %s680 = smul.u32 32, %s21
        %s681 = smul.u32 32, %s21
        %p682 = scmp.lt.s32.totalorder %s681, 63
        %s683 = scalar_select %p682, %s681, 63
        %s684 = scalar_lea.vmem %s8, %s683
        %s685 = smul.u32 32, %s21
        %p686 = scmp.lt.s32.totalorder %s21, 1
        %s687 = scalar_select %p686, %s21, 1
        %s688 = scalar_lea.vmem %s9, %s687
        %v689 = vld [vmem:[%s669] ss:$2 sm:$0xff]
        %s690 = scalar_lea.vmem %s669, 16
        %v691 = vld [vmem:[%s690] ss:$2 sm:$0xff]
        %s692 = scalar_lea.vmem %s669, 32
        %v693 = vld [vmem:[%s692] ss:$2 sm:$0xff]
        %s694 = scalar_lea.vmem %s669, 48
        %v695 = vld [vmem:[%s694] ss:$2 sm:$0xff]
        %s696 = scalar_lea.vmem %s669, 1
        %v697 = vld [vmem:[%s696] ss:$2 sm:$0xff]
        %s698 = scalar_lea.vmem %s669, 17
        %v699 = vld [vmem:[%s698] ss:$2 sm:$0xff]
        %s700 = scalar_lea.vmem %s669, 33
        %v701 = vld [vmem:[%s700] ss:$2 sm:$0xff]
        %s702 = scalar_lea.vmem %s669, 49
        %v703 = vld [vmem:[%s702] ss:$2 sm:$0xff]
        %v704 = vsub.f32 %v697, %v689
        %v705 = vsub.f32 %v699, %v691
        %v706 = vsub.f32 %v701, %v693
        %v707 = vsub.f32 %v703, %v695
        %v708 = vand.u32 2147483647, %v704
        %v709 = vand.u32 2147483647, %v705
        %v710 = vand.u32 2147483647, %v706
        %v711 = vand.u32 2147483647, %v707
        %v712 = vsub.f32 0.0, %v708
        %v713 = vsub.f32 0.0, %v709
        %v714 = vsub.f32 0.0, %v710
        %v715 = vsub.f32 0.0, %v711
        %v716 = vmul.f32 %v712, 1.442695
        %v717 = vpow.pop %v716
        %v718 = vmul.f32 %v713, 1.442695
        %v719 = vpow.pop %v718
        %v720 = vmul.f32 %v714, 1.442695
        %v721 = vpow.pop %v720
        %v722 = vmul.f32 %v715, 1.442695
        %v723 = vpow.pop %v722
        %v724 = vadd.f32 %v717, 1.0
        %v725 = vadd.f32 %v719, 1.0
        %v726 = vadd.f32 %v721, 1.0
        %v727 = vadd.f32 %v723, 1.0
        %v728 = vlog2.pop %v724
        %v729 = vmul.f32 %v728, 0.6931472
        %v730 = vlog2.pop %v725
        %v731 = vmul.f32 %v730, 0.6931472
        %v732 = vlog2.pop %v726
        %v733 = vmul.f32 %v732, 0.6931472
        %v734 = vlog2.pop %v727
        %v735 = vmul.f32 %v734, 0.6931472
        %v736 = vsub.f32 0.0, %v704
        %v737 = vsub.f32 0.0, %v705
        %v738 = vsub.f32 0.0, %v706
        %v739 = vsub.f32 0.0, %v707
        %v740 = vmax.f32 %v736, 0.0
        %v741 = vmax.f32 %v737, 0.0
        %v742 = vmax.f32 %v738, 0.0
        %v743 = vmax.f32 %v739, 0.0
        %v744 = vadd.f32 %v740, %v729
        %v745 = vadd.f32 %v741, %v731
        %v746 = vadd.f32 %v742, %v733
        %v747 = vadd.f32 %v743, %v735
        %v748 = vmax.f32 %v704, 0.0
        %v749 = vmax.f32 %v705, 0.0
        %v750 = vmax.f32 %v706, 0.0
        %v751 = vmax.f32 %v707, 0.0
        %v752 = vadd.f32 %v748, %v729
        %v753 = vadd.f32 %v749, %v731
        %v754 = vadd.f32 %v750, %v733
        %v755 = vadd.f32 %v751, %v735
        %v756 = vsub.f32 0.0, %v744
        %v757 = vsub.f32 0.0, %v745
        %v758 = vsub.f32 0.0, %v746
        %v759 = vsub.f32 0.0, %v747
        %v760 = vmul.f32 %v756, 1.442695
        %v761 = vpow.pop %v760
        %v762 = vmul.f32 %v757, 1.442695
        %v763 = vpow.pop %v762
        %v764 = vmul.f32 %v758, 1.442695
        %v765 = vpow.pop %v764
        %v766 = vmul.f32 %v759, 1.442695
        %v767 = vpow.pop %v766
        %v768 = vsub.f32 0.0, %v752
        %v769 = vsub.f32 0.0, %v753
        %v770 = vsub.f32 0.0, %v754
        %v771 = vsub.f32 0.0, %v755
        %v772 = vmul.f32 %v768, 1.442695
        %v773 = vpow.pop %v772
        %v774 = vmul.f32 %v769, 1.442695
        %v775 = vpow.pop %v774
        %v776 = vmul.f32 %v770, 1.442695
        %v777 = vpow.pop %v776
        %v778 = vmul.f32 %v771, 1.442695
        %v779 = vpow.pop %v778
        %780 = vst [vmem:[%s679] sm:$0xff] %v761
        %781 = vst [vmem:[%s679 + $0x8] sm:$0xff] %v763
        %782 = vst [vmem:[%s679 + $0x10] sm:$0xff] %v765
        %783 = vst [vmem:[%s679 + $0x18] sm:$0xff] %v767
        %v784 = vld [vmem:[%s674] sm:$0xff]
        %v785 = vld [vmem:[%s674 + $0x8] sm:$0xff]
        %v786 = vld [vmem:[%s674 + $0x10] sm:$0xff]
        %v787 = vld [vmem:[%s674 + $0x18] sm:$0xff]
        %vm788 = vcmp.eq.s32.totalorder %v784, 1
        %vm789 = vcmp.eq.s32.totalorder %v785, 1
        %vm790 = vcmp.eq.s32.totalorder %v786, 1
        %vm791 = vcmp.eq.s32.totalorder %v787, 1
        %v792 = vsel %vm788, %v744, %v752
        %v793 = vsel %vm789, %v745, %v753
        %v794 = vsel %vm790, %v746, %v754
        %v795 = vsel %vm791, %v747, %v755
        %v796 = vsel %vm788, %v773, %v761
        %v797 = vsel %vm789, %v775, %v763
        %v798 = vsel %vm790, %v777, %v765
        %v799 = vsel %vm791, %v779, %v767
        %vm800 = vcmp.eq.s32.totalorder %v784, 0
        %vm801 = vcmp.eq.s32.totalorder %v785, 0
        %vm802 = vcmp.eq.s32.totalorder %v786, 0
        %vm803 = vcmp.eq.s32.totalorder %v787, 0
        %v804 = vsel %vm800, 0.75, 0.25
        %v805 = vsel %vm801, 0.75, 0.25
        %v806 = vsel %vm802, 0.75, 0.25
        %v807 = vsel %vm803, 0.75, 0.25
        %v808 = vmul.f32 %v804, %v792
        %v809 = vmul.f32 %v805, %v793
        %v810 = vmul.f32 %v806, %v794
        %v811 = vmul.f32 %v807, %v795
        %v812 = vmul.f32 %v808, %v796
        %v813 = vmul.f32 %v809, %v797
        %v814 = vmul.f32 %v810, %v798
        %v815 = vmul.f32 %v811, %v799
        %v816 = vmul.f32 %v812, %v796
        %v817 = vmul.f32 %v813, %v797
        %v818 = vmul.f32 %v814, %v798
        %v819 = vmul.f32 %v815, %v799
        %vm820 = vcmp.gt.s32.totalorder %v784, 4294967295
        %vm821 = vcmp.gt.s32.totalorder %v785, 4294967295
        %vm822 = vcmp.gt.s32.totalorder %v786, 4294967295
        %vm823 = vcmp.gt.s32.totalorder %v787, 4294967295
        %v824 = vsel %vm820, %v816, 0.0
        %v825 = vsel %vm821, %v817, 0.0
        %v826 = vsel %vm822, %v818, 0.0
        %v827 = vsel %vm823, %v819, 0.0
        %v832 = vperm.slane %v824, 0
        %v833 = vperm.slane %v824, 1
        %v834 = vperm.slane %v824, 2
        %v835 = vperm.slane %v824, 3
        %v836 = vperm.slane %v824, 4
        %v837 = vperm.slane %v824, 5
        %v838 = vperm.slane %v824, 6
        %v839 = vperm.slane %v824, 7
        %v840 = vperm.slane %v825, 0
        %v841 = vperm.slane %v825, 1
        %v842 = vperm.slane %v825, 2
        %v843 = vperm.slane %v825, 3
        %v844 = vperm.slane %v825, 4
        %v845 = vperm.slane %v825, 5
        %v846 = vperm.slane %v825, 6
        %v847 = vperm.slane %v825, 7
        %v848 = vperm.slane %v826, 0
        %v849 = vperm.slane %v826, 1
        %v850 = vperm.slane %v826, 2
        %v851 = vperm.slane %v826, 3
        %v852 = vperm.slane %v826, 4
        %v853 = vperm.slane %v826, 5
        %v854 = vperm.slane %v826, 6
        %v855 = vperm.slane %v826, 7
        %v856 = vperm.slane %v827, 0
        %v857 = vperm.slane %v827, 1
        %v858 = vperm.slane %v827, 2
        %v859 = vperm.slane %v827, 3
        %v860 = vperm.slane %v827, 4
        %v861 = vperm.slane %v827, 5
        %v862 = vperm.slane %v827, 6
        %v863 = vperm.slane %v827, 7
        %vm896 = vcmask 1040384
        %v897 = vsel %vm896, %v832, 0.0
        %v898 = vsel %vm896, %v833, 0.0
        %v899 = vadd.f32 %v897, %v898
        %v900 = vsel %vm896, %v834, 0.0
        %v901 = vadd.f32 %v899, %v900
        %v902 = vsel %vm896, %v835, 0.0
        %v903 = vadd.f32 %v901, %v902
        %v904 = vsel %vm896, %v836, 0.0
        %v905 = vadd.f32 %v903, %v904
        %v906 = vsel %vm896, %v837, 0.0
        %v907 = vadd.f32 %v905, %v906
        %v908 = vsel %vm896, %v838, 0.0
        %v909 = vadd.f32 %v907, %v908
        %v910 = vsel %vm896, %v839, 0.0
        %v911 = vadd.f32 %v909, %v910
        %v912 = vsel %vm896, %v840, 0.0
        %v913 = vadd.f32 %v911, %v912
        %v914 = vsel %vm896, %v841, 0.0
        %v915 = vadd.f32 %v913, %v914
        %v916 = vsel %vm896, %v842, 0.0
        %v917 = vadd.f32 %v915, %v916
        %v918 = vsel %vm896, %v843, 0.0
        %v919 = vadd.f32 %v917, %v918
        %v920 = vsel %vm896, %v844, 0.0
        %v921 = vadd.f32 %v919, %v920
        %v922 = vsel %vm896, %v845, 0.0
        %v923 = vadd.f32 %v921, %v922
        %v924 = vsel %vm896, %v846, 0.0
        %v925 = vadd.f32 %v923, %v924
        %v926 = vsel %vm896, %v847, 0.0
        %v927 = vadd.f32 %v925, %v926
        %v928 = vsel %vm896, %v848, 0.0
        %v929 = vadd.f32 %v927, %v928
        %v930 = vsel %vm896, %v849, 0.0
        %v931 = vadd.f32 %v929, %v930
        %v932 = vsel %vm896, %v850, 0.0
        %v933 = vadd.f32 %v931, %v932
        %v934 = vsel %vm896, %v851, 0.0
        %v935 = vadd.f32 %v933, %v934
        %v936 = vsel %vm896, %v852, 0.0
        %v937 = vadd.f32 %v935, %v936
        %v938 = vsel %vm896, %v853, 0.0
        %v939 = vadd.f32 %v937, %v938
        %v940 = vsel %vm896, %v854, 0.0
        %v941 = vadd.f32 %v939, %v940
        %v942 = vsel %vm896, %v855, 0.0
        %v943 = vadd.f32 %v941, %v942
        %v944 = vsel %vm896, %v856, 0.0
        %v945 = vadd.f32 %v943, %v944
        %v946 = vsel %vm896, %v857, 0.0
        %v947 = vadd.f32 %v945, %v946
        %v948 = vsel %vm896, %v858, 0.0
        %v949 = vadd.f32 %v947, %v948
        %v950 = vsel %vm896, %v859, 0.0
        %v951 = vadd.f32 %v949, %v950
        %v952 = vsel %vm896, %v860, 0.0
        %v953 = vadd.f32 %v951, %v952
        %v954 = vsel %vm896, %v861, 0.0
        %v955 = vadd.f32 %v953, %v954
        %v956 = vsel %vm896, %v862, 0.0
        %v957 = vadd.f32 %v955, %v956
        %v958 = vsel %vm896, %v863, 0.0
        %v959 = vadd.f32 %v957, %v958
        %960 = vadd.xlane.f32.xlu0 %v959
        %v961 = vpop.xlane.xlu0 %960
        %v962 = vrot.slane %v961, 4
        %v963 = vadd.f32 %v961, %v962
        %v964 = vrot.slane %v963, 2
        %v965 = vadd.f32 %v963, %v964
        %v966 = vrot.slane %v965, 1
        %v967 = vadd.f32 %v965, %v966
        %s968 = vtos %v967
        %v969 = vld [vmem:[%s663] sm:$0xff]
        %v970 = vld [vmem:[%s663 + $0x8] sm:$0xff]
        %v971 = vld [vmem:[%s663 + $0x10] sm:$0xff]
        %v972 = vld [vmem:[%s663 + $0x18] sm:$0xff]
        %vm973 = vcmp.gt.s32.totalorder %v969, 0
        %vm974 = vcmp.gt.s32.totalorder %v970, 0
        %vm975 = vcmp.gt.s32.totalorder %v971, 0
        %vm976 = vcmp.gt.s32.totalorder %v972, 0
        %v977 = vld [vmem:[%s657] sm:$0xff]
        %v978 = vld [vmem:[%s657 + $0x8] sm:$0xff]
        %v979 = vld [vmem:[%s657 + $0x10] sm:$0xff]
        %v980 = vld [vmem:[%s657 + $0x18] sm:$0xff]
        %v981 = vld [vmem:[%s657 + $0x20] sm:$0xff]
        %v982 = vld [vmem:[%s657 + $0x28] sm:$0xff]
        %v983 = vld [vmem:[%s657 + $0x30] sm:$0xff]
        %v984 = vld [vmem:[%s657 + $0x38] sm:$0xff]
        %v985 = vld [vmem:[%s657 + $0x40] sm:$0xff]
        %v986 = vld [vmem:[%s657 + $0x48] sm:$0xff]
        %v987 = vld [vmem:[%s657 + $0x50] sm:$0xff]
        %v988 = vld [vmem:[%s657 + $0x58] sm:$0xff]
        %v989 = vld [vmem:[%s657 + $0x60] sm:$0xff]
        %v990 = vld [vmem:[%s657 + $0x68] sm:$0xff]
        %v991 = vld [vmem:[%s657 + $0x70] sm:$0xff]
        %v992 = vld [vmem:[%s657 + $0x78] sm:$0xff]
        %v993 = vld [vmem:[%s645] sm:$0xff]
        %v994 = vld [vmem:[%s645 + $0x8] sm:$0xff]
        %v995 = vld [vmem:[%s645 + $0x10] sm:$0xff]
        %v996 = vld [vmem:[%s645 + $0x18] sm:$0xff]
        %v997 = vld [vmem:[%s645 + $0x20] sm:$0xff]
        %v998 = vld [vmem:[%s645 + $0x28] sm:$0xff]
        %v999 = vld [vmem:[%s645 + $0x30] sm:$0xff]
        %v1000 = vld [vmem:[%s645 + $0x38] sm:$0xff]
        %v1001 = vld [vmem:[%s645 + $0x40] sm:$0xff]
        %v1002 = vld [vmem:[%s645 + $0x48] sm:$0xff]
        %v1003 = vld [vmem:[%s645 + $0x50] sm:$0xff]
        %v1004 = vld [vmem:[%s645 + $0x58] sm:$0xff]
        %v1005 = vld [vmem:[%s645 + $0x60] sm:$0xff]
        %v1006 = vld [vmem:[%s645 + $0x68] sm:$0xff]
        %v1007 = vld [vmem:[%s645 + $0x70] sm:$0xff]
        %v1008 = vld [vmem:[%s645 + $0x78] sm:$0xff]
        %v1009 = vsub.f32 %v993, %v977
        %v1010 = vsub.f32 %v994, %v978
        %v1011 = vsub.f32 %v995, %v979
        %v1012 = vsub.f32 %v996, %v980
        %v1013 = vsub.f32 %v997, %v981
        %v1014 = vsub.f32 %v998, %v982
        %v1015 = vsub.f32 %v999, %v983
        %v1016 = vsub.f32 %v1000, %v984
        %v1017 = vsub.f32 %v1001, %v985
        %v1018 = vsub.f32 %v1002, %v986
        %v1019 = vsub.f32 %v1003, %v987
        %v1020 = vsub.f32 %v1004, %v988
        %v1021 = vsub.f32 %v1005, %v989
        %v1022 = vsub.f32 %v1006, %v990
        %v1023 = vsub.f32 %v1007, %v991
        %v1024 = vsub.f32 %v1008, %v992
        %v1025 = vand.u32 2147483647, %v1009
        %v1026 = vand.u32 2147483647, %v1010
        %v1027 = vand.u32 2147483647, %v1011
        %v1028 = vand.u32 2147483647, %v1012
        %v1029 = vand.u32 2147483647, %v1013
        %v1030 = vand.u32 2147483647, %v1014
        %v1031 = vand.u32 2147483647, %v1015
        %v1032 = vand.u32 2147483647, %v1016
        %v1033 = vand.u32 2147483647, %v1017
        %v1034 = vand.u32 2147483647, %v1018
        %v1035 = vand.u32 2147483647, %v1019
        %v1036 = vand.u32 2147483647, %v1020
        %v1037 = vand.u32 2147483647, %v1021
        %v1038 = vand.u32 2147483647, %v1022
        %v1039 = vand.u32 2147483647, %v1023
        %v1040 = vand.u32 2147483647, %v1024
        %vm1041 = vcmp.lt.f32.partialorder %v1025, 1.0
        %vm1042 = vcmp.lt.f32.partialorder %v1026, 1.0
        %vm1043 = vcmp.lt.f32.partialorder %v1027, 1.0
        %vm1044 = vcmp.lt.f32.partialorder %v1028, 1.0
        %vm1045 = vcmp.lt.f32.partialorder %v1029, 1.0
        %vm1046 = vcmp.lt.f32.partialorder %v1030, 1.0
        %vm1047 = vcmp.lt.f32.partialorder %v1031, 1.0
        %vm1048 = vcmp.lt.f32.partialorder %v1032, 1.0
        %vm1049 = vcmp.lt.f32.partialorder %v1033, 1.0
        %vm1050 = vcmp.lt.f32.partialorder %v1034, 1.0
        %vm1051 = vcmp.lt.f32.partialorder %v1035, 1.0
        %vm1052 = vcmp.lt.f32.partialorder %v1036, 1.0
        %vm1053 = vcmp.lt.f32.partialorder %v1037, 1.0
        %vm1054 = vcmp.lt.f32.partialorder %v1038, 1.0
        %vm1055 = vcmp.lt.f32.partialorder %v1039, 1.0
        %vm1056 = vcmp.lt.f32.partialorder %v1040, 1.0
        %v1057 = vmul.f32 %v1009, 0.5
        %v1058 = vmul.f32 %v1010, 0.5
        %v1059 = vmul.f32 %v1011, 0.5
        %v1060 = vmul.f32 %v1012, 0.5
        %v1061 = vmul.f32 %v1013, 0.5
        %v1062 = vmul.f32 %v1014, 0.5
        %v1063 = vmul.f32 %v1015, 0.5
        %v1064 = vmul.f32 %v1016, 0.5
        %v1065 = vmul.f32 %v1017, 0.5
        %v1066 = vmul.f32 %v1018, 0.5
        %v1067 = vmul.f32 %v1019, 0.5
        %v1068 = vmul.f32 %v1020, 0.5
        %v1069 = vmul.f32 %v1021, 0.5
        %v1070 = vmul.f32 %v1022, 0.5
        %v1071 = vmul.f32 %v1023, 0.5
        %v1072 = vmul.f32 %v1024, 0.5
        %v1073 = vmul.f32 %v1057, %v1009
        %v1074 = vmul.f32 %v1058, %v1010
        %v1075 = vmul.f32 %v1059, %v1011
        %v1076 = vmul.f32 %v1060, %v1012
        %v1077 = vmul.f32 %v1061, %v1013
        %v1078 = vmul.f32 %v1062, %v1014
        %v1079 = vmul.f32 %v1063, %v1015
        %v1080 = vmul.f32 %v1064, %v1016
        %v1081 = vmul.f32 %v1065, %v1017
        %v1082 = vmul.f32 %v1066, %v1018
        %v1083 = vmul.f32 %v1067, %v1019
        %v1084 = vmul.f32 %v1068, %v1020
        %v1085 = vmul.f32 %v1069, %v1021
        %v1086 = vmul.f32 %v1070, %v1022
        %v1087 = vmul.f32 %v1071, %v1023
        %v1088 = vmul.f32 %v1072, %v1024
        %v1089 = vsub.f32 %v1025, 0.5
        %v1090 = vsub.f32 %v1026, 0.5
        %v1091 = vsub.f32 %v1027, 0.5
        %v1092 = vsub.f32 %v1028, 0.5
        %v1093 = vsub.f32 %v1029, 0.5
        %v1094 = vsub.f32 %v1030, 0.5
        %v1095 = vsub.f32 %v1031, 0.5
        %v1096 = vsub.f32 %v1032, 0.5
        %v1097 = vsub.f32 %v1033, 0.5
        %v1098 = vsub.f32 %v1034, 0.5
        %v1099 = vsub.f32 %v1035, 0.5
        %v1100 = vsub.f32 %v1036, 0.5
        %v1101 = vsub.f32 %v1037, 0.5
        %v1102 = vsub.f32 %v1038, 0.5
        %v1103 = vsub.f32 %v1039, 0.5
        %v1104 = vsub.f32 %v1040, 0.5
        %v1105 = vsel %vm1041, %v1073, %v1089
        %v1106 = vsel %vm1042, %v1074, %v1090
        %v1107 = vsel %vm1043, %v1075, %v1091
        %v1108 = vsel %vm1044, %v1076, %v1092
        %v1109 = vsel %vm1045, %v1077, %v1093
        %v1110 = vsel %vm1046, %v1078, %v1094
        %v1111 = vsel %vm1047, %v1079, %v1095
        %v1112 = vsel %vm1048, %v1080, %v1096
        %v1113 = vsel %vm1049, %v1081, %v1097
        %v1114 = vsel %vm1050, %v1082, %v1098
        %v1115 = vsel %vm1051, %v1083, %v1099
        %v1116 = vsel %vm1052, %v1084, %v1100
        %v1117 = vsel %vm1053, %v1085, %v1101
        %v1118 = vsel %vm1054, %v1086, %v1102
        %v1119 = vsel %vm1055, %v1087, %v1103
        %v1120 = vsel %vm1056, %v1088, %v1104
        %1137 = vst [vmem:[#allocation1] ss:$2 sm:$0xff] %v1105
        %s1138 = scalar_lea.vmem [#allocation1], 16
        %1139 = vst [vmem:[%s1138] ss:$2 sm:$0xff] %v1106
        %s1140 = scalar_lea.vmem [#allocation1], 32
        %1141 = vst [vmem:[%s1140] ss:$2 sm:$0xff] %v1107
        %s1142 = scalar_lea.vmem [#allocation1], 48
        %1143 = vst [vmem:[%s1142] ss:$2 sm:$0xff] %v1108
        %v1144 = vld.sshfl [vmem:[#allocation1] sm:$0xff pattern:$0x75316420]
        %v1145 = vld.sshfl [vmem:[#allocation1 + $0x8] sm:$0xff pattern:$0x75316420]
        %v1146 = vld.sshfl [vmem:[#allocation1 + $0x10] sm:$0xff pattern:$0x75316420]
        %v1147 = vld.sshfl [vmem:[#allocation1 + $0x18] sm:$0xff pattern:$0x75316420]
        %v1148 = vld.sshfl [vmem:[#allocation1 + $0x20] sm:$0xff pattern:$0x75316420]
        %v1149 = vld.sshfl [vmem:[#allocation1 + $0x28] sm:$0xff pattern:$0x75316420]
        %v1150 = vld.sshfl [vmem:[#allocation1 + $0x30] sm:$0xff pattern:$0x75316420]
        %v1151 = vld.sshfl [vmem:[#allocation1 + $0x38] sm:$0xff pattern:$0x75316420]
        %1152 = vst [vmem:[#allocation1] ss:$2 sm:$0xff] %v1109
        %1153 = vst [vmem:[%s1138] ss:$2 sm:$0xff] %v1110
        %1154 = vst [vmem:[%s1140] ss:$2 sm:$0xff] %v1111
        %1155 = vst [vmem:[%s1142] ss:$2 sm:$0xff] %v1112
        %v1156 = vld.sshfl [vmem:[#allocation1] sm:$0xff pattern:$0x75316420]
        %v1157 = vld.sshfl [vmem:[#allocation1 + $0x8] sm:$0xff pattern:$0x75316420]
        %v1158 = vld.sshfl [vmem:[#allocation1 + $0x10] sm:$0xff pattern:$0x75316420]
        %v1159 = vld.sshfl [vmem:[#allocation1 + $0x18] sm:$0xff pattern:$0x75316420]
        %v1160 = vld.sshfl [vmem:[#allocation1 + $0x20] sm:$0xff pattern:$0x75316420]
        %v1161 = vld.sshfl [vmem:[#allocation1 + $0x28] sm:$0xff pattern:$0x75316420]
        %v1162 = vld.sshfl [vmem:[#allocation1 + $0x30] sm:$0xff pattern:$0x75316420]
        %v1163 = vld.sshfl [vmem:[#allocation1 + $0x38] sm:$0xff pattern:$0x75316420]
        %1164 = vst [vmem:[#allocation1] ss:$2 sm:$0xff] %v1113
        %1165 = vst [vmem:[%s1138] ss:$2 sm:$0xff] %v1114
        %1166 = vst [vmem:[%s1140] ss:$2 sm:$0xff] %v1115
        %1167 = vst [vmem:[%s1142] ss:$2 sm:$0xff] %v1116
        %v1168 = vld.sshfl [vmem:[#allocation1] sm:$0xff pattern:$0x75316420]
        %v1169 = vld.sshfl [vmem:[#allocation1 + $0x8] sm:$0xff pattern:$0x75316420]
        %v1170 = vld.sshfl [vmem:[#allocation1 + $0x10] sm:$0xff pattern:$0x75316420]
        %v1171 = vld.sshfl [vmem:[#allocation1 + $0x18] sm:$0xff pattern:$0x75316420]
        %v1172 = vld.sshfl [vmem:[#allocation1 + $0x20] sm:$0xff pattern:$0x75316420]
        %v1173 = vld.sshfl [vmem:[#allocation1 + $0x28] sm:$0xff pattern:$0x75316420]
        %v1174 = vld.sshfl [vmem:[#allocation1 + $0x30] sm:$0xff pattern:$0x75316420]
        %v1175 = vld.sshfl [vmem:[#allocation1 + $0x38] sm:$0xff pattern:$0x75316420]
        %1176 = vst [vmem:[#allocation1] ss:$2 sm:$0xff] %v1117
        %1177 = vst [vmem:[%s1138] ss:$2 sm:$0xff] %v1118
        %1178 = vst [vmem:[%s1140] ss:$2 sm:$0xff] %v1119
        %1179 = vst [vmem:[%s1142] ss:$2 sm:$0xff] %v1120
        %v1180 = vld.sshfl [vmem:[#allocation1] sm:$0xff pattern:$0x75316420]
        %v1181 = vld.sshfl [vmem:[#allocation1 + $0x8] sm:$0xff pattern:$0x75316420]
        %v1182 = vld.sshfl [vmem:[#allocation1 + $0x10] sm:$0xff pattern:$0x75316420]
        %v1183 = vld.sshfl [vmem:[#allocation1 + $0x18] sm:$0xff pattern:$0x75316420]
        %v1184 = vld.sshfl [vmem:[#allocation1 + $0x20] sm:$0xff pattern:$0x75316420]
        %v1185 = vld.sshfl [vmem:[#allocation1 + $0x28] sm:$0xff pattern:$0x75316420]
        %v1186 = vld.sshfl [vmem:[#allocation1 + $0x30] sm:$0xff pattern:$0x75316420]
        %v1187 = vld.sshfl [vmem:[#allocation1 + $0x38] sm:$0xff pattern:$0x75316420]
        %vm1220 = vcmask 1043456
        %v1221 = vsel %vm1220, %v1144, 0.0
        %v1222 = vrot.slane %v1221, 4
        %v1223 = vadd.f32 %v1221, %v1222
        %v1224 = vrot.slane %v1223, 2
        %v1225 = vadd.f32 %v1223, %v1224
        %v1226 = vrot.slane %v1225, 1
        %v1227 = vadd.f32 %v1225, %v1226
        %v1228 = vsel %vm1220, %v1145, 0.0
        %v1229 = vrot.slane %v1228, 4
        %v1230 = vadd.f32 %v1228, %v1229
        %v1231 = vrot.slane %v1230, 2
        %v1232 = vadd.f32 %v1230, %v1231
        %v1233 = vrot.slane %v1232, 1
        %v1234 = vadd.f32 %v1232, %v1233
        %v1235 = vsel %vm1220, %v1146, 0.0
        %v1236 = vrot.slane %v1235, 4
        %v1237 = vadd.f32 %v1235, %v1236
        %v1238 = vrot.slane %v1237, 2
        %v1239 = vadd.f32 %v1237, %v1238
        %v1240 = vrot.slane %v1239, 1
        %v1241 = vadd.f32 %v1239, %v1240
        %v1242 = vsel %vm1220, %v1147, 0.0
        %v1243 = vrot.slane %v1242, 4
        %v1244 = vadd.f32 %v1242, %v1243
        %v1245 = vrot.slane %v1244, 2
        %v1246 = vadd.f32 %v1244, %v1245
        %v1247 = vrot.slane %v1246, 1
        %v1248 = vadd.f32 %v1246, %v1247
        %v1249 = vsel %vm1220, %v1148, 0.0
        %v1250 = vrot.slane %v1249, 4
        %v1251 = vadd.f32 %v1249, %v1250
        %v1252 = vrot.slane %v1251, 2
        %v1253 = vadd.f32 %v1251, %v1252
        %v1254 = vrot.slane %v1253, 1
        %v1255 = vadd.f32 %v1253, %v1254
        %v1256 = vsel %vm1220, %v1149, 0.0
        %v1257 = vrot.slane %v1256, 4
        %v1258 = vadd.f32 %v1256, %v1257
        %v1259 = vrot.slane %v1258, 2
        %v1260 = vadd.f32 %v1258, %v1259
        %v1261 = vrot.slane %v1260, 1
        %v1262 = vadd.f32 %v1260, %v1261
        %v1263 = vsel %vm1220, %v1150, 0.0
        %v1264 = vrot.slane %v1263, 4
        %v1265 = vadd.f32 %v1263, %v1264
        %v1266 = vrot.slane %v1265, 2
        %v1267 = vadd.f32 %v1265, %v1266
        %v1268 = vrot.slane %v1267, 1
        %v1269 = vadd.f32 %v1267, %v1268
        %v1270 = vsel %vm1220, %v1151, 0.0
        %v1271 = vrot.slane %v1270, 4
        %v1272 = vadd.f32 %v1270, %v1271
        %v1273 = vrot.slane %v1272, 2
        %v1274 = vadd.f32 %v1272, %v1273
        %v1275 = vrot.slane %v1274, 1
        %v1276 = vadd.f32 %v1274, %v1275
        %v1277 = vsel %vm1220, %v1156, 0.0
        %v1278 = vrot.slane %v1277, 4
        %v1279 = vadd.f32 %v1277, %v1278
        %v1280 = vrot.slane %v1279, 2
        %v1281 = vadd.f32 %v1279, %v1280
        %v1282 = vrot.slane %v1281, 1
        %v1283 = vadd.f32 %v1281, %v1282
        %v1284 = vsel %vm1220, %v1157, 0.0
        %v1285 = vrot.slane %v1284, 4
        %v1286 = vadd.f32 %v1284, %v1285
        %v1287 = vrot.slane %v1286, 2
        %v1288 = vadd.f32 %v1286, %v1287
        %v1289 = vrot.slane %v1288, 1
        %v1290 = vadd.f32 %v1288, %v1289
        %v1291 = vsel %vm1220, %v1158, 0.0
        %v1292 = vrot.slane %v1291, 4
        %v1293 = vadd.f32 %v1291, %v1292
        %v1294 = vrot.slane %v1293, 2
        %v1295 = vadd.f32 %v1293, %v1294
        %v1296 = vrot.slane %v1295, 1
        %v1297 = vadd.f32 %v1295, %v1296
        %v1298 = vsel %vm1220, %v1159, 0.0
        %v1299 = vrot.slane %v1298, 4
        %v1300 = vadd.f32 %v1298, %v1299
        %v1301 = vrot.slane %v1300, 2
        %v1302 = vadd.f32 %v1300, %v1301
        %v1303 = vrot.slane %v1302, 1
        %v1304 = vadd.f32 %v1302, %v1303
        %v1305 = vsel %vm1220, %v1160, 0.0
        %v1306 = vrot.slane %v1305, 4
        %v1307 = vadd.f32 %v1305, %v1306
        %v1308 = vrot.slane %v1307, 2
        %v1309 = vadd.f32 %v1307, %v1308
        %v1310 = vrot.slane %v1309, 1
        %v1311 = vadd.f32 %v1309, %v1310
        %v1312 = vsel %vm1220, %v1161, 0.0
        %v1313 = vrot.slane %v1312, 4
        %v1314 = vadd.f32 %v1312, %v1313
        %v1315 = vrot.slane %v1314, 2
        %v1316 = vadd.f32 %v1314, %v1315
        %v1317 = vrot.slane %v1316, 1
        %v1318 = vadd.f32 %v1316, %v1317
        %v1319 = vsel %vm1220, %v1162, 0.0
        %v1320 = vrot.slane %v1319, 4
        %v1321 = vadd.f32 %v1319, %v1320
        %v1322 = vrot.slane %v1321, 2
        %v1323 = vadd.f32 %v1321, %v1322
        %v1324 = vrot.slane %v1323, 1
        %v1325 = vadd.f32 %v1323, %v1324
        %v1326 = vsel %vm1220, %v1163, 0.0
        %v1327 = vrot.slane %v1326, 4
        %v1328 = vadd.f32 %v1326, %v1327
        %v1329 = vrot.slane %v1328, 2
        %v1330 = vadd.f32 %v1328, %v1329
        %v1331 = vrot.slane %v1330, 1
        %v1332 = vadd.f32 %v1330, %v1331
        %v1333 = vsel %vm1220, %v1168, 0.0
        %v1334 = vrot.slane %v1333, 4
        %v1335 = vadd.f32 %v1333, %v1334
        %v1336 = vrot.slane %v1335, 2
        %v1337 = vadd.f32 %v1335, %v1336
        %v1338 = vrot.slane %v1337, 1
        %v1339 = vadd.f32 %v1337, %v1338
        %v1340 = vsel %vm1220, %v1169, 0.0
        %v1341 = vrot.slane %v1340, 4
        %v1342 = vadd.f32 %v1340, %v1341
        %v1343 = vrot.slane %v1342, 2
        %v1344 = vadd.f32 %v1342, %v1343
        %v1345 = vrot.slane %v1344, 1
        %v1346 = vadd.f32 %v1344, %v1345
        %v1347 = vsel %vm1220, %v1170, 0.0
        %v1348 = vrot.slane %v1347, 4
        %v1349 = vadd.f32 %v1347, %v1348
        %v1350 = vrot.slane %v1349, 2
        %v1351 = vadd.f32 %v1349, %v1350
        %v1352 = vrot.slane %v1351, 1
        %v1353 = vadd.f32 %v1351, %v1352
        %v1354 = vsel %vm1220, %v1171, 0.0
        %v1355 = vrot.slane %v1354, 4
        %v1356 = vadd.f32 %v1354, %v1355
        %v1357 = vrot.slane %v1356, 2
        %v1358 = vadd.f32 %v1356, %v1357
        %v1359 = vrot.slane %v1358, 1
        %v1360 = vadd.f32 %v1358, %v1359
        %v1361 = vsel %vm1220, %v1172, 0.0
        %v1362 = vrot.slane %v1361, 4
        %v1363 = vadd.f32 %v1361, %v1362
        %v1364 = vrot.slane %v1363, 2
        %v1365 = vadd.f32 %v1363, %v1364
        %v1366 = vrot.slane %v1365, 1
        %v1367 = vadd.f32 %v1365, %v1366
        %v1368 = vsel %vm1220, %v1173, 0.0
        %v1369 = vrot.slane %v1368, 4
        %v1370 = vadd.f32 %v1368, %v1369
        %v1371 = vrot.slane %v1370, 2
        %v1372 = vadd.f32 %v1370, %v1371
        %v1373 = vrot.slane %v1372, 1
        %v1374 = vadd.f32 %v1372, %v1373
        %v1375 = vsel %vm1220, %v1174, 0.0
        %v1376 = vrot.slane %v1375, 4
        %v1377 = vadd.f32 %v1375, %v1376
        %v1378 = vrot.slane %v1377, 2
        %v1379 = vadd.f32 %v1377, %v1378
        %v1380 = vrot.slane %v1379, 1
        %v1381 = vadd.f32 %v1379, %v1380
        %v1382 = vsel %vm1220, %v1175, 0.0
        %v1383 = vrot.slane %v1382, 4
        %v1384 = vadd.f32 %v1382, %v1383
        %v1385 = vrot.slane %v1384, 2
        %v1386 = vadd.f32 %v1384, %v1385
        %v1387 = vrot.slane %v1386, 1
        %v1388 = vadd.f32 %v1386, %v1387
        %v1389 = vsel %vm1220, %v1180, 0.0
        %v1390 = vrot.slane %v1389, 4
        %v1391 = vadd.f32 %v1389, %v1390
        %v1392 = vrot.slane %v1391, 2
        %v1393 = vadd.f32 %v1391, %v1392
        %v1394 = vrot.slane %v1393, 1
        %v1395 = vadd.f32 %v1393, %v1394
        %v1396 = vsel %vm1220, %v1181, 0.0
        %v1397 = vrot.slane %v1396, 4
        %v1398 = vadd.f32 %v1396, %v1397
        %v1399 = vrot.slane %v1398, 2
        %v1400 = vadd.f32 %v1398, %v1399
        %v1401 = vrot.slane %v1400, 1
        %v1402 = vadd.f32 %v1400, %v1401
        %v1403 = vsel %vm1220, %v1182, 0.0
        %v1404 = vrot.slane %v1403, 4
        %v1405 = vadd.f32 %v1403, %v1404
        %v1406 = vrot.slane %v1405, 2
        %v1407 = vadd.f32 %v1405, %v1406
        %v1408 = vrot.slane %v1407, 1
        %v1409 = vadd.f32 %v1407, %v1408
        %v1410 = vsel %vm1220, %v1183, 0.0
        %v1411 = vrot.slane %v1410, 4
        %v1412 = vadd.f32 %v1410, %v1411
        %v1413 = vrot.slane %v1412, 2
        %v1414 = vadd.f32 %v1412, %v1413
        %v1415 = vrot.slane %v1414, 1
        %v1416 = vadd.f32 %v1414, %v1415
        %v1417 = vsel %vm1220, %v1184, 0.0
        %v1418 = vrot.slane %v1417, 4
        %v1419 = vadd.f32 %v1417, %v1418
        %v1420 = vrot.slane %v1419, 2
        %v1421 = vadd.f32 %v1419, %v1420
        %v1422 = vrot.slane %v1421, 1
        %v1423 = vadd.f32 %v1421, %v1422
        %v1424 = vsel %vm1220, %v1185, 0.0
        %v1425 = vrot.slane %v1424, 4
        %v1426 = vadd.f32 %v1424, %v1425
        %v1427 = vrot.slane %v1426, 2
        %v1428 = vadd.f32 %v1426, %v1427
        %v1429 = vrot.slane %v1428, 1
        %v1430 = vadd.f32 %v1428, %v1429
        %v1431 = vsel %vm1220, %v1186, 0.0
        %v1432 = vrot.slane %v1431, 4
        %v1433 = vadd.f32 %v1431, %v1432
        %v1434 = vrot.slane %v1433, 2
        %v1435 = vadd.f32 %v1433, %v1434
        %v1436 = vrot.slane %v1435, 1
        %v1437 = vadd.f32 %v1435, %v1436
        %v1438 = vsel %vm1220, %v1187, 0.0
        %v1439 = vrot.slane %v1438, 4
        %v1440 = vadd.f32 %v1438, %v1439
        %v1441 = vrot.slane %v1440, 2
        %v1442 = vadd.f32 %v1440, %v1441
        %v1443 = vrot.slane %v1442, 1
        %v1444 = vadd.f32 %v1442, %v1443
        %v1477 = vrot.slane %v1234, 7
        %v1478 = vrot.slane %v1241, 6
        %v1479 = vrot.slane %v1248, 5
        %v1480 = vrot.slane %v1255, 4
        %v1481 = vrot.slane %v1262, 3
        %v1482 = vrot.slane %v1269, 2
        %v1483 = vrot.slane %v1276, 1
        %v1484 = vrot.slane %v1290, 7
        %v1485 = vrot.slane %v1297, 6
        %v1486 = vrot.slane %v1304, 5
        %v1487 = vrot.slane %v1311, 4
        %v1488 = vrot.slane %v1318, 3
        %v1489 = vrot.slane %v1325, 2
        %v1490 = vrot.slane %v1332, 1
        %v1491 = vrot.slane %v1346, 7
        %v1492 = vrot.slane %v1353, 6
        %v1493 = vrot.slane %v1360, 5
        %v1494 = vrot.slane %v1367, 4
        %v1495 = vrot.slane %v1374, 3
        %v1496 = vrot.slane %v1381, 2
        %v1497 = vrot.slane %v1388, 1
        %v1498 = vrot.slane %v1402, 7
        %v1499 = vrot.slane %v1409, 6
        %v1500 = vrot.slane %v1416, 5
        %v1501 = vrot.slane %v1423, 4
        %v1502 = vrot.slane %v1430, 3
        %v1503 = vrot.slane %v1437, 2
        %v1504 = vrot.slane %v1444, 1
        %v1505 = vsel %vm896, %v1227, %v1477
        %vm1506 = vcmask 1042434
        %v1507 = vsel %vm1506, %v1478, %v1479
        %vm1508 = vcmask 1041408
        %v1509 = vsel %vm1508, %v1505, %v1507
        %vm1510 = vcmask 1044484
        %v1511 = vsel %vm1510, %v1480, %v1481
        %vm1512 = vcmask 1046534
        %v1513 = vsel %vm1512, %v1482, %v1483
        %vm1514 = vcmask 1045508
        %v1515 = vsel %vm1514, %v1511, %v1513
        %v1516 = vsel %vm1220, %v1509, %v1515
        %v1517 = vsel %vm896, %v1283, %v1484
        %v1518 = vsel %vm1506, %v1485, %v1486
        %v1519 = vsel %vm1508, %v1517, %v1518
        %v1520 = vsel %vm1510, %v1487, %v1488
        %v1521 = vsel %vm1512, %v1489, %v1490
        %v1522 = vsel %vm1514, %v1520, %v1521
        %v1523 = vsel %vm1220, %v1519, %v1522
        %v1524 = vsel %vm896, %v1339, %v1491
        %v1525 = vsel %vm1506, %v1492, %v1493
        %v1526 = vsel %vm1508, %v1524, %v1525
        %v1527 = vsel %vm1510, %v1494, %v1495
        %v1528 = vsel %vm1512, %v1496, %v1497
        %v1529 = vsel %vm1514, %v1527, %v1528
        %v1530 = vsel %vm1220, %v1526, %v1529
        %v1531 = vsel %vm896, %v1395, %v1498
        %v1532 = vsel %vm1506, %v1499, %v1500
        %v1533 = vsel %vm1508, %v1531, %v1532
        %v1534 = vsel %vm1510, %v1501, %v1502
        %v1535 = vsel %vm1512, %v1503, %v1504
        %v1536 = vsel %vm1514, %v1534, %v1535
        %v1537 = vsel %vm1220, %v1533, %v1536
        %v1542 = vsel %vm973, %v1516, 0.0
        %v1543 = vsel %vm974, %v1523, 0.0
        %v1544 = vsel %vm975, %v1530, 0.0
        %v1545 = vsel %vm976, %v1537, 0.0
        %v1550 = vperm.slane %v1542, 0
        %v1551 = vperm.slane %v1542, 1
        %v1552 = vperm.slane %v1542, 2
        %v1553 = vperm.slane %v1542, 3
        %v1554 = vperm.slane %v1542, 4
        %v1555 = vperm.slane %v1542, 5
        %v1556 = vperm.slane %v1542, 6
        %v1557 = vperm.slane %v1542, 7
        %v1558 = vperm.slane %v1543, 0
        %v1559 = vperm.slane %v1543, 1
        %v1560 = vperm.slane %v1543, 2
        %v1561 = vperm.slane %v1543, 3
        %v1562 = vperm.slane %v1543, 4
        %v1563 = vperm.slane %v1543, 5
        %v1564 = vperm.slane %v1543, 6
        %v1565 = vperm.slane %v1543, 7
        %v1566 = vperm.slane %v1544, 0
        %v1567 = vperm.slane %v1544, 1
        %v1568 = vperm.slane %v1544, 2
        %v1569 = vperm.slane %v1544, 3
        %v1570 = vperm.slane %v1544, 4
        %v1571 = vperm.slane %v1544, 5
        %v1572 = vperm.slane %v1544, 6
        %v1573 = vperm.slane %v1544, 7
        %v1574 = vperm.slane %v1545, 0
        %v1575 = vperm.slane %v1545, 1
        %v1576 = vperm.slane %v1545, 2
        %v1577 = vperm.slane %v1545, 3
        %v1578 = vperm.slane %v1545, 4
        %v1579 = vperm.slane %v1545, 5
        %v1580 = vperm.slane %v1545, 6
        %v1581 = vperm.slane %v1545, 7
        %v1614 = vsel %vm896, %v1550, 0.0
        %v1615 = vsel %vm896, %v1551, 0.0
        %v1616 = vadd.f32 %v1614, %v1615
        %v1617 = vsel %vm896, %v1552, 0.0
        %v1618 = vadd.f32 %v1616, %v1617
        %v1619 = vsel %vm896, %v1553, 0.0
        %v1620 = vadd.f32 %v1618, %v1619
        %v1621 = vsel %vm896, %v1554, 0.0
        %v1622 = vadd.f32 %v1620, %v1621
        %v1623 = vsel %vm896, %v1555, 0.0
        %v1624 = vadd.f32 %v1622, %v1623
        %v1625 = vsel %vm896, %v1556, 0.0
        %v1626 = vadd.f32 %v1624, %v1625
        %v1627 = vsel %vm896, %v1557, 0.0
        %v1628 = vadd.f32 %v1626, %v1627
        %v1629 = vsel %vm896, %v1558, 0.0
        %v1630 = vadd.f32 %v1628, %v1629
        %v1631 = vsel %vm896, %v1559, 0.0
        %v1632 = vadd.f32 %v1630, %v1631
        %v1633 = vsel %vm896, %v1560, 0.0
        %v1634 = vadd.f32 %v1632, %v1633
        %v1635 = vsel %vm896, %v1561, 0.0
        %v1636 = vadd.f32 %v1634, %v1635
        %v1637 = vsel %vm896, %v1562, 0.0
        %v1638 = vadd.f32 %v1636, %v1637
        %v1639 = vsel %vm896, %v1563, 0.0
        %v1640 = vadd.f32 %v1638, %v1639
        %v1641 = vsel %vm896, %v1564, 0.0
        %v1642 = vadd.f32 %v1640, %v1641
        %v1643 = vsel %vm896, %v1565, 0.0
        %v1644 = vadd.f32 %v1642, %v1643
        %v1645 = vsel %vm896, %v1566, 0.0
        %v1646 = vadd.f32 %v1644, %v1645
        %v1647 = vsel %vm896, %v1567, 0.0
        %v1648 = vadd.f32 %v1646, %v1647
        %v1649 = vsel %vm896, %v1568, 0.0
        %v1650 = vadd.f32 %v1648, %v1649
        %v1651 = vsel %vm896, %v1569, 0.0
        %v1652 = vadd.f32 %v1650, %v1651
        %v1653 = vsel %vm896, %v1570, 0.0
        %v1654 = vadd.f32 %v1652, %v1653
        %v1655 = vsel %vm896, %v1571, 0.0
        %v1656 = vadd.f32 %v1654, %v1655
        %v1657 = vsel %vm896, %v1572, 0.0
        %v1658 = vadd.f32 %v1656, %v1657
        %v1659 = vsel %vm896, %v1573, 0.0
        %v1660 = vadd.f32 %v1658, %v1659
        %v1661 = vsel %vm896, %v1574, 0.0
        %v1662 = vadd.f32 %v1660, %v1661
        %v1663 = vsel %vm896, %v1575, 0.0
        %v1664 = vadd.f32 %v1662, %v1663
        %v1665 = vsel %vm896, %v1576, 0.0
        %v1666 = vadd.f32 %v1664, %v1665
        %v1667 = vsel %vm896, %v1577, 0.0
        %v1668 = vadd.f32 %v1666, %v1667
        %v1669 = vsel %vm896, %v1578, 0.0
        %v1670 = vadd.f32 %v1668, %v1669
        %v1671 = vsel %vm896, %v1579, 0.0
        %v1672 = vadd.f32 %v1670, %v1671
        %v1673 = vsel %vm896, %v1580, 0.0
        %v1674 = vadd.f32 %v1672, %v1673
        %v1675 = vsel %vm896, %v1581, 0.0
        %v1676 = vadd.f32 %v1674, %v1675
        %1677 = vadd.xlane.f32.xlu0 %v1676
        %v1678 = vpop.xlane.xlu0 %1677
        %v1679 = vrot.slane %v1678, 4
        %v1680 = vadd.f32 %v1678, %v1679
        %v1681 = vrot.slane %v1680, 2
        %v1682 = vadd.f32 %v1680, %v1681
        %v1683 = vrot.slane %v1682, 1
        %v1684 = vadd.f32 %v1682, %v1683
        %s1685 = vtos %v1684
        %v1686 = vld [vmem:[%s651] sm:$0xff]
        %v1687 = vld [vmem:[%s651 + $0x8] sm:$0xff]
        %v1688 = vld [vmem:[%s651 + $0x10] sm:$0xff]
        %v1689 = vld [vmem:[%s651 + $0x18] sm:$0xff]
        %v1690 = vld [vmem:[%s651 + $0x20] sm:$0xff]
        %v1691 = vld [vmem:[%s651 + $0x28] sm:$0xff]
        %v1692 = vld [vmem:[%s651 + $0x30] sm:$0xff]
        %v1693 = vld [vmem:[%s651 + $0x38] sm:$0xff]
        %v1694 = vld [vmem:[%s651 + $0x40] sm:$0xff]
        %v1695 = vld [vmem:[%s651 + $0x48] sm:$0xff]
        %v1696 = vld [vmem:[%s651 + $0x50] sm:$0xff]
        %v1697 = vld [vmem:[%s651 + $0x58] sm:$0xff]
        %v1698 = vld [vmem:[%s651 + $0x60] sm:$0xff]
        %v1699 = vld [vmem:[%s651 + $0x68] sm:$0xff]
        %v1700 = vld [vmem:[%s651 + $0x70] sm:$0xff]
        %v1701 = vld [vmem:[%s651 + $0x78] sm:$0xff]
        %v1702 = vsub.f32 %v1686, %v977
        %v1703 = vsub.f32 %v1687, %v978
        %v1704 = vsub.f32 %v1688, %v979
        %v1705 = vsub.f32 %v1689, %v980
        %v1706 = vsub.f32 %v1690, %v981
        %v1707 = vsub.f32 %v1691, %v982
        %v1708 = vsub.f32 %v1692, %v983
        %v1709 = vsub.f32 %v1693, %v984
        %v1710 = vsub.f32 %v1694, %v985
        %v1711 = vsub.f32 %v1695, %v986
        %v1712 = vsub.f32 %v1696, %v987
        %v1713 = vsub.f32 %v1697, %v988
        %v1714 = vsub.f32 %v1698, %v989
        %v1715 = vsub.f32 %v1699, %v990
        %v1716 = vsub.f32 %v1700, %v991
        %v1717 = vsub.f32 %v1701, %v992
        %v1718 = vand.u32 2147483647, %v1702
        %v1719 = vand.u32 2147483647, %v1703
        %v1720 = vand.u32 2147483647, %v1704
        %v1721 = vand.u32 2147483647, %v1705
        %v1722 = vand.u32 2147483647, %v1706
        %v1723 = vand.u32 2147483647, %v1707
        %v1724 = vand.u32 2147483647, %v1708
        %v1725 = vand.u32 2147483647, %v1709
        %v1726 = vand.u32 2147483647, %v1710
        %v1727 = vand.u32 2147483647, %v1711
        %v1728 = vand.u32 2147483647, %v1712
        %v1729 = vand.u32 2147483647, %v1713
        %v1730 = vand.u32 2147483647, %v1714
        %v1731 = vand.u32 2147483647, %v1715
        %v1732 = vand.u32 2147483647, %v1716
        %v1733 = vand.u32 2147483647, %v1717
        %vm1734 = vcmp.lt.f32.partialorder %v1718, 1.0
        %vm1735 = vcmp.lt.f32.partialorder %v1719, 1.0
        %vm1736 = vcmp.lt.f32.partialorder %v1720, 1.0
        %vm1737 = vcmp.lt.f32.partialorder %v1721, 1.0
        %vm1738 = vcmp.lt.f32.partialorder %v1722, 1.0
        %vm1739 = vcmp.lt.f32.partialorder %v1723, 1.0
        %vm1740 = vcmp.lt.f32.partialorder %v1724, 1.0
        %vm1741 = vcmp.lt.f32.partialorder %v1725, 1.0
        %vm1742 = vcmp.lt.f32.partialorder %v1726, 1.0
        %vm1743 = vcmp.lt.f32.partialorder %v1727, 1.0
        %vm1744 = vcmp.lt.f32.partialorder %v1728, 1.0
        %vm1745 = vcmp.lt.f32.partialorder %v1729, 1.0
        %vm1746 = vcmp.lt.f32.partialorder %v1730, 1.0
        %vm1747 = vcmp.lt.f32.partialorder %v1731, 1.0
        %vm1748 = vcmp.lt.f32.partialorder %v1732, 1.0
        %vm1749 = vcmp.lt.f32.partialorder %v1733, 1.0
        %v1750 = vmul.f32 %v1702, 0.5
        %v1751 = vmul.f32 %v1703, 0.5
        %v1752 = vmul.f32 %v1704, 0.5
        %v1753 = vmul.f32 %v1705, 0.5
        %v1754 = vmul.f32 %v1706, 0.5
        %v1755 = vmul.f32 %v1707, 0.5
        %v1756 = vmul.f32 %v1708, 0.5
        %v1757 = vmul.f32 %v1709, 0.5
        %v1758 = vmul.f32 %v1710, 0.5
        %v1759 = vmul.f32 %v1711, 0.5
        %v1760 = vmul.f32 %v1712, 0.5
        %v1761 = vmul.f32 %v1713, 0.5
        %v1762 = vmul.f32 %v1714, 0.5
        %v1763 = vmul.f32 %v1715, 0.5
        %v1764 = vmul.f32 %v1716, 0.5
        %v1765 = vmul.f32 %v1717, 0.5
        %v1766 = vmul.f32 %v1750, %v1702
        %v1767 = vmul.f32 %v1751, %v1703
        %v1768 = vmul.f32 %v1752, %v1704
        %v1769 = vmul.f32 %v1753, %v1705
        %v1770 = vmul.f32 %v1754, %v1706
        %v1771 = vmul.f32 %v1755, %v1707
        %v1772 = vmul.f32 %v1756, %v1708
        %v1773 = vmul.f32 %v1757, %v1709
        %v1774 = vmul.f32 %v1758, %v1710
        %v1775 = vmul.f32 %v1759, %v1711
        %v1776 = vmul.f32 %v1760, %v1712
        %v1777 = vmul.f32 %v1761, %v1713
        %v1778 = vmul.f32 %v1762, %v1714
        %v1779 = vmul.f32 %v1763, %v1715
        %v1780 = vmul.f32 %v1764, %v1716
        %v1781 = vmul.f32 %v1765, %v1717
        %v1782 = vsub.f32 %v1718, 0.5
        %v1783 = vsub.f32 %v1719, 0.5
        %v1784 = vsub.f32 %v1720, 0.5
        %v1785 = vsub.f32 %v1721, 0.5
        %v1786 = vsub.f32 %v1722, 0.5
        %v1787 = vsub.f32 %v1723, 0.5
        %v1788 = vsub.f32 %v1724, 0.5
        %v1789 = vsub.f32 %v1725, 0.5
        %v1790 = vsub.f32 %v1726, 0.5
        %v1791 = vsub.f32 %v1727, 0.5
        %v1792 = vsub.f32 %v1728, 0.5
        %v1793 = vsub.f32 %v1729, 0.5
        %v1794 = vsub.f32 %v1730, 0.5
        %v1795 = vsub.f32 %v1731, 0.5
        %v1796 = vsub.f32 %v1732, 0.5
        %v1797 = vsub.f32 %v1733, 0.5
        %v1798 = vsel %vm1734, %v1766, %v1782
        %v1799 = vsel %vm1735, %v1767, %v1783
        %v1800 = vsel %vm1736, %v1768, %v1784
        %v1801 = vsel %vm1737, %v1769, %v1785
        %v1802 = vsel %vm1738, %v1770, %v1786
        %v1803 = vsel %vm1739, %v1771, %v1787
        %v1804 = vsel %vm1740, %v1772, %v1788
        %v1805 = vsel %vm1741, %v1773, %v1789
        %v1806 = vsel %vm1742, %v1774, %v1790
        %v1807 = vsel %vm1743, %v1775, %v1791
        %v1808 = vsel %vm1744, %v1776, %v1792
        %v1809 = vsel %vm1745, %v1777, %v1793
        %v1810 = vsel %vm1746, %v1778, %v1794
        %v1811 = vsel %vm1747, %v1779, %v1795
        %v1812 = vsel %vm1748, %v1780, %v1796
        %v1813 = vsel %vm1749, %v1781, %v1797
        %1830 = vst [vmem:[#allocation1] ss:$2 sm:$0xff] %v1798
        %s1831 = scalar_lea.vmem [#allocation1], 16
        %1832 = vst [vmem:[%s1831] ss:$2 sm:$0xff] %v1799
        %s1833 = scalar_lea.vmem [#allocation1], 32
        %1834 = vst [vmem:[%s1833] ss:$2 sm:$0xff] %v1800
        %s1835 = scalar_lea.vmem [#allocation1], 48
        %1836 = vst [vmem:[%s1835] ss:$2 sm:$0xff] %v1801
        %v1837 = vld.sshfl [vmem:[#allocation1] sm:$0xff pattern:$0x75316420]
        %v1838 = vld.sshfl [vmem:[#allocation1 + $0x8] sm:$0xff pattern:$0x75316420]
        %v1839 = vld.sshfl [vmem:[#allocation1 + $0x10] sm:$0xff pattern:$0x75316420]
        %v1840 = vld.sshfl [vmem:[#allocation1 + $0x18] sm:$0xff pattern:$0x75316420]
        %v1841 = vld.sshfl [vmem:[#allocation1 + $0x20] sm:$0xff pattern:$0x75316420]
        %v1842 = vld.sshfl [vmem:[#allocation1 + $0x28] sm:$0xff pattern:$0x75316420]
        %v1843 = vld.sshfl [vmem:[#allocation1 + $0x30] sm:$0xff pattern:$0x75316420]
        %v1844 = vld.sshfl [vmem:[#allocation1 + $0x38] sm:$0xff pattern:$0x75316420]
        %1845 = vst [vmem:[#allocation1] ss:$2 sm:$0xff] %v1802
        %1846 = vst [vmem:[%s1831] ss:$2 sm:$0xff] %v1803
        %1847 = vst [vmem:[%s1833] ss:$2 sm:$0xff] %v1804
        %1848 = vst [vmem:[%s1835] ss:$2 sm:$0xff] %v1805
        %v1849 = vld.sshfl [vmem:[#allocation1] sm:$0xff pattern:$0x75316420]
        %v1850 = vld.sshfl [vmem:[#allocation1 + $0x8] sm:$0xff pattern:$0x75316420]
        %v1851 = vld.sshfl [vmem:[#allocation1 + $0x10] sm:$0xff pattern:$0x75316420]
        %v1852 = vld.sshfl [vmem:[#allocation1 + $0x18] sm:$0xff pattern:$0x75316420]
        %v1853 = vld.sshfl [vmem:[#allocation1 + $0x20] sm:$0xff pattern:$0x75316420]
        %v1854 = vld.sshfl [vmem:[#allocation1 + $0x28] sm:$0xff pattern:$0x75316420]
        %v1855 = vld.sshfl [vmem:[#allocation1 + $0x30] sm:$0xff pattern:$0x75316420]
        %v1856 = vld.sshfl [vmem:[#allocation1 + $0x38] sm:$0xff pattern:$0x75316420]
        %1857 = vst [vmem:[#allocation1] ss:$2 sm:$0xff] %v1806
        %1858 = vst [vmem:[%s1831] ss:$2 sm:$0xff] %v1807
        %1859 = vst [vmem:[%s1833] ss:$2 sm:$0xff] %v1808
        %1860 = vst [vmem:[%s1835] ss:$2 sm:$0xff] %v1809
        %v1861 = vld.sshfl [vmem:[#allocation1] sm:$0xff pattern:$0x75316420]
        %v1862 = vld.sshfl [vmem:[#allocation1 + $0x8] sm:$0xff pattern:$0x75316420]
        %v1863 = vld.sshfl [vmem:[#allocation1 + $0x10] sm:$0xff pattern:$0x75316420]
        %v1864 = vld.sshfl [vmem:[#allocation1 + $0x18] sm:$0xff pattern:$0x75316420]
        %v1865 = vld.sshfl [vmem:[#allocation1 + $0x20] sm:$0xff pattern:$0x75316420]
        %v1866 = vld.sshfl [vmem:[#allocation1 + $0x28] sm:$0xff pattern:$0x75316420]
        %v1867 = vld.sshfl [vmem:[#allocation1 + $0x30] sm:$0xff pattern:$0x75316420]
        %v1868 = vld.sshfl [vmem:[#allocation1 + $0x38] sm:$0xff pattern:$0x75316420]
        %1869 = vst [vmem:[#allocation1] ss:$2 sm:$0xff] %v1810
        %1870 = vst [vmem:[%s1831] ss:$2 sm:$0xff] %v1811
        %1871 = vst [vmem:[%s1833] ss:$2 sm:$0xff] %v1812
        %1872 = vst [vmem:[%s1835] ss:$2 sm:$0xff] %v1813
        %v1873 = vld.sshfl [vmem:[#allocation1] sm:$0xff pattern:$0x75316420]
        %v1874 = vld.sshfl [vmem:[#allocation1 + $0x8] sm:$0xff pattern:$0x75316420]
        %v1875 = vld.sshfl [vmem:[#allocation1 + $0x10] sm:$0xff pattern:$0x75316420]
        %v1876 = vld.sshfl [vmem:[#allocation1 + $0x18] sm:$0xff pattern:$0x75316420]
        %v1877 = vld.sshfl [vmem:[#allocation1 + $0x20] sm:$0xff pattern:$0x75316420]
        %v1878 = vld.sshfl [vmem:[#allocation1 + $0x28] sm:$0xff pattern:$0x75316420]
        %v1879 = vld.sshfl [vmem:[#allocation1 + $0x30] sm:$0xff pattern:$0x75316420]
        %v1880 = vld.sshfl [vmem:[#allocation1 + $0x38] sm:$0xff pattern:$0x75316420]
        %v1913 = vsel %vm1220, %v1837, 0.0
        %v1914 = vrot.slane %v1913, 4
        %v1915 = vadd.f32 %v1913, %v1914
        %v1916 = vrot.slane %v1915, 2
        %v1917 = vadd.f32 %v1915, %v1916
        %v1918 = vrot.slane %v1917, 1
        %v1919 = vadd.f32 %v1917, %v1918
        %v1920 = vsel %vm1220, %v1838, 0.0
        %v1921 = vrot.slane %v1920, 4
        %v1922 = vadd.f32 %v1920, %v1921
        %v1923 = vrot.slane %v1922, 2
        %v1924 = vadd.f32 %v1922, %v1923
        %v1925 = vrot.slane %v1924, 1
        %v1926 = vadd.f32 %v1924, %v1925
        %v1927 = vsel %vm1220, %v1839, 0.0
        %v1928 = vrot.slane %v1927, 4
        %v1929 = vadd.f32 %v1927, %v1928
        %v1930 = vrot.slane %v1929, 2
        %v1931 = vadd.f32 %v1929, %v1930
        %v1932 = vrot.slane %v1931, 1
        %v1933 = vadd.f32 %v1931, %v1932
        %v1934 = vsel %vm1220, %v1840, 0.0
        %v1935 = vrot.slane %v1934, 4
        %v1936 = vadd.f32 %v1934, %v1935
        %v1937 = vrot.slane %v1936, 2
        %v1938 = vadd.f32 %v1936, %v1937
        %v1939 = vrot.slane %v1938, 1
        %v1940 = vadd.f32 %v1938, %v1939
        %v1941 = vsel %vm1220, %v1841, 0.0
        %v1942 = vrot.slane %v1941, 4
        %v1943 = vadd.f32 %v1941, %v1942
        %v1944 = vrot.slane %v1943, 2
        %v1945 = vadd.f32 %v1943, %v1944
        %v1946 = vrot.slane %v1945, 1
        %v1947 = vadd.f32 %v1945, %v1946
        %v1948 = vsel %vm1220, %v1842, 0.0
        %v1949 = vrot.slane %v1948, 4
        %v1950 = vadd.f32 %v1948, %v1949
        %v1951 = vrot.slane %v1950, 2
        %v1952 = vadd.f32 %v1950, %v1951
        %v1953 = vrot.slane %v1952, 1
        %v1954 = vadd.f32 %v1952, %v1953
        %v1955 = vsel %vm1220, %v1843, 0.0
        %v1956 = vrot.slane %v1955, 4
        %v1957 = vadd.f32 %v1955, %v1956
        %v1958 = vrot.slane %v1957, 2
        %v1959 = vadd.f32 %v1957, %v1958
        %v1960 = vrot.slane %v1959, 1
        %v1961 = vadd.f32 %v1959, %v1960
        %v1962 = vsel %vm1220, %v1844, 0.0
        %v1963 = vrot.slane %v1962, 4
        %v1964 = vadd.f32 %v1962, %v1963
        %v1965 = vrot.slane %v1964, 2
        %v1966 = vadd.f32 %v1964, %v1965
        %v1967 = vrot.slane %v1966, 1
        %v1968 = vadd.f32 %v1966, %v1967
        %v1969 = vsel %vm1220, %v1849, 0.0
        %v1970 = vrot.slane %v1969, 4
        %v1971 = vadd.f32 %v1969, %v1970
        %v1972 = vrot.slane %v1971, 2
        %v1973 = vadd.f32 %v1971, %v1972
        %v1974 = vrot.slane %v1973, 1
        %v1975 = vadd.f32 %v1973, %v1974
        %v1976 = vsel %vm1220, %v1850, 0.0
        %v1977 = vrot.slane %v1976, 4
        %v1978 = vadd.f32 %v1976, %v1977
        %v1979 = vrot.slane %v1978, 2
        %v1980 = vadd.f32 %v1978, %v1979
        %v1981 = vrot.slane %v1980, 1
        %v1982 = vadd.f32 %v1980, %v1981
        %v1983 = vsel %vm1220, %v1851, 0.0
        %v1984 = vrot.slane %v1983, 4
        %v1985 = vadd.f32 %v1983, %v1984
        %v1986 = vrot.slane %v1985, 2
        %v1987 = vadd.f32 %v1985, %v1986
        %v1988 = vrot.slane %v1987, 1
        %v1989 = vadd.f32 %v1987, %v1988
        %v1990 = vsel %vm1220, %v1852, 0.0
        %v1991 = vrot.slane %v1990, 4
        %v1992 = vadd.f32 %v1990, %v1991
        %v1993 = vrot.slane %v1992, 2
        %v1994 = vadd.f32 %v1992, %v1993
        %v1995 = vrot.slane %v1994, 1
        %v1996 = vadd.f32 %v1994, %v1995
        %v1997 = vsel %vm1220, %v1853, 0.0
        %v1998 = vrot.slane %v1997, 4
        %v1999 = vadd.f32 %v1997, %v1998
        %v2000 = vrot.slane %v1999, 2
        %v2001 = vadd.f32 %v1999, %v2000
        %v2002 = vrot.slane %v2001, 1
        %v2003 = vadd.f32 %v2001, %v2002
        %v2004 = vsel %vm1220, %v1854, 0.0
        %v2005 = vrot.slane %v2004, 4
        %v2006 = vadd.f32 %v2004, %v2005
        %v2007 = vrot.slane %v2006, 2
        %v2008 = vadd.f32 %v2006, %v2007
        %v2009 = vrot.slane %v2008, 1
        %v2010 = vadd.f32 %v2008, %v2009
        %v2011 = vsel %vm1220, %v1855, 0.0
        %v2012 = vrot.slane %v2011, 4
        %v2013 = vadd.f32 %v2011, %v2012
        %v2014 = vrot.slane %v2013, 2
        %v2015 = vadd.f32 %v2013, %v2014
        %v2016 = vrot.slane %v2015, 1
        %v2017 = vadd.f32 %v2015, %v2016
        %v2018 = vsel %vm1220, %v1856, 0.0
        %v2019 = vrot.slane %v2018, 4
        %v2020 = vadd.f32 %v2018, %v2019
        %v2021 = vrot.slane %v2020, 2
        %v2022 = vadd.f32 %v2020, %v2021
        %v2023 = vrot.slane %v2022, 1
        %v2024 = vadd.f32 %v2022, %v2023
        %v2025 = vsel %vm1220, %v1861, 0.0
        %v2026 = vrot.slane %v2025, 4
        %v2027 = vadd.f32 %v2025, %v2026
        %v2028 = vrot.slane %v2027, 2
        %v2029 = vadd.f32 %v2027, %v2028
        %v2030 = vrot.slane %v2029, 1
        %v2031 = vadd.f32 %v2029, %v2030
        %v2032 = vsel %vm1220, %v1862, 0.0
        %v2033 = vrot.slane %v2032, 4
        %v2034 = vadd.f32 %v2032, %v2033
        %v2035 = vrot.slane %v2034, 2
        %v2036 = vadd.f32 %v2034, %v2035
        %v2037 = vrot.slane %v2036, 1
        %v2038 = vadd.f32 %v2036, %v2037
        %v2039 = vsel %vm1220, %v1863, 0.0
        %v2040 = vrot.slane %v2039, 4
        %v2041 = vadd.f32 %v2039, %v2040
        %v2042 = vrot.slane %v2041, 2
        %v2043 = vadd.f32 %v2041, %v2042
        %v2044 = vrot.slane %v2043, 1
        %v2045 = vadd.f32 %v2043, %v2044
        %v2046 = vsel %vm1220, %v1864, 0.0
        %v2047 = vrot.slane %v2046, 4
        %v2048 = vadd.f32 %v2046, %v2047
        %v2049 = vrot.slane %v2048, 2
        %v2050 = vadd.f32 %v2048, %v2049
        %v2051 = vrot.slane %v2050, 1
        %v2052 = vadd.f32 %v2050, %v2051
        %v2053 = vsel %vm1220, %v1865, 0.0
        %v2054 = vrot.slane %v2053, 4
        %v2055 = vadd.f32 %v2053, %v2054
        %v2056 = vrot.slane %v2055, 2
        %v2057 = vadd.f32 %v2055, %v2056
        %v2058 = vrot.slane %v2057, 1
        %v2059 = vadd.f32 %v2057, %v2058
        %v2060 = vsel %vm1220, %v1866, 0.0
        %v2061 = vrot.slane %v2060, 4
        %v2062 = vadd.f32 %v2060, %v2061
        %v2063 = vrot.slane %v2062, 2
        %v2064 = vadd.f32 %v2062, %v2063
        %v2065 = vrot.slane %v2064, 1
        %v2066 = vadd.f32 %v2064, %v2065
        %v2067 = vsel %vm1220, %v1867, 0.0
        %v2068 = vrot.slane %v2067, 4
        %v2069 = vadd.f32 %v2067, %v2068
        %v2070 = vrot.slane %v2069, 2
        %v2071 = vadd.f32 %v2069, %v2070
        %v2072 = vrot.slane %v2071, 1
        %v2073 = vadd.f32 %v2071, %v2072
        %v2074 = vsel %vm1220, %v1868, 0.0
        %v2075 = vrot.slane %v2074, 4
        %v2076 = vadd.f32 %v2074, %v2075
        %v2077 = vrot.slane %v2076, 2
        %v2078 = vadd.f32 %v2076, %v2077
        %v2079 = vrot.slane %v2078, 1
        %v2080 = vadd.f32 %v2078, %v2079
        %v2081 = vsel %vm1220, %v1873, 0.0
        %v2082 = vrot.slane %v2081, 4
        %v2083 = vadd.f32 %v2081, %v2082
        %v2084 = vrot.slane %v2083, 2
        %v2085 = vadd.f32 %v2083, %v2084
        %v2086 = vrot.slane %v2085, 1
        %v2087 = vadd.f32 %v2085, %v2086
        %v2088 = vsel %vm1220, %v1874, 0.0
        %v2089 = vrot.slane %v2088, 4
        %v2090 = vadd.f32 %v2088, %v2089
        %v2091 = vrot.slane %v2090, 2
        %v2092 = vadd.f32 %v2090, %v2091
        %v2093 = vrot.slane %v2092, 1
        %v2094 = vadd.f32 %v2092, %v2093
        %v2095 = vsel %vm1220, %v1875, 0.0
        %v2096 = vrot.slane %v2095, 4
        %v2097 = vadd.f32 %v2095, %v2096
        %v2098 = vrot.slane %v2097, 2
        %v2099 = vadd.f32 %v2097, %v2098
        %v2100 = vrot.slane %v2099, 1
        %v2101 = vadd.f32 %v2099, %v2100
        %v2102 = vsel %vm1220, %v1876, 0.0
        %v2103 = vrot.slane %v2102, 4
        %v2104 = vadd.f32 %v2102, %v2103
        %v2105 = vrot.slane %v2104, 2
        %v2106 = vadd.f32 %v2104, %v2105
        %v2107 = vrot.slane %v2106, 1
        %v2108 = vadd.f32 %v2106, %v2107
        %v2109 = vsel %vm1220, %v1877, 0.0
        %v2110 = vrot.slane %v2109, 4
        %v2111 = vadd.f32 %v2109, %v2110
        %v2112 = vrot.slane %v2111, 2
        %v2113 = vadd.f32 %v2111, %v2112
        %v2114 = vrot.slane %v2113, 1
        %v2115 = vadd.f32 %v2113, %v2114
        %v2116 = vsel %vm1220, %v1878, 0.0
        %v2117 = vrot.slane %v2116, 4
        %v2118 = vadd.f32 %v2116, %v2117
        %v2119 = vrot.slane %v2118, 2
        %v2120 = vadd.f32 %v2118, %v2119
        %v2121 = vrot.slane %v2120, 1
        %v2122 = vadd.f32 %v2120, %v2121
        %v2123 = vsel %vm1220, %v1879, 0.0
        %v2124 = vrot.slane %v2123, 4
        %v2125 = vadd.f32 %v2123, %v2124
        %v2126 = vrot.slane %v2125, 2
        %v2127 = vadd.f32 %v2125, %v2126
        %v2128 = vrot.slane %v2127, 1
        %v2129 = vadd.f32 %v2127, %v2128
        %v2130 = vsel %vm1220, %v1880, 0.0
        %v2131 = vrot.slane %v2130, 4
        %v2132 = vadd.f32 %v2130, %v2131
        %v2133 = vrot.slane %v2132, 2
        %v2134 = vadd.f32 %v2132, %v2133
        %v2135 = vrot.slane %v2134, 1
        %v2136 = vadd.f32 %v2134, %v2135
        %v2169 = vrot.slane %v1926, 7
        %v2170 = vrot.slane %v1933, 6
        %v2171 = vrot.slane %v1940, 5
        %v2172 = vrot.slane %v1947, 4
        %v2173 = vrot.slane %v1954, 3
        %v2174 = vrot.slane %v1961, 2
        %v2175 = vrot.slane %v1968, 1
        %v2176 = vrot.slane %v1982, 7
        %v2177 = vrot.slane %v1989, 6
        %v2178 = vrot.slane %v1996, 5
        %v2179 = vrot.slane %v2003, 4
        %v2180 = vrot.slane %v2010, 3
        %v2181 = vrot.slane %v2017, 2
        %v2182 = vrot.slane %v2024, 1
        %v2183 = vrot.slane %v2038, 7
        %v2184 = vrot.slane %v2045, 6
        %v2185 = vrot.slane %v2052, 5
        %v2186 = vrot.slane %v2059, 4
        %v2187 = vrot.slane %v2066, 3
        %v2188 = vrot.slane %v2073, 2
        %v2189 = vrot.slane %v2080, 1
        %v2190 = vrot.slane %v2094, 7
        %v2191 = vrot.slane %v2101, 6
        %v2192 = vrot.slane %v2108, 5
        %v2193 = vrot.slane %v2115, 4
        %v2194 = vrot.slane %v2122, 3
        %v2195 = vrot.slane %v2129, 2
        %v2196 = vrot.slane %v2136, 1
        %v2197 = vsel %vm896, %v1919, %v2169
        %v2198 = vsel %vm1506, %v2170, %v2171
        %v2199 = vsel %vm1508, %v2197, %v2198
        %v2200 = vsel %vm1510, %v2172, %v2173
        %v2201 = vsel %vm1512, %v2174, %v2175
        %v2202 = vsel %vm1514, %v2200, %v2201
        %v2203 = vsel %vm1220, %v2199, %v2202
        %v2204 = vsel %vm896, %v1975, %v2176
        %v2205 = vsel %vm1506, %v2177, %v2178
        %v2206 = vsel %vm1508, %v2204, %v2205
        %v2207 = vsel %vm1510, %v2179, %v2180
        %v2208 = vsel %vm1512, %v2181, %v2182
        %v2209 = vsel %vm1514, %v2207, %v2208
        %v2210 = vsel %vm1220, %v2206, %v2209
        %v2211 = vsel %vm896, %v2031, %v2183
        %v2212 = vsel %vm1506, %v2184, %v2185
        %v2213 = vsel %vm1508, %v2211, %v2212
        %v2214 = vsel %vm1510, %v2186, %v2187
        %v2215 = vsel %vm1512, %v2188, %v2189
        %v2216 = vsel %vm1514, %v2214, %v2215
        %v2217 = vsel %vm1220, %v2213, %v2216
        %v2218 = vsel %vm896, %v2087, %v2190
        %v2219 = vsel %vm1506, %v2191, %v2192
        %v2220 = vsel %vm1508, %v2218, %v2219
        %v2221 = vsel %vm1510, %v2193, %v2194
        %v2222 = vsel %vm1512, %v2195, %v2196
        %v2223 = vsel %vm1514, %v2221, %v2222
        %v2224 = vsel %vm1220, %v2220, %v2223
        %v2229 = vsel %vm973, %v2203, 0.0
        %v2230 = vsel %vm974, %v2210, 0.0
        %v2231 = vsel %vm975, %v2217, 0.0
        %v2232 = vsel %vm976, %v2224, 0.0
        %v2237 = vperm.slane %v2229, 0
        %v2238 = vperm.slane %v2229, 1
        %v2239 = vperm.slane %v2229, 2
        %v2240 = vperm.slane %v2229, 3
        %v2241 = vperm.slane %v2229, 4
        %v2242 = vperm.slane %v2229, 5
        %v2243 = vperm.slane %v2229, 6
        %v2244 = vperm.slane %v2229, 7
        %v2245 = vperm.slane %v2230, 0
        %v2246 = vperm.slane %v2230, 1
        %v2247 = vperm.slane %v2230, 2
        %v2248 = vperm.slane %v2230, 3
        %v2249 = vperm.slane %v2230, 4
        %v2250 = vperm.slane %v2230, 5
        %v2251 = vperm.slane %v2230, 6
        %v2252 = vperm.slane %v2230, 7
        %v2253 = vperm.slane %v2231, 0
        %v2254 = vperm.slane %v2231, 1
        %v2255 = vperm.slane %v2231, 2
        %v2256 = vperm.slane %v2231, 3
        %v2257 = vperm.slane %v2231, 4
        %v2258 = vperm.slane %v2231, 5
        %v2259 = vperm.slane %v2231, 6
        %v2260 = vperm.slane %v2231, 7
        %v2261 = vperm.slane %v2232, 0
        %v2262 = vperm.slane %v2232, 1
        %v2263 = vperm.slane %v2232, 2
        %v2264 = vperm.slane %v2232, 3
        %v2265 = vperm.slane %v2232, 4
        %v2266 = vperm.slane %v2232, 5
        %v2267 = vperm.slane %v2232, 6
        %v2268 = vperm.slane %v2232, 7
        %v2301 = vsel %vm896, %v2237, 0.0
        %v2302 = vsel %vm896, %v2238, 0.0
        %v2303 = vadd.f32 %v2301, %v2302
        %v2304 = vsel %vm896, %v2239, 0.0
        %v2305 = vadd.f32 %v2303, %v2304
        %v2306 = vsel %vm896, %v2240, 0.0
        %v2307 = vadd.f32 %v2305, %v2306
        %v2308 = vsel %vm896, %v2241, 0.0
        %v2309 = vadd.f32 %v2307, %v2308
        %v2310 = vsel %vm896, %v2242, 0.0
        %v2311 = vadd.f32 %v2309, %v2310
        %v2312 = vsel %vm896, %v2243, 0.0
        %v2313 = vadd.f32 %v2311, %v2312
        %v2314 = vsel %vm896, %v2244, 0.0
        %v2315 = vadd.f32 %v2313, %v2314
        %v2316 = vsel %vm896, %v2245, 0.0
        %v2317 = vadd.f32 %v2315, %v2316
        %v2318 = vsel %vm896, %v2246, 0.0
        %v2319 = vadd.f32 %v2317, %v2318
        %v2320 = vsel %vm896, %v2247, 0.0
        %v2321 = vadd.f32 %v2319, %v2320
        %v2322 = vsel %vm896, %v2248, 0.0
        %v2323 = vadd.f32 %v2321, %v2322
        %v2324 = vsel %vm896, %v2249, 0.0
        %v2325 = vadd.f32 %v2323, %v2324
        %v2326 = vsel %vm896, %v2250, 0.0
        %v2327 = vadd.f32 %v2325, %v2326
        %v2328 = vsel %vm896, %v2251, 0.0
        %v2329 = vadd.f32 %v2327, %v2328
        %v2330 = vsel %vm896, %v2252, 0.0
        %v2331 = vadd.f32 %v2329, %v2330
        %v2332 = vsel %vm896, %v2253, 0.0
        %v2333 = vadd.f32 %v2331, %v2332
        %v2334 = vsel %vm896, %v2254, 0.0
        %v2335 = vadd.f32 %v2333, %v2334
        %v2336 = vsel %vm896, %v2255, 0.0
        %v2337 = vadd.f32 %v2335, %v2336
        %v2338 = vsel %vm896, %v2256, 0.0
        %v2339 = vadd.f32 %v2337, %v2338
        %v2340 = vsel %vm896, %v2257, 0.0
        %v2341 = vadd.f32 %v2339, %v2340
        %v2342 = vsel %vm896, %v2258, 0.0
        %v2343 = vadd.f32 %v2341, %v2342
        %v2344 = vsel %vm896, %v2259, 0.0
        %v2345 = vadd.f32 %v2343, %v2344
        %v2346 = vsel %vm896, %v2260, 0.0
        %v2347 = vadd.f32 %v2345, %v2346
        %v2348 = vsel %vm896, %v2261, 0.0
        %v2349 = vadd.f32 %v2347, %v2348
        %v2350 = vsel %vm896, %v2262, 0.0
        %v2351 = vadd.f32 %v2349, %v2350
        %v2352 = vsel %vm896, %v2263, 0.0
        %v2353 = vadd.f32 %v2351, %v2352
        %v2354 = vsel %vm896, %v2264, 0.0
        %v2355 = vadd.f32 %v2353, %v2354
        %v2356 = vsel %vm896, %v2265, 0.0
        %v2357 = vadd.f32 %v2355, %v2356
        %v2358 = vsel %vm896, %v2266, 0.0
        %v2359 = vadd.f32 %v2357, %v2358
        %v2360 = vsel %vm896, %v2267, 0.0
        %v2361 = vadd.f32 %v2359, %v2360
        %v2362 = vsel %vm896, %v2268, 0.0
        %v2363 = vadd.f32 %v2361, %v2362
        %2364 = vadd.xlane.f32.xlu0 %v2363
        %v2365 = vpop.xlane.xlu0 %2364
        %v2366 = vrot.slane %v2365, 4
        %v2367 = vadd.f32 %v2365, %v2366
        %v2368 = vrot.slane %v2367, 2
        %v2369 = vadd.f32 %v2367, %v2368
        %v2370 = vrot.slane %v2369, 1
        %v2371 = vadd.f32 %v2369, %v2370
        %s2372 = vtos %v2371
        %v2373 = vld [vmem:[%s574] sm:$0xff]
        %v2374 = vld [vmem:[%s574 + $0x8] sm:$0xff]
        %v2375 = vld [vmem:[%s574 + $0x10] sm:$0xff]
        %v2376 = vld [vmem:[%s574 + $0x18] sm:$0xff]
        %v2377 = vld [vmem:[%s574 + $0x20] sm:$0xff]
        %v2378 = vld [vmem:[%s574 + $0x28] sm:$0xff]
        %v2379 = vld [vmem:[%s574 + $0x30] sm:$0xff]
        %v2380 = vld [vmem:[%s574 + $0x38] sm:$0xff]
        %v2381 = vld [vmem:[%s574 + $0x40] sm:$0xff]
        %v2382 = vld [vmem:[%s574 + $0x48] sm:$0xff]
        %v2383 = vld [vmem:[%s574 + $0x50] sm:$0xff]
        %v2384 = vld [vmem:[%s574 + $0x58] sm:$0xff]
        %v2385 = vld [vmem:[%s574 + $0x60] sm:$0xff]
        %v2386 = vld [vmem:[%s574 + $0x68] sm:$0xff]
        %v2387 = vld [vmem:[%s574 + $0x70] sm:$0xff]
        %v2388 = vld [vmem:[%s574 + $0x78] sm:$0xff]
        %v2389 = vld [vmem:[%s574 + $0x80] sm:$0xff]
        %v2390 = vld [vmem:[%s574 + $0x88] sm:$0xff]
        %v2391 = vld [vmem:[%s574 + $0x90] sm:$0xff]
        %v2392 = vld [vmem:[%s574 + $0x98] sm:$0xff]
        %v2393 = vld [vmem:[%s574 + $0xa0] sm:$0xff]
        %v2394 = vld [vmem:[%s574 + $0xa8] sm:$0xff]
        %v2395 = vld [vmem:[%s574 + $0xb0] sm:$0xff]
        %v2396 = vld [vmem:[%s574 + $0xb8] sm:$0xff]
        %v2397 = vld [vmem:[%s574 + $0xc0] sm:$0xff]
        %v2398 = vld [vmem:[%s574 + $0xc8] sm:$0xff]
        %v2399 = vld [vmem:[%s574 + $0xd0] sm:$0xff]
        %v2400 = vld [vmem:[%s574 + $0xd8] sm:$0xff]
        %v2401 = vld [vmem:[%s574 + $0xe0] sm:$0xff]
        %v2402 = vld [vmem:[%s574 + $0xe8] sm:$0xff]
        %v2403 = vld [vmem:[%s574 + $0xf0] sm:$0xff]
        %v2404 = vld [vmem:[%s574 + $0xf8] sm:$0xff]
        %v2405 = vld [vmem:[%s574 + $0x100] sm:$0xff]
        %v2406 = vld [vmem:[%s574 + $0x108] sm:$0xff]
        %v2407 = vld [vmem:[%s574 + $0x110] sm:$0xff]
        %v2408 = vld [vmem:[%s574 + $0x118] sm:$0xff]
        %v2409 = vld [vmem:[%s574 + $0x120] sm:$0xff]
        %v2410 = vld [vmem:[%s574 + $0x128] sm:$0xff]
        %v2411 = vld [vmem:[%s574 + $0x130] sm:$0xff]
        %v2412 = vld [vmem:[%s574 + $0x138] sm:$0xff]
        %v2413 = vld [vmem:[%s574 + $0x140] sm:$0xff]
        %v2414 = vld [vmem:[%s574 + $0x148] sm:$0xff]
        %v2415 = vld [vmem:[%s574 + $0x150] sm:$0xff]
        %v2416 = vld [vmem:[%s574 + $0x158] sm:$0xff]
        %v2417 = vld [vmem:[%s574 + $0x160] sm:$0xff]
        %v2418 = vld [vmem:[%s574 + $0x168] sm:$0xff]
        %v2419 = vld [vmem:[%s574 + $0x170] sm:$0xff]
        %v2420 = vld [vmem:[%s574 + $0x178] sm:$0xff]
        %v2421 = vld [vmem:[%s574 + $0x180] sm:$0xff]
        %v2422 = vld [vmem:[%s574 + $0x188] sm:$0xff]
        %v2423 = vld [vmem:[%s574 + $0x190] sm:$0xff]
        %v2424 = vld [vmem:[%s574 + $0x198] sm:$0xff]
        %v2425 = vld [vmem:[%s574 + $0x1a0] sm:$0xff]
        %v2426 = vld [vmem:[%s574 + $0x1a8] sm:$0xff]
        %v2427 = vld [vmem:[%s574 + $0x1b0] sm:$0xff]
        %v2428 = vld [vmem:[%s574 + $0x1b8] sm:$0xff]
        %v2429 = vld [vmem:[%s574 + $0x1c0] sm:$0xff]
        %v2430 = vld [vmem:[%s574 + $0x1c8] sm:$0xff]
        %v2431 = vld [vmem:[%s574 + $0x1d0] sm:$0xff]
        %v2432 = vld [vmem:[%s574 + $0x1d8] sm:$0xff]
        %v2433 = vld [vmem:[%s574 + $0x1e0] sm:$0xff]
        %v2434 = vld [vmem:[%s574 + $0x1e8] sm:$0xff]
        %v2435 = vld [vmem:[%s574 + $0x1f0] sm:$0xff]
        %v2436 = vld [vmem:[%s574 + $0x1f8] sm:$0xff]
        %v2437 = vld [vmem:[%s574 + $0x200] sm:$0x1f]
        %v2438 = vld [vmem:[%s574 + $0x208] sm:$0x1f]
        %v2439 = vld [vmem:[%s574 + $0x210] sm:$0x1f]
        %v2440 = vld [vmem:[%s574 + $0x218] sm:$0x1f]
        %v2441 = vld [vmem:[%s574 + $0x220] sm:$0x1f]
        %v2442 = vld [vmem:[%s574 + $0x228] sm:$0x1f]
        %v2443 = vld [vmem:[%s574 + $0x230] sm:$0x1f]
        %v2444 = vld [vmem:[%s574 + $0x238] sm:$0x1f]
        %v2445 = vld [vmem:[%s574 + $0x240] sm:$0x1f]
        %v2446 = vld [vmem:[%s574 + $0x248] sm:$0x1f]
        %v2447 = vld [vmem:[%s574 + $0x250] sm:$0x1f]
        %v2448 = vld [vmem:[%s574 + $0x258] sm:$0x1f]
        %v2449 = vld [vmem:[%s574 + $0x260] sm:$0x1f]
        %v2450 = vld [vmem:[%s574 + $0x268] sm:$0x1f]
        %v2451 = vld [vmem:[%s574 + $0x270] sm:$0x1f]
        %v2452 = vld [vmem:[%s574 + $0x278] sm:$0x1f]
        %v2453 = vld [vmem:[%s574 + $0x280] sm:$0x1f]
        %v2454 = vld [vmem:[%s574 + $0x288] sm:$0x1f]
        %v2455 = vld [vmem:[%s574 + $0x290] sm:$0x1f]
        %v2456 = vld [vmem:[%s574 + $0x298] sm:$0x1f]
        %v2457 = vld [vmem:[%s574 + $0x2a0] sm:$0x1f]
        %v2458 = vld [vmem:[%s574 + $0x2a8] sm:$0x1f]
        %v2459 = vld [vmem:[%s574 + $0x2b0] sm:$0x1f]
        %v2460 = vld [vmem:[%s574 + $0x2b8] sm:$0x1f]
        %v2461 = vld [vmem:[%s574 + $0x2c0] sm:$0x1f]
        %v2462 = vld [vmem:[%s574 + $0x2c8] sm:$0x1f]
        %v2463 = vld [vmem:[%s574 + $0x2d0] sm:$0x1f]
        %v2464 = vld [vmem:[%s574 + $0x2d8] sm:$0x1f]
        %v2465 = vld [vmem:[%s574 + $0x2e0] sm:$0x1f]
        %v2466 = vld [vmem:[%s574 + $0x2e8] sm:$0x1f]
        %v2467 = vld [vmem:[%s574 + $0x2f0] sm:$0x1f]
        %v2468 = vld [vmem:[%s574 + $0x2f8] sm:$0x1f]
        %v2469 = vmax.f32 %v2373, %v2405
        %vm2470 = vcmask 1044480
        %v2471 = vsel %vm2470, %v2437, -inf
        %v2472 = vmax.f32 %v2469, %v2471
        %v2473 = vrot.slane %v2472, 4
        %v2474 = vmax.f32 %v2472, %v2473
        %v2475 = vrot.slane %v2474, 2
        %v2476 = vmax.f32 %v2474, %v2475
        %v2477 = vrot.slane %v2476, 1
        %v2478 = vmax.f32 %v2476, %v2477
        %v2479 = vmax.f32 %v2374, %v2406
        %v2480 = vsel %vm2470, %v2438, -inf
        %v2481 = vmax.f32 %v2479, %v2480
        %v2482 = vrot.slane %v2481, 4
        %v2483 = vmax.f32 %v2481, %v2482
        %v2484 = vrot.slane %v2483, 2
        %v2485 = vmax.f32 %v2483, %v2484
        %v2486 = vrot.slane %v2485, 1
        %v2487 = vmax.f32 %v2485, %v2486
        %v2488 = vmax.f32 %v2375, %v2407
        %v2489 = vsel %vm2470, %v2439, -inf
        %v2490 = vmax.f32 %v2488, %v2489
        %v2491 = vrot.slane %v2490, 4
        %v2492 = vmax.f32 %v2490, %v2491
        %v2493 = vrot.slane %v2492, 2
        %v2494 = vmax.f32 %v2492, %v2493
        %v2495 = vrot.slane %v2494, 1
        %v2496 = vmax.f32 %v2494, %v2495
        %v2497 = vmax.f32 %v2376, %v2408
        %v2498 = vsel %vm2470, %v2440, -inf
        %v2499 = vmax.f32 %v2497, %v2498
        %v2500 = vrot.slane %v2499, 4
        %v2501 = vmax.f32 %v2499, %v2500
        %v2502 = vrot.slane %v2501, 2
        %v2503 = vmax.f32 %v2501, %v2502
        %v2504 = vrot.slane %v2503, 1
        %v2505 = vmax.f32 %v2503, %v2504
        %v2506 = vmax.f32 %v2377, %v2409
        %v2507 = vsel %vm2470, %v2441, -inf
        %v2508 = vmax.f32 %v2506, %v2507
        %v2509 = vrot.slane %v2508, 4
        %v2510 = vmax.f32 %v2508, %v2509
        %v2511 = vrot.slane %v2510, 2
        %v2512 = vmax.f32 %v2510, %v2511
        %v2513 = vrot.slane %v2512, 1
        %v2514 = vmax.f32 %v2512, %v2513
        %v2515 = vmax.f32 %v2378, %v2410
        %v2516 = vsel %vm2470, %v2442, -inf
        %v2517 = vmax.f32 %v2515, %v2516
        %v2518 = vrot.slane %v2517, 4
        %v2519 = vmax.f32 %v2517, %v2518
        %v2520 = vrot.slane %v2519, 2
        %v2521 = vmax.f32 %v2519, %v2520
        %v2522 = vrot.slane %v2521, 1
        %v2523 = vmax.f32 %v2521, %v2522
        %v2524 = vmax.f32 %v2379, %v2411
        %v2525 = vsel %vm2470, %v2443, -inf
        %v2526 = vmax.f32 %v2524, %v2525
        %v2527 = vrot.slane %v2526, 4
        %v2528 = vmax.f32 %v2526, %v2527
        %v2529 = vrot.slane %v2528, 2
        %v2530 = vmax.f32 %v2528, %v2529
        %v2531 = vrot.slane %v2530, 1
        %v2532 = vmax.f32 %v2530, %v2531
        %v2533 = vmax.f32 %v2380, %v2412
        %v2534 = vsel %vm2470, %v2444, -inf
        %v2535 = vmax.f32 %v2533, %v2534
        %v2536 = vrot.slane %v2535, 4
        %v2537 = vmax.f32 %v2535, %v2536
        %v2538 = vrot.slane %v2537, 2
        %v2539 = vmax.f32 %v2537, %v2538
        %v2540 = vrot.slane %v2539, 1
        %v2541 = vmax.f32 %v2539, %v2540
        %v2542 = vmax.f32 %v2381, %v2413
        %v2543 = vsel %vm2470, %v2445, -inf
        %v2544 = vmax.f32 %v2542, %v2543
        %v2545 = vrot.slane %v2544, 4
        %v2546 = vmax.f32 %v2544, %v2545
        %v2547 = vrot.slane %v2546, 2
        %v2548 = vmax.f32 %v2546, %v2547
        %v2549 = vrot.slane %v2548, 1
        %v2550 = vmax.f32 %v2548, %v2549
        %v2551 = vmax.f32 %v2382, %v2414
        %v2552 = vsel %vm2470, %v2446, -inf
        %v2553 = vmax.f32 %v2551, %v2552
        %v2554 = vrot.slane %v2553, 4
        %v2555 = vmax.f32 %v2553, %v2554
        %v2556 = vrot.slane %v2555, 2
        %v2557 = vmax.f32 %v2555, %v2556
        %v2558 = vrot.slane %v2557, 1
        %v2559 = vmax.f32 %v2557, %v2558
        %v2560 = vmax.f32 %v2383, %v2415
        %v2561 = vsel %vm2470, %v2447, -inf
        %v2562 = vmax.f32 %v2560, %v2561
        %v2563 = vrot.slane %v2562, 4
        %v2564 = vmax.f32 %v2562, %v2563
        %v2565 = vrot.slane %v2564, 2
        %v2566 = vmax.f32 %v2564, %v2565
        %v2567 = vrot.slane %v2566, 1
        %v2568 = vmax.f32 %v2566, %v2567
        %v2569 = vmax.f32 %v2384, %v2416
        %v2570 = vsel %vm2470, %v2448, -inf
        %v2571 = vmax.f32 %v2569, %v2570
        %v2572 = vrot.slane %v2571, 4
        %v2573 = vmax.f32 %v2571, %v2572
        %v2574 = vrot.slane %v2573, 2
        %v2575 = vmax.f32 %v2573, %v2574
        %v2576 = vrot.slane %v2575, 1
        %v2577 = vmax.f32 %v2575, %v2576
        %v2578 = vmax.f32 %v2385, %v2417
        %v2579 = vsel %vm2470, %v2449, -inf
        %v2580 = vmax.f32 %v2578, %v2579
        %v2581 = vrot.slane %v2580, 4
        %v2582 = vmax.f32 %v2580, %v2581
        %v2583 = vrot.slane %v2582, 2
        %v2584 = vmax.f32 %v2582, %v2583
        %v2585 = vrot.slane %v2584, 1
        %v2586 = vmax.f32 %v2584, %v2585
        %v2587 = vmax.f32 %v2386, %v2418
        %v2588 = vsel %vm2470, %v2450, -inf
        %v2589 = vmax.f32 %v2587, %v2588
        %v2590 = vrot.slane %v2589, 4
        %v2591 = vmax.f32 %v2589, %v2590
        %v2592 = vrot.slane %v2591, 2
        %v2593 = vmax.f32 %v2591, %v2592
        %v2594 = vrot.slane %v2593, 1
        %v2595 = vmax.f32 %v2593, %v2594
        %v2596 = vmax.f32 %v2387, %v2419
        %v2597 = vsel %vm2470, %v2451, -inf
        %v2598 = vmax.f32 %v2596, %v2597
        %v2599 = vrot.slane %v2598, 4
        %v2600 = vmax.f32 %v2598, %v2599
        %v2601 = vrot.slane %v2600, 2
        %v2602 = vmax.f32 %v2600, %v2601
        %v2603 = vrot.slane %v2602, 1
        %v2604 = vmax.f32 %v2602, %v2603
        %v2605 = vmax.f32 %v2388, %v2420
        %v2606 = vsel %vm2470, %v2452, -inf
        %v2607 = vmax.f32 %v2605, %v2606
        %v2608 = vrot.slane %v2607, 4
        %v2609 = vmax.f32 %v2607, %v2608
        %v2610 = vrot.slane %v2609, 2
        %v2611 = vmax.f32 %v2609, %v2610
        %v2612 = vrot.slane %v2611, 1
        %v2613 = vmax.f32 %v2611, %v2612
        %v2614 = vmax.f32 %v2389, %v2421
        %v2615 = vsel %vm2470, %v2453, -inf
        %v2616 = vmax.f32 %v2614, %v2615
        %v2617 = vrot.slane %v2616, 4
        %v2618 = vmax.f32 %v2616, %v2617
        %v2619 = vrot.slane %v2618, 2
        %v2620 = vmax.f32 %v2618, %v2619
        %v2621 = vrot.slane %v2620, 1
        %v2622 = vmax.f32 %v2620, %v2621
        %v2623 = vmax.f32 %v2390, %v2422
        %v2624 = vsel %vm2470, %v2454, -inf
        %v2625 = vmax.f32 %v2623, %v2624
        %v2626 = vrot.slane %v2625, 4
        %v2627 = vmax.f32 %v2625, %v2626
        %v2628 = vrot.slane %v2627, 2
        %v2629 = vmax.f32 %v2627, %v2628
        %v2630 = vrot.slane %v2629, 1
        %v2631 = vmax.f32 %v2629, %v2630
        %v2632 = vmax.f32 %v2391, %v2423
        %v2633 = vsel %vm2470, %v2455, -inf
        %v2634 = vmax.f32 %v2632, %v2633
        %v2635 = vrot.slane %v2634, 4
        %v2636 = vmax.f32 %v2634, %v2635
        %v2637 = vrot.slane %v2636, 2
        %v2638 = vmax.f32 %v2636, %v2637
        %v2639 = vrot.slane %v2638, 1
        %v2640 = vmax.f32 %v2638, %v2639
        %v2641 = vmax.f32 %v2392, %v2424
        %v2642 = vsel %vm2470, %v2456, -inf
        %v2643 = vmax.f32 %v2641, %v2642
        %v2644 = vrot.slane %v2643, 4
        %v2645 = vmax.f32 %v2643, %v2644
        %v2646 = vrot.slane %v2645, 2
        %v2647 = vmax.f32 %v2645, %v2646
        %v2648 = vrot.slane %v2647, 1
        %v2649 = vmax.f32 %v2647, %v2648
        %v2650 = vmax.f32 %v2393, %v2425
        %v2651 = vsel %vm2470, %v2457, -inf
        %v2652 = vmax.f32 %v2650, %v2651
        %v2653 = vrot.slane %v2652, 4
        %v2654 = vmax.f32 %v2652, %v2653
        %v2655 = vrot.slane %v2654, 2
        %v2656 = vmax.f32 %v2654, %v2655
        %v2657 = vrot.slane %v2656, 1
        %v2658 = vmax.f32 %v2656, %v2657
        %v2659 = vmax.f32 %v2394, %v2426
        %v2660 = vsel %vm2470, %v2458, -inf
        %v2661 = vmax.f32 %v2659, %v2660
        %v2662 = vrot.slane %v2661, 4
        %v2663 = vmax.f32 %v2661, %v2662
        %v2664 = vrot.slane %v2663, 2
        %v2665 = vmax.f32 %v2663, %v2664
        %v2666 = vrot.slane %v2665, 1
        %v2667 = vmax.f32 %v2665, %v2666
        %v2668 = vmax.f32 %v2395, %v2427
        %v2669 = vsel %vm2470, %v2459, -inf
        %v2670 = vmax.f32 %v2668, %v2669
        %v2671 = vrot.slane %v2670, 4
        %v2672 = vmax.f32 %v2670, %v2671
        %v2673 = vrot.slane %v2672, 2
        %v2674 = vmax.f32 %v2672, %v2673
        %v2675 = vrot.slane %v2674, 1
        %v2676 = vmax.f32 %v2674, %v2675
        %v2677 = vmax.f32 %v2396, %v2428
        %v2678 = vsel %vm2470, %v2460, -inf
        %v2679 = vmax.f32 %v2677, %v2678
        %v2680 = vrot.slane %v2679, 4
        %v2681 = vmax.f32 %v2679, %v2680
        %v2682 = vrot.slane %v2681, 2
        %v2683 = vmax.f32 %v2681, %v2682
        %v2684 = vrot.slane %v2683, 1
        %v2685 = vmax.f32 %v2683, %v2684
        %v2686 = vmax.f32 %v2397, %v2429
        %v2687 = vsel %vm2470, %v2461, -inf
        %v2688 = vmax.f32 %v2686, %v2687
        %v2689 = vrot.slane %v2688, 4
        %v2690 = vmax.f32 %v2688, %v2689
        %v2691 = vrot.slane %v2690, 2
        %v2692 = vmax.f32 %v2690, %v2691
        %v2693 = vrot.slane %v2692, 1
        %v2694 = vmax.f32 %v2692, %v2693
        %v2695 = vmax.f32 %v2398, %v2430
        %v2696 = vsel %vm2470, %v2462, -inf
        %v2697 = vmax.f32 %v2695, %v2696
        %v2698 = vrot.slane %v2697, 4
        %v2699 = vmax.f32 %v2697, %v2698
        %v2700 = vrot.slane %v2699, 2
        %v2701 = vmax.f32 %v2699, %v2700
        %v2702 = vrot.slane %v2701, 1
        %v2703 = vmax.f32 %v2701, %v2702
        %v2704 = vmax.f32 %v2399, %v2431
        %v2705 = vsel %vm2470, %v2463, -inf
        %v2706 = vmax.f32 %v2704, %v2705
        %v2707 = vrot.slane %v2706, 4
        %v2708 = vmax.f32 %v2706, %v2707
        %v2709 = vrot.slane %v2708, 2
        %v2710 = vmax.f32 %v2708, %v2709
        %v2711 = vrot.slane %v2710, 1
        %v2712 = vmax.f32 %v2710, %v2711
        %v2713 = vmax.f32 %v2400, %v2432
        %v2714 = vsel %vm2470, %v2464, -inf
        %v2715 = vmax.f32 %v2713, %v2714
        %v2716 = vrot.slane %v2715, 4
        %v2717 = vmax.f32 %v2715, %v2716
        %v2718 = vrot.slane %v2717, 2
        %v2719 = vmax.f32 %v2717, %v2718
        %v2720 = vrot.slane %v2719, 1
        %v2721 = vmax.f32 %v2719, %v2720
        %v2722 = vmax.f32 %v2401, %v2433
        %v2723 = vsel %vm2470, %v2465, -inf
        %v2724 = vmax.f32 %v2722, %v2723
        %v2725 = vrot.slane %v2724, 4
        %v2726 = vmax.f32 %v2724, %v2725
        %v2727 = vrot.slane %v2726, 2
        %v2728 = vmax.f32 %v2726, %v2727
        %v2729 = vrot.slane %v2728, 1
        %v2730 = vmax.f32 %v2728, %v2729
        %v2731 = vmax.f32 %v2402, %v2434
        %v2732 = vsel %vm2470, %v2466, -inf
        %v2733 = vmax.f32 %v2731, %v2732
        %v2734 = vrot.slane %v2733, 4
        %v2735 = vmax.f32 %v2733, %v2734
        %v2736 = vrot.slane %v2735, 2
        %v2737 = vmax.f32 %v2735, %v2736
        %v2738 = vrot.slane %v2737, 1
        %v2739 = vmax.f32 %v2737, %v2738
        %v2740 = vmax.f32 %v2403, %v2435
        %v2741 = vsel %vm2470, %v2467, -inf
        %v2742 = vmax.f32 %v2740, %v2741
        %v2743 = vrot.slane %v2742, 4
        %v2744 = vmax.f32 %v2742, %v2743
        %v2745 = vrot.slane %v2744, 2
        %v2746 = vmax.f32 %v2744, %v2745
        %v2747 = vrot.slane %v2746, 1
        %v2748 = vmax.f32 %v2746, %v2747
        %v2749 = vmax.f32 %v2404, %v2436
        %v2750 = vsel %vm2470, %v2468, -inf
        %v2751 = vmax.f32 %v2749, %v2750
        %v2752 = vrot.slane %v2751, 4
        %v2753 = vmax.f32 %v2751, %v2752
        %v2754 = vrot.slane %v2753, 2
        %v2755 = vmax.f32 %v2753, %v2754
        %v2756 = vrot.slane %v2755, 1
        %v2757 = vmax.f32 %v2755, %v2756
        %v2758 = vsub.f32 %v2373, %v2478
        %v2759 = vsub.f32 %v2374, %v2487
        %v2760 = vsub.f32 %v2375, %v2496
        %v2761 = vsub.f32 %v2376, %v2505
        %v2762 = vsub.f32 %v2377, %v2514
        %v2763 = vsub.f32 %v2378, %v2523
        %v2764 = vsub.f32 %v2379, %v2532
        %v2765 = vsub.f32 %v2380, %v2541
        %v2766 = vsub.f32 %v2381, %v2550
        %v2767 = vsub.f32 %v2382, %v2559
        %v2768 = vsub.f32 %v2383, %v2568
        %v2769 = vsub.f32 %v2384, %v2577
        %v2770 = vsub.f32 %v2385, %v2586
        %v2771 = vsub.f32 %v2386, %v2595
        %v2772 = vsub.f32 %v2387, %v2604
        %v2773 = vsub.f32 %v2388, %v2613
        %v2774 = vsub.f32 %v2389, %v2622
        %v2775 = vsub.f32 %v2390, %v2631
        %v2776 = vsub.f32 %v2391, %v2640
        %v2777 = vsub.f32 %v2392, %v2649
        %v2778 = vsub.f32 %v2393, %v2658
        %v2779 = vsub.f32 %v2394, %v2667
        %v2780 = vsub.f32 %v2395, %v2676
        %v2781 = vsub.f32 %v2396, %v2685
        %v2782 = vsub.f32 %v2397, %v2694
        %v2783 = vsub.f32 %v2398, %v2703
        %v2784 = vsub.f32 %v2399, %v2712
        %v2785 = vsub.f32 %v2400, %v2721
        %v2786 = vsub.f32 %v2401, %v2730
        %v2787 = vsub.f32 %v2402, %v2739
        %v2788 = vsub.f32 %v2403, %v2748
        %v2789 = vsub.f32 %v2404, %v2757
        %v2790 = vsub.f32 %v2405, %v2478
        %v2791 = vsub.f32 %v2406, %v2487
        %v2792 = vsub.f32 %v2407, %v2496
        %v2793 = vsub.f32 %v2408, %v2505
        %v2794 = vsub.f32 %v2409, %v2514
        %v2795 = vsub.f32 %v2410, %v2523
        %v2796 = vsub.f32 %v2411, %v2532
        %v2797 = vsub.f32 %v2412, %v2541
        %v2798 = vsub.f32 %v2413, %v2550
        %v2799 = vsub.f32 %v2414, %v2559
        %v2800 = vsub.f32 %v2415, %v2568
        %v2801 = vsub.f32 %v2416, %v2577
        %v2802 = vsub.f32 %v2417, %v2586
        %v2803 = vsub.f32 %v2418, %v2595
        %v2804 = vsub.f32 %v2419, %v2604
        %v2805 = vsub.f32 %v2420, %v2613
        %v2806 = vsub.f32 %v2421, %v2622
        %v2807 = vsub.f32 %v2422, %v2631
        %v2808 = vsub.f32 %v2423, %v2640
        %v2809 = vsub.f32 %v2424, %v2649
        %v2810 = vsub.f32 %v2425, %v2658
        %v2811 = vsub.f32 %v2426, %v2667
        %v2812 = vsub.f32 %v2427, %v2676
        %v2813 = vsub.f32 %v2428, %v2685
        %v2814 = vsub.f32 %v2429, %v2694
        %v2815 = vsub.f32 %v2430, %v2703
        %v2816 = vsub.f32 %v2431, %v2712
        %v2817 = vsub.f32 %v2432, %v2721
        %v2818 = vsub.f32 %v2433, %v2730
        %v2819 = vsub.f32 %v2434, %v2739
        %v2820 = vsub.f32 %v2435, %v2748
        %v2821 = vsub.f32 %v2436, %v2757
        %v2822 = vsub.f32 %v2437, %v2478
        %v2823 = vsub.f32 %v2438, %v2487
        %v2824 = vsub.f32 %v2439, %v2496
        %v2825 = vsub.f32 %v2440, %v2505
        %v2826 = vsub.f32 %v2441, %v2514
        %v2827 = vsub.f32 %v2442, %v2523
        %v2828 = vsub.f32 %v2443, %v2532
        %v2829 = vsub.f32 %v2444, %v2541
        %v2830 = vsub.f32 %v2445, %v2550
        %v2831 = vsub.f32 %v2446, %v2559
        %v2832 = vsub.f32 %v2447, %v2568
        %v2833 = vsub.f32 %v2448, %v2577
        %v2834 = vsub.f32 %v2449, %v2586
        %v2835 = vsub.f32 %v2450, %v2595
        %v2836 = vsub.f32 %v2451, %v2604
        %v2837 = vsub.f32 %v2452, %v2613
        %v2838 = vsub.f32 %v2453, %v2622
        %v2839 = vsub.f32 %v2454, %v2631
        %v2840 = vsub.f32 %v2455, %v2640
        %v2841 = vsub.f32 %v2456, %v2649
        %v2842 = vsub.f32 %v2457, %v2658
        %v2843 = vsub.f32 %v2458, %v2667
        %v2844 = vsub.f32 %v2459, %v2676
        %v2845 = vsub.f32 %v2460, %v2685
        %v2846 = vsub.f32 %v2461, %v2694
        %v2847 = vsub.f32 %v2462, %v2703
        %v2848 = vsub.f32 %v2463, %v2712
        %v2849 = vsub.f32 %v2464, %v2721
        %v2850 = vsub.f32 %v2465, %v2730
        %v2851 = vsub.f32 %v2466, %v2739
        %v2852 = vsub.f32 %v2467, %v2748
        %v2853 = vsub.f32 %v2468, %v2757
        %v2854 = vmul.f32 %v2758, 1.442695
        %v2855 = vpow.pop %v2854
        %v2856 = vmul.f32 %v2759, 1.442695
        %v2857 = vpow.pop %v2856
        %v2858 = vmul.f32 %v2760, 1.442695
        %v2859 = vpow.pop %v2858
        %v2860 = vmul.f32 %v2761, 1.442695
        %v2861 = vpow.pop %v2860
        %v2862 = vmul.f32 %v2762, 1.442695
        %v2863 = vpow.pop %v2862
        %v2864 = vmul.f32 %v2763, 1.442695
        %v2865 = vpow.pop %v2864
        %v2866 = vmul.f32 %v2764, 1.442695
        %v2867 = vpow.pop %v2866
        %v2868 = vmul.f32 %v2765, 1.442695
        %v2869 = vpow.pop %v2868
        %v2870 = vmul.f32 %v2766, 1.442695
        %v2871 = vpow.pop %v2870
        %v2872 = vmul.f32 %v2767, 1.442695
        %v2873 = vpow.pop %v2872
        %v2874 = vmul.f32 %v2768, 1.442695
        %v2875 = vpow.pop %v2874
        %v2876 = vmul.f32 %v2769, 1.442695
        %v2877 = vpow.pop %v2876
        %v2878 = vmul.f32 %v2770, 1.442695
        %v2879 = vpow.pop %v2878
        %v2880 = vmul.f32 %v2771, 1.442695
        %v2881 = vpow.pop %v2880
        %v2882 = vmul.f32 %v2772, 1.442695
        %v2883 = vpow.pop %v2882
        %v2884 = vmul.f32 %v2773, 1.442695
        %v2885 = vpow.pop %v2884
        %v2886 = vmul.f32 %v2774, 1.442695
        %v2887 = vpow.pop %v2886
        %v2888 = vmul.f32 %v2775, 1.442695
        %v2889 = vpow.pop %v2888
        %v2890 = vmul.f32 %v2776, 1.442695
        %v2891 = vpow.pop %v2890
        %v2892 = vmul.f32 %v2777, 1.442695
        %v2893 = vpow.pop %v2892
        %v2894 = vmul.f32 %v2778, 1.442695
        %v2895 = vpow.pop %v2894
        %v2896 = vmul.f32 %v2779, 1.442695
        %v2897 = vpow.pop %v2896
        %v2898 = vmul.f32 %v2780, 1.442695
        %v2899 = vpow.pop %v2898
        %v2900 = vmul.f32 %v2781, 1.442695
        %v2901 = vpow.pop %v2900
        %v2902 = vmul.f32 %v2782, 1.442695
        %v2903 = vpow.pop %v2902
        %v2904 = vmul.f32 %v2783, 1.442695
        %v2905 = vpow.pop %v2904
        %v2906 = vmul.f32 %v2784, 1.442695
        %v2907 = vpow.pop %v2906
        %v2908 = vmul.f32 %v2785, 1.442695
        %v2909 = vpow.pop %v2908
        %v2910 = vmul.f32 %v2786, 1.442695
        %v2911 = vpow.pop %v2910
        %v2912 = vmul.f32 %v2787, 1.442695
        %v2913 = vpow.pop %v2912
        %v2914 = vmul.f32 %v2788, 1.442695
        %v2915 = vpow.pop %v2914
        %v2916 = vmul.f32 %v2789, 1.442695
        %v2917 = vpow.pop %v2916
        %v2918 = vmul.f32 %v2790, 1.442695
        %v2919 = vpow.pop %v2918
        %v2920 = vmul.f32 %v2791, 1.442695
        %v2921 = vpow.pop %v2920
        %v2922 = vmul.f32 %v2792, 1.442695
        %v2923 = vpow.pop %v2922
        %v2924 = vmul.f32 %v2793, 1.442695
        %v2925 = vpow.pop %v2924
        %v2926 = vmul.f32 %v2794, 1.442695
        %v2927 = vpow.pop %v2926
        %v2928 = vmul.f32 %v2795, 1.442695
        %v2929 = vpow.pop %v2928
        %v2930 = vmul.f32 %v2796, 1.442695
        %v2931 = vpow.pop %v2930
        %v2932 = vmul.f32 %v2797, 1.442695
        %v2933 = vpow.pop %v2932
        %v2934 = vmul.f32 %v2798, 1.442695
        %v2935 = vpow.pop %v2934
        %v2936 = vmul.f32 %v2799, 1.442695
        %v2937 = vpow.pop %v2936
        %v2938 = vmul.f32 %v2800, 1.442695
        %v2939 = vpow.pop %v2938
        %v2940 = vmul.f32 %v2801, 1.442695
        %v2941 = vpow.pop %v2940
        %v2942 = vmul.f32 %v2802, 1.442695
        %v2943 = vpow.pop %v2942
        %v2944 = vmul.f32 %v2803, 1.442695
        %v2945 = vpow.pop %v2944
        %v2946 = vmul.f32 %v2804, 1.442695
        %v2947 = vpow.pop %v2946
        %v2948 = vmul.f32 %v2805, 1.442695
        %v2949 = vpow.pop %v2948
        %v2950 = vmul.f32 %v2806, 1.442695
        %v2951 = vpow.pop %v2950
        %v2952 = vmul.f32 %v2807, 1.442695
        %v2953 = vpow.pop %v2952
        %v2954 = vmul.f32 %v2808, 1.442695
        %v2955 = vpow.pop %v2954
        %v2956 = vmul.f32 %v2809, 1.442695
        %v2957 = vpow.pop %v2956
        %v2958 = vmul.f32 %v2810, 1.442695
        %v2959 = vpow.pop %v2958
        %v2960 = vmul.f32 %v2811, 1.442695
        %v2961 = vpow.pop %v2960
        %v2962 = vmul.f32 %v2812, 1.442695
        %v2963 = vpow.pop %v2962
        %v2964 = vmul.f32 %v2813, 1.442695
        %v2965 = vpow.pop %v2964
        %v2966 = vmul.f32 %v2814, 1.442695
        %v2967 = vpow.pop %v2966
        %v2968 = vmul.f32 %v2815, 1.442695
        %v2969 = vpow.pop %v2968
        %v2970 = vmul.f32 %v2816, 1.442695
        %v2971 = vpow.pop %v2970
        %v2972 = vmul.f32 %v2817, 1.442695
        %v2973 = vpow.pop %v2972
        %v2974 = vmul.f32 %v2818, 1.442695
        %v2975 = vpow.pop %v2974
        %v2976 = vmul.f32 %v2819, 1.442695
        %v2977 = vpow.pop %v2976
        %v2978 = vmul.f32 %v2820, 1.442695
        %v2979 = vpow.pop %v2978
        %v2980 = vmul.f32 %v2821, 1.442695
        %v2981 = vpow.pop %v2980
        %v2982 = vmul.f32 %v2822, 1.442695
        %v2983 = vpow.pop %v2982
        %v2984 = vmul.f32 %v2823, 1.442695
        %v2985 = vpow.pop %v2984
        %v2986 = vmul.f32 %v2824, 1.442695
        %v2987 = vpow.pop %v2986
        %v2988 = vmul.f32 %v2825, 1.442695
        %v2989 = vpow.pop %v2988
        %v2990 = vmul.f32 %v2826, 1.442695
        %v2991 = vpow.pop %v2990
        %v2992 = vmul.f32 %v2827, 1.442695
        %v2993 = vpow.pop %v2992
        %v2994 = vmul.f32 %v2828, 1.442695
        %v2995 = vpow.pop %v2994
        %v2996 = vmul.f32 %v2829, 1.442695
        %v2997 = vpow.pop %v2996
        %v2998 = vmul.f32 %v2830, 1.442695
        %v2999 = vpow.pop %v2998
        %v3000 = vmul.f32 %v2831, 1.442695
        %v3001 = vpow.pop %v3000
        %v3002 = vmul.f32 %v2832, 1.442695
        %v3003 = vpow.pop %v3002
        %v3004 = vmul.f32 %v2833, 1.442695
        %v3005 = vpow.pop %v3004
        %v3006 = vmul.f32 %v2834, 1.442695
        %v3007 = vpow.pop %v3006
        %v3008 = vmul.f32 %v2835, 1.442695
        %v3009 = vpow.pop %v3008
        %v3010 = vmul.f32 %v2836, 1.442695
        %v3011 = vpow.pop %v3010
        %v3012 = vmul.f32 %v2837, 1.442695
        %v3013 = vpow.pop %v3012
        %v3014 = vmul.f32 %v2838, 1.442695
        %v3015 = vpow.pop %v3014
        %v3016 = vmul.f32 %v2839, 1.442695
        %v3017 = vpow.pop %v3016
        %v3018 = vmul.f32 %v2840, 1.442695
        %v3019 = vpow.pop %v3018
        %v3020 = vmul.f32 %v2841, 1.442695
        %v3021 = vpow.pop %v3020
        %v3022 = vmul.f32 %v2842, 1.442695
        %v3023 = vpow.pop %v3022
        %v3024 = vmul.f32 %v2843, 1.442695
        %v3025 = vpow.pop %v3024
        %v3026 = vmul.f32 %v2844, 1.442695
        %v3027 = vpow.pop %v3026
        %v3028 = vmul.f32 %v2845, 1.442695
        %v3029 = vpow.pop %v3028
        %v3030 = vmul.f32 %v2846, 1.442695
        %v3031 = vpow.pop %v3030
        %v3032 = vmul.f32 %v2847, 1.442695
        %v3033 = vpow.pop %v3032
        %v3034 = vmul.f32 %v2848, 1.442695
        %v3035 = vpow.pop %v3034
        %v3036 = vmul.f32 %v2849, 1.442695
        %v3037 = vpow.pop %v3036
        %v3038 = vmul.f32 %v2850, 1.442695
        %v3039 = vpow.pop %v3038
        %v3040 = vmul.f32 %v2851, 1.442695
        %v3041 = vpow.pop %v3040
        %v3042 = vmul.f32 %v2852, 1.442695
        %v3043 = vpow.pop %v3042
        %v3044 = vmul.f32 %v2853, 1.442695
        %v3045 = vpow.pop %v3044
        %v3046 = vadd.f32 %v2855, %v2919
        %v3047 = vsel %vm2470, %v2983, 0.0
        %v3048 = vadd.f32 %v3046, %v3047
        %v3049 = vrot.slane %v3048, 4
        %v3050 = vadd.f32 %v3048, %v3049
        %v3051 = vrot.slane %v3050, 2
        %v3052 = vadd.f32 %v3050, %v3051
        %v3053 = vrot.slane %v3052, 1
        %v3054 = vadd.f32 %v3052, %v3053
        %v3055 = vadd.f32 %v2857, %v2921
        %v3056 = vsel %vm2470, %v2985, 0.0
        %v3057 = vadd.f32 %v3055, %v3056
        %v3058 = vrot.slane %v3057, 4
        %v3059 = vadd.f32 %v3057, %v3058
        %v3060 = vrot.slane %v3059, 2
        %v3061 = vadd.f32 %v3059, %v3060
        %v3062 = vrot.slane %v3061, 1
        %v3063 = vadd.f32 %v3061, %v3062
        %v3064 = vadd.f32 %v2859, %v2923
        %v3065 = vsel %vm2470, %v2987, 0.0
        %v3066 = vadd.f32 %v3064, %v3065
        %v3067 = vrot.slane %v3066, 4
        %v3068 = vadd.f32 %v3066, %v3067
        %v3069 = vrot.slane %v3068, 2
        %v3070 = vadd.f32 %v3068, %v3069
        %v3071 = vrot.slane %v3070, 1
        %v3072 = vadd.f32 %v3070, %v3071
        %v3073 = vadd.f32 %v2861, %v2925
        %v3074 = vsel %vm2470, %v2989, 0.0
        %v3075 = vadd.f32 %v3073, %v3074
        %v3076 = vrot.slane %v3075, 4
        %v3077 = vadd.f32 %v3075, %v3076
        %v3078 = vrot.slane %v3077, 2
        %v3079 = vadd.f32 %v3077, %v3078
        %v3080 = vrot.slane %v3079, 1
        %v3081 = vadd.f32 %v3079, %v3080
        %v3082 = vadd.f32 %v2863, %v2927
        %v3083 = vsel %vm2470, %v2991, 0.0
        %v3084 = vadd.f32 %v3082, %v3083
        %v3085 = vrot.slane %v3084, 4
        %v3086 = vadd.f32 %v3084, %v3085
        %v3087 = vrot.slane %v3086, 2
        %v3088 = vadd.f32 %v3086, %v3087
        %v3089 = vrot.slane %v3088, 1
        %v3090 = vadd.f32 %v3088, %v3089
        %v3091 = vadd.f32 %v2865, %v2929
        %v3092 = vsel %vm2470, %v2993, 0.0
        %v3093 = vadd.f32 %v3091, %v3092
        %v3094 = vrot.slane %v3093, 4
        %v3095 = vadd.f32 %v3093, %v3094
        %v3096 = vrot.slane %v3095, 2
        %v3097 = vadd.f32 %v3095, %v3096
        %v3098 = vrot.slane %v3097, 1
        %v3099 = vadd.f32 %v3097, %v3098
        %v3100 = vadd.f32 %v2867, %v2931
        %v3101 = vsel %vm2470, %v2995, 0.0
        %v3102 = vadd.f32 %v3100, %v3101
        %v3103 = vrot.slane %v3102, 4
        %v3104 = vadd.f32 %v3102, %v3103
        %v3105 = vrot.slane %v3104, 2
        %v3106 = vadd.f32 %v3104, %v3105
        %v3107 = vrot.slane %v3106, 1
        %v3108 = vadd.f32 %v3106, %v3107
        %v3109 = vadd.f32 %v2869, %v2933
        %v3110 = vsel %vm2470, %v2997, 0.0
        %v3111 = vadd.f32 %v3109, %v3110
        %v3112 = vrot.slane %v3111, 4
        %v3113 = vadd.f32 %v3111, %v3112
        %v3114 = vrot.slane %v3113, 2
        %v3115 = vadd.f32 %v3113, %v3114
        %v3116 = vrot.slane %v3115, 1
        %v3117 = vadd.f32 %v3115, %v3116
        %v3118 = vadd.f32 %v2871, %v2935
        %v3119 = vsel %vm2470, %v2999, 0.0
        %v3120 = vadd.f32 %v3118, %v3119
        %v3121 = vrot.slane %v3120, 4
        %v3122 = vadd.f32 %v3120, %v3121
        %v3123 = vrot.slane %v3122, 2
        %v3124 = vadd.f32 %v3122, %v3123
        %v3125 = vrot.slane %v3124, 1
        %v3126 = vadd.f32 %v3124, %v3125
        %v3127 = vadd.f32 %v2873, %v2937
        %v3128 = vsel %vm2470, %v3001, 0.0
        %v3129 = vadd.f32 %v3127, %v3128
        %v3130 = vrot.slane %v3129, 4
        %v3131 = vadd.f32 %v3129, %v3130
        %v3132 = vrot.slane %v3131, 2
        %v3133 = vadd.f32 %v3131, %v3132
        %v3134 = vrot.slane %v3133, 1
        %v3135 = vadd.f32 %v3133, %v3134
        %v3136 = vadd.f32 %v2875, %v2939
        %v3137 = vsel %vm2470, %v3003, 0.0
        %v3138 = vadd.f32 %v3136, %v3137
        %v3139 = vrot.slane %v3138, 4
        %v3140 = vadd.f32 %v3138, %v3139
        %v3141 = vrot.slane %v3140, 2
        %v3142 = vadd.f32 %v3140, %v3141
        %v3143 = vrot.slane %v3142, 1
        %v3144 = vadd.f32 %v3142, %v3143
        %v3145 = vadd.f32 %v2877, %v2941
        %v3146 = vsel %vm2470, %v3005, 0.0
        %v3147 = vadd.f32 %v3145, %v3146
        %v3148 = vrot.slane %v3147, 4
        %v3149 = vadd.f32 %v3147, %v3148
        %v3150 = vrot.slane %v3149, 2
        %v3151 = vadd.f32 %v3149, %v3150
        %v3152 = vrot.slane %v3151, 1
        %v3153 = vadd.f32 %v3151, %v3152
        %v3154 = vadd.f32 %v2879, %v2943
        %v3155 = vsel %vm2470, %v3007, 0.0
        %v3156 = vadd.f32 %v3154, %v3155
        %v3157 = vrot.slane %v3156, 4
        %v3158 = vadd.f32 %v3156, %v3157
        %v3159 = vrot.slane %v3158, 2
        %v3160 = vadd.f32 %v3158, %v3159
        %v3161 = vrot.slane %v3160, 1
        %v3162 = vadd.f32 %v3160, %v3161
        %v3163 = vadd.f32 %v2881, %v2945
        %v3164 = vsel %vm2470, %v3009, 0.0
        %v3165 = vadd.f32 %v3163, %v3164
        %v3166 = vrot.slane %v3165, 4
        %v3167 = vadd.f32 %v3165, %v3166
        %v3168 = vrot.slane %v3167, 2
        %v3169 = vadd.f32 %v3167, %v3168
        %v3170 = vrot.slane %v3169, 1
        %v3171 = vadd.f32 %v3169, %v3170
        %v3172 = vadd.f32 %v2883, %v2947
        %v3173 = vsel %vm2470, %v3011, 0.0
        %v3174 = vadd.f32 %v3172, %v3173
        %v3175 = vrot.slane %v3174, 4
        %v3176 = vadd.f32 %v3174, %v3175
        %v3177 = vrot.slane %v3176, 2
        %v3178 = vadd.f32 %v3176, %v3177
        %v3179 = vrot.slane %v3178, 1
        %v3180 = vadd.f32 %v3178, %v3179
        %v3181 = vadd.f32 %v2885, %v2949
        %v3182 = vsel %vm2470, %v3013, 0.0
        %v3183 = vadd.f32 %v3181, %v3182
        %v3184 = vrot.slane %v3183, 4
        %v3185 = vadd.f32 %v3183, %v3184
        %v3186 = vrot.slane %v3185, 2
        %v3187 = vadd.f32 %v3185, %v3186
        %v3188 = vrot.slane %v3187, 1
        %v3189 = vadd.f32 %v3187, %v3188
        %v3190 = vadd.f32 %v2887, %v2951
        %v3191 = vsel %vm2470, %v3015, 0.0
        %v3192 = vadd.f32 %v3190, %v3191
        %v3193 = vrot.slane %v3192, 4
        %v3194 = vadd.f32 %v3192, %v3193
        %v3195 = vrot.slane %v3194, 2
        %v3196 = vadd.f32 %v3194, %v3195
        %v3197 = vrot.slane %v3196, 1
        %v3198 = vadd.f32 %v3196, %v3197
        %v3199 = vadd.f32 %v2889, %v2953
        %v3200 = vsel %vm2470, %v3017, 0.0
        %v3201 = vadd.f32 %v3199, %v3200
        %v3202 = vrot.slane %v3201, 4
        %v3203 = vadd.f32 %v3201, %v3202
        %v3204 = vrot.slane %v3203, 2
        %v3205 = vadd.f32 %v3203, %v3204
        %v3206 = vrot.slane %v3205, 1
        %v3207 = vadd.f32 %v3205, %v3206
        %v3208 = vadd.f32 %v2891, %v2955
        %v3209 = vsel %vm2470, %v3019, 0.0
        %v3210 = vadd.f32 %v3208, %v3209
        %v3211 = vrot.slane %v3210, 4
        %v3212 = vadd.f32 %v3210, %v3211
        %v3213 = vrot.slane %v3212, 2
        %v3214 = vadd.f32 %v3212, %v3213
        %v3215 = vrot.slane %v3214, 1
        %v3216 = vadd.f32 %v3214, %v3215
        %v3217 = vadd.f32 %v2893, %v2957
        %v3218 = vsel %vm2470, %v3021, 0.0
        %v3219 = vadd.f32 %v3217, %v3218
        %v3220 = vrot.slane %v3219, 4
        %v3221 = vadd.f32 %v3219, %v3220
        %v3222 = vrot.slane %v3221, 2
        %v3223 = vadd.f32 %v3221, %v3222
        %v3224 = vrot.slane %v3223, 1
        %v3225 = vadd.f32 %v3223, %v3224
        %v3226 = vadd.f32 %v2895, %v2959
        %v3227 = vsel %vm2470, %v3023, 0.0
        %v3228 = vadd.f32 %v3226, %v3227
        %v3229 = vrot.slane %v3228, 4
        %v3230 = vadd.f32 %v3228, %v3229
        %v3231 = vrot.slane %v3230, 2
        %v3232 = vadd.f32 %v3230, %v3231
        %v3233 = vrot.slane %v3232, 1
        %v3234 = vadd.f32 %v3232, %v3233
        %v3235 = vadd.f32 %v2897, %v2961
        %v3236 = vsel %vm2470, %v3025, 0.0
        %v3237 = vadd.f32 %v3235, %v3236
        %v3238 = vrot.slane %v3237, 4
        %v3239 = vadd.f32 %v3237, %v3238
        %v3240 = vrot.slane %v3239, 2
        %v3241 = vadd.f32 %v3239, %v3240
        %v3242 = vrot.slane %v3241, 1
        %v3243 = vadd.f32 %v3241, %v3242
        %v3244 = vadd.f32 %v2899, %v2963
        %v3245 = vsel %vm2470, %v3027, 0.0
        %v3246 = vadd.f32 %v3244, %v3245
        %v3247 = vrot.slane %v3246, 4
        %v3248 = vadd.f32 %v3246, %v3247
        %v3249 = vrot.slane %v3248, 2
        %v3250 = vadd.f32 %v3248, %v3249
        %v3251 = vrot.slane %v3250, 1
        %v3252 = vadd.f32 %v3250, %v3251
        %v3253 = vadd.f32 %v2901, %v2965
        %v3254 = vsel %vm2470, %v3029, 0.0
        %v3255 = vadd.f32 %v3253, %v3254
        %v3256 = vrot.slane %v3255, 4
        %v3257 = vadd.f32 %v3255, %v3256
        %v3258 = vrot.slane %v3257, 2
        %v3259 = vadd.f32 %v3257, %v3258
        %v3260 = vrot.slane %v3259, 1
        %v3261 = vadd.f32 %v3259, %v3260
        %v3262 = vadd.f32 %v2903, %v2967
        %v3263 = vsel %vm2470, %v3031, 0.0
        %v3264 = vadd.f32 %v3262, %v3263
        %v3265 = vrot.slane %v3264, 4
        %v3266 = vadd.f32 %v3264, %v3265
        %v3267 = vrot.slane %v3266, 2
        %v3268 = vadd.f32 %v3266, %v3267
        %v3269 = vrot.slane %v3268, 1
        %v3270 = vadd.f32 %v3268, %v3269
        %v3271 = vadd.f32 %v2905, %v2969
        %v3272 = vsel %vm2470, %v3033, 0.0
        %v3273 = vadd.f32 %v3271, %v3272
        %v3274 = vrot.slane %v3273, 4
        %v3275 = vadd.f32 %v3273, %v3274
        %v3276 = vrot.slane %v3275, 2
        %v3277 = vadd.f32 %v3275, %v3276
        %v3278 = vrot.slane %v3277, 1
        %v3279 = vadd.f32 %v3277, %v3278
        %v3280 = vadd.f32 %v2907, %v2971
        %v3281 = vsel %vm2470, %v3035, 0.0
        %v3282 = vadd.f32 %v3280, %v3281
        %v3283 = vrot.slane %v3282, 4
        %v3284 = vadd.f32 %v3282, %v3283
        %v3285 = vrot.slane %v3284, 2
        %v3286 = vadd.f32 %v3284, %v3285
        %v3287 = vrot.slane %v3286, 1
        %v3288 = vadd.f32 %v3286, %v3287
        %v3289 = vadd.f32 %v2909, %v2973
        %v3290 = vsel %vm2470, %v3037, 0.0
        %v3291 = vadd.f32 %v3289, %v3290
        %v3292 = vrot.slane %v3291, 4
        %v3293 = vadd.f32 %v3291, %v3292
        %v3294 = vrot.slane %v3293, 2
        %v3295 = vadd.f32 %v3293, %v3294
        %v3296 = vrot.slane %v3295, 1
        %v3297 = vadd.f32 %v3295, %v3296
        %v3298 = vadd.f32 %v2911, %v2975
        %v3299 = vsel %vm2470, %v3039, 0.0
        %v3300 = vadd.f32 %v3298, %v3299
        %v3301 = vrot.slane %v3300, 4
        %v3302 = vadd.f32 %v3300, %v3301
        %v3303 = vrot.slane %v3302, 2
        %v3304 = vadd.f32 %v3302, %v3303
        %v3305 = vrot.slane %v3304, 1
        %v3306 = vadd.f32 %v3304, %v3305
        %v3307 = vadd.f32 %v2913, %v2977
        %v3308 = vsel %vm2470, %v3041, 0.0
        %v3309 = vadd.f32 %v3307, %v3308
        %v3310 = vrot.slane %v3309, 4
        %v3311 = vadd.f32 %v3309, %v3310
        %v3312 = vrot.slane %v3311, 2
        %v3313 = vadd.f32 %v3311, %v3312
        %v3314 = vrot.slane %v3313, 1
        %v3315 = vadd.f32 %v3313, %v3314
        %v3316 = vadd.f32 %v2915, %v2979
        %v3317 = vsel %vm2470, %v3043, 0.0
        %v3318 = vadd.f32 %v3316, %v3317
        %v3319 = vrot.slane %v3318, 4
        %v3320 = vadd.f32 %v3318, %v3319
        %v3321 = vrot.slane %v3320, 2
        %v3322 = vadd.f32 %v3320, %v3321
        %v3323 = vrot.slane %v3322, 1
        %v3324 = vadd.f32 %v3322, %v3323
        %v3325 = vadd.f32 %v2917, %v2981
        %v3326 = vsel %vm2470, %v3045, 0.0
        %v3327 = vadd.f32 %v3325, %v3326
        %v3328 = vrot.slane %v3327, 4
        %v3329 = vadd.f32 %v3327, %v3328
        %v3330 = vrot.slane %v3329, 2
        %v3331 = vadd.f32 %v3329, %v3330
        %v3332 = vrot.slane %v3331, 1
        %v3333 = vadd.f32 %v3331, %v3332
        %v3334 = vlog2.pop %v3054
        %v3335 = vmul.f32 %v3334, 0.6931472
        %v3336 = vlog2.pop %v3063
        %v3337 = vmul.f32 %v3336, 0.6931472
        %v3338 = vlog2.pop %v3072
        %v3339 = vmul.f32 %v3338, 0.6931472
        %v3340 = vlog2.pop %v3081
        %v3341 = vmul.f32 %v3340, 0.6931472
        %v3342 = vlog2.pop %v3090
        %v3343 = vmul.f32 %v3342, 0.6931472
        %v3344 = vlog2.pop %v3099
        %v3345 = vmul.f32 %v3344, 0.6931472
        %v3346 = vlog2.pop %v3108
        %v3347 = vmul.f32 %v3346, 0.6931472
        %v3348 = vlog2.pop %v3117
        %v3349 = vmul.f32 %v3348, 0.6931472
        %v3350 = vlog2.pop %v3126
        %v3351 = vmul.f32 %v3350, 0.6931472
        %v3352 = vlog2.pop %v3135
        %v3353 = vmul.f32 %v3352, 0.6931472
        %v3354 = vlog2.pop %v3144
        %v3355 = vmul.f32 %v3354, 0.6931472
        %v3356 = vlog2.pop %v3153
        %v3357 = vmul.f32 %v3356, 0.6931472
        %v3358 = vlog2.pop %v3162
        %v3359 = vmul.f32 %v3358, 0.6931472
        %v3360 = vlog2.pop %v3171
        %v3361 = vmul.f32 %v3360, 0.6931472
        %v3362 = vlog2.pop %v3180
        %v3363 = vmul.f32 %v3362, 0.6931472
        %v3364 = vlog2.pop %v3189
        %v3365 = vmul.f32 %v3364, 0.6931472
        %v3366 = vlog2.pop %v3198
        %v3367 = vmul.f32 %v3366, 0.6931472
        %v3368 = vlog2.pop %v3207
        %v3369 = vmul.f32 %v3368, 0.6931472
        %v3370 = vlog2.pop %v3216
        %v3371 = vmul.f32 %v3370, 0.6931472
        %v3372 = vlog2.pop %v3225
        %v3373 = vmul.f32 %v3372, 0.6931472
        %v3374 = vlog2.pop %v3234
        %v3375 = vmul.f32 %v3374, 0.6931472
        %v3376 = vlog2.pop %v3243
        %v3377 = vmul.f32 %v3376, 0.6931472
        %v3378 = vlog2.pop %v3252
        %v3379 = vmul.f32 %v3378, 0.6931472
        %v3380 = vlog2.pop %v3261
        %v3381 = vmul.f32 %v3380, 0.6931472
        %v3382 = vlog2.pop %v3270
        %v3383 = vmul.f32 %v3382, 0.6931472
        %v3384 = vlog2.pop %v3279
        %v3385 = vmul.f32 %v3384, 0.6931472
        %v3386 = vlog2.pop %v3288
        %v3387 = vmul.f32 %v3386, 0.6931472
        %v3388 = vlog2.pop %v3297
        %v3389 = vmul.f32 %v3388, 0.6931472
        %v3390 = vlog2.pop %v3306
        %v3391 = vmul.f32 %v3390, 0.6931472
        %v3392 = vlog2.pop %v3315
        %v3393 = vmul.f32 %v3392, 0.6931472
        %v3394 = vlog2.pop %v3324
        %v3395 = vmul.f32 %v3394, 0.6931472
        %v3396 = vlog2.pop %v3333
        %v3397 = vmul.f32 %v3396, 0.6931472
        %v3398 = vadd.f32 %v2478, %v3335
        %v3399 = vadd.f32 %v2487, %v3337
        %v3400 = vadd.f32 %v2496, %v3339
        %v3401 = vadd.f32 %v2505, %v3341
        %v3402 = vadd.f32 %v2514, %v3343
        %v3403 = vadd.f32 %v2523, %v3345
        %v3404 = vadd.f32 %v2532, %v3347
        %v3405 = vadd.f32 %v2541, %v3349
        %v3406 = vadd.f32 %v2550, %v3351
        %v3407 = vadd.f32 %v2559, %v3353
        %v3408 = vadd.f32 %v2568, %v3355
        %v3409 = vadd.f32 %v2577, %v3357
        %v3410 = vadd.f32 %v2586, %v3359
        %v3411 = vadd.f32 %v2595, %v3361
        %v3412 = vadd.f32 %v2604, %v3363
        %v3413 = vadd.f32 %v2613, %v3365
        %v3414 = vadd.f32 %v2622, %v3367
        %v3415 = vadd.f32 %v2631, %v3369
        %v3416 = vadd.f32 %v2640, %v3371
        %v3417 = vadd.f32 %v2649, %v3373
        %v3418 = vadd.f32 %v2658, %v3375
        %v3419 = vadd.f32 %v2667, %v3377
        %v3420 = vadd.f32 %v2676, %v3379
        %v3421 = vadd.f32 %v2685, %v3381
        %v3422 = vadd.f32 %v2694, %v3383
        %v3423 = vadd.f32 %v2703, %v3385
        %v3424 = vadd.f32 %v2712, %v3387
        %v3425 = vadd.f32 %v2721, %v3389
        %v3426 = vadd.f32 %v2730, %v3391
        %v3427 = vadd.f32 %v2739, %v3393
        %v3428 = vadd.f32 %v2748, %v3395
        %v3429 = vadd.f32 %v2757, %v3397
        %vm3430 = vcmp.gt.s32.totalorder %v969, 0
        %v3431 = vsel %vm3430, %v969, 0
        %vm3432 = vcmp.gt.s32.totalorder %v970, 0
        %v3433 = vsel %vm3432, %v970, 0
        %vm3434 = vcmp.gt.s32.totalorder %v971, 0
        %v3435 = vsel %vm3434, %v971, 0
        %vm3436 = vcmp.gt.s32.totalorder %v972, 0
        %v3437 = vsel %vm3436, %v972, 0
        %v3438 = vlaneseq
        %v3439 = vshrl.u32 %v3438, 7
        %v3440 = vadd.s32 %v3439, 8
        %v3441 = vadd.s32 %v3439, 16
        %v3442 = vperm.slane %v3431, 0
        %v3443 = vperm.slane %v3431, 1
        %v3444 = vperm.slane %v3431, 2
        %v3445 = vperm.slane %v3431, 3
        %v3446 = vperm.slane %v3431, 4
        %v3447 = vperm.slane %v3431, 5
        %v3448 = vperm.slane %v3431, 6
        %v3449 = vperm.slane %v3431, 7
        %v3450 = vperm.slane %v3433, 0
        %v3451 = vperm.slane %v3433, 1
        %v3452 = vperm.slane %v3433, 2
        %v3453 = vperm.slane %v3433, 3
        %v3454 = vperm.slane %v3433, 4
        %v3455 = vperm.slane %v3433, 5
        %v3456 = vperm.slane %v3433, 6
        %v3457 = vperm.slane %v3433, 7
        %v3458 = vperm.slane %v3435, 0
        %v3459 = vperm.slane %v3435, 1
        %v3460 = vperm.slane %v3435, 2
        %v3461 = vperm.slane %v3435, 3
        %v3462 = vperm.slane %v3435, 4
        %v3463 = vperm.slane %v3435, 5
        %v3464 = vperm.slane %v3435, 6
        %v3465 = vperm.slane %v3435, 7
        %v3466 = vperm.slane %v3437, 0
        %v3467 = vperm.slane %v3437, 1
        %v3468 = vperm.slane %v3437, 2
        %v3469 = vperm.slane %v3437, 3
        %v3470 = vperm.slane %v3437, 4
        %v3471 = vperm.slane %v3437, 5
        %v3472 = vperm.slane %v3437, 6
        %v3473 = vperm.slane %v3437, 7
        %vm3474 = vcmp.eq.s32.totalorder %v3439, %v3442
        %vm3475 = vcmp.eq.s32.totalorder %v3439, %v3443
        %vm3476 = vcmp.eq.s32.totalorder %v3439, %v3444
        %vm3477 = vcmp.eq.s32.totalorder %v3439, %v3445
        %vm3478 = vcmp.eq.s32.totalorder %v3439, %v3446
        %vm3479 = vcmp.eq.s32.totalorder %v3439, %v3447
        %vm3480 = vcmp.eq.s32.totalorder %v3439, %v3448
        %vm3481 = vcmp.eq.s32.totalorder %v3439, %v3449
        %vm3482 = vcmp.eq.s32.totalorder %v3439, %v3450
        %vm3483 = vcmp.eq.s32.totalorder %v3439, %v3451
        %vm3484 = vcmp.eq.s32.totalorder %v3439, %v3452
        %vm3485 = vcmp.eq.s32.totalorder %v3439, %v3453
        %vm3486 = vcmp.eq.s32.totalorder %v3439, %v3454
        %vm3487 = vcmp.eq.s32.totalorder %v3439, %v3455
        %vm3488 = vcmp.eq.s32.totalorder %v3439, %v3456
        %vm3489 = vcmp.eq.s32.totalorder %v3439, %v3457
        %vm3490 = vcmp.eq.s32.totalorder %v3439, %v3458
        %vm3491 = vcmp.eq.s32.totalorder %v3439, %v3459
        %vm3492 = vcmp.eq.s32.totalorder %v3439, %v3460
        %vm3493 = vcmp.eq.s32.totalorder %v3439, %v3461
        %vm3494 = vcmp.eq.s32.totalorder %v3439, %v3462
        %vm3495 = vcmp.eq.s32.totalorder %v3439, %v3463
        %vm3496 = vcmp.eq.s32.totalorder %v3439, %v3464
        %vm3497 = vcmp.eq.s32.totalorder %v3439, %v3465
        %vm3498 = vcmp.eq.s32.totalorder %v3439, %v3466
        %vm3499 = vcmp.eq.s32.totalorder %v3439, %v3467
        %vm3500 = vcmp.eq.s32.totalorder %v3439, %v3468
        %vm3501 = vcmp.eq.s32.totalorder %v3439, %v3469
        %vm3502 = vcmp.eq.s32.totalorder %v3439, %v3470
        %vm3503 = vcmp.eq.s32.totalorder %v3439, %v3471
        %vm3504 = vcmp.eq.s32.totalorder %v3439, %v3472
        %vm3505 = vcmp.eq.s32.totalorder %v3439, %v3473
        %vm3506 = vcmp.eq.s32.totalorder %v3440, %v3442
        %vm3507 = vcmp.eq.s32.totalorder %v3440, %v3443
        %vm3508 = vcmp.eq.s32.totalorder %v3440, %v3444
        %vm3509 = vcmp.eq.s32.totalorder %v3440, %v3445
        %vm3510 = vcmp.eq.s32.totalorder %v3440, %v3446
        %vm3511 = vcmp.eq.s32.totalorder %v3440, %v3447
        %vm3512 = vcmp.eq.s32.totalorder %v3440, %v3448
        %vm3513 = vcmp.eq.s32.totalorder %v3440, %v3449
        %vm3514 = vcmp.eq.s32.totalorder %v3440, %v3450
        %vm3515 = vcmp.eq.s32.totalorder %v3440, %v3451
        %vm3516 = vcmp.eq.s32.totalorder %v3440, %v3452
        %vm3517 = vcmp.eq.s32.totalorder %v3440, %v3453
        %vm3518 = vcmp.eq.s32.totalorder %v3440, %v3454
        %vm3519 = vcmp.eq.s32.totalorder %v3440, %v3455
        %vm3520 = vcmp.eq.s32.totalorder %v3440, %v3456
        %vm3521 = vcmp.eq.s32.totalorder %v3440, %v3457
        %vm3522 = vcmp.eq.s32.totalorder %v3440, %v3458
        %vm3523 = vcmp.eq.s32.totalorder %v3440, %v3459
        %vm3524 = vcmp.eq.s32.totalorder %v3440, %v3460
        %vm3525 = vcmp.eq.s32.totalorder %v3440, %v3461
        %vm3526 = vcmp.eq.s32.totalorder %v3440, %v3462
        %vm3527 = vcmp.eq.s32.totalorder %v3440, %v3463
        %vm3528 = vcmp.eq.s32.totalorder %v3440, %v3464
        %vm3529 = vcmp.eq.s32.totalorder %v3440, %v3465
        %vm3530 = vcmp.eq.s32.totalorder %v3440, %v3466
        %vm3531 = vcmp.eq.s32.totalorder %v3440, %v3467
        %vm3532 = vcmp.eq.s32.totalorder %v3440, %v3468
        %vm3533 = vcmp.eq.s32.totalorder %v3440, %v3469
        %vm3534 = vcmp.eq.s32.totalorder %v3440, %v3470
        %vm3535 = vcmp.eq.s32.totalorder %v3440, %v3471
        %vm3536 = vcmp.eq.s32.totalorder %v3440, %v3472
        %vm3537 = vcmp.eq.s32.totalorder %v3440, %v3473
        %vm3538 = vcmp.eq.s32.totalorder %v3441, %v3442
        %vm3539 = vcmp.eq.s32.totalorder %v3441, %v3443
        %vm3540 = vcmp.eq.s32.totalorder %v3441, %v3444
        %vm3541 = vcmp.eq.s32.totalorder %v3441, %v3445
        %vm3542 = vcmp.eq.s32.totalorder %v3441, %v3446
        %vm3543 = vcmp.eq.s32.totalorder %v3441, %v3447
        %vm3544 = vcmp.eq.s32.totalorder %v3441, %v3448
        %vm3545 = vcmp.eq.s32.totalorder %v3441, %v3449
        %vm3546 = vcmp.eq.s32.totalorder %v3441, %v3450
        %vm3547 = vcmp.eq.s32.totalorder %v3441, %v3451
        %vm3548 = vcmp.eq.s32.totalorder %v3441, %v3452
        %vm3549 = vcmp.eq.s32.totalorder %v3441, %v3453
        %vm3550 = vcmp.eq.s32.totalorder %v3441, %v3454
        %vm3551 = vcmp.eq.s32.totalorder %v3441, %v3455
        %vm3552 = vcmp.eq.s32.totalorder %v3441, %v3456
        %vm3553 = vcmp.eq.s32.totalorder %v3441, %v3457
        %vm3554 = vcmp.eq.s32.totalorder %v3441, %v3458
        %vm3555 = vcmp.eq.s32.totalorder %v3441, %v3459
        %vm3556 = vcmp.eq.s32.totalorder %v3441, %v3460
        %vm3557 = vcmp.eq.s32.totalorder %v3441, %v3461
        %vm3558 = vcmp.eq.s32.totalorder %v3441, %v3462
        %vm3559 = vcmp.eq.s32.totalorder %v3441, %v3463
        %vm3560 = vcmp.eq.s32.totalorder %v3441, %v3464
        %vm3561 = vcmp.eq.s32.totalorder %v3441, %v3465
        %vm3562 = vcmp.eq.s32.totalorder %v3441, %v3466
        %vm3563 = vcmp.eq.s32.totalorder %v3441, %v3467
        %vm3564 = vcmp.eq.s32.totalorder %v3441, %v3468
        %vm3565 = vcmp.eq.s32.totalorder %v3441, %v3469
        %vm3566 = vcmp.eq.s32.totalorder %v3441, %v3470
        %vm3567 = vcmp.eq.s32.totalorder %v3441, %v3471
        %vm3568 = vcmp.eq.s32.totalorder %v3441, %v3472
        %vm3569 = vcmp.eq.s32.totalorder %v3441, %v3473
        %v3570 = vsel %vm3474, %v2373, 0.0
        %v3571 = vsel %vm3475, %v2374, 0.0
        %v3572 = vsel %vm3476, %v2375, 0.0
        %v3573 = vsel %vm3477, %v2376, 0.0
        %v3574 = vsel %vm3478, %v2377, 0.0
        %v3575 = vsel %vm3479, %v2378, 0.0
        %v3576 = vsel %vm3480, %v2379, 0.0
        %v3577 = vsel %vm3481, %v2380, 0.0
        %v3578 = vsel %vm3482, %v2381, 0.0
        %v3579 = vsel %vm3483, %v2382, 0.0
        %v3580 = vsel %vm3484, %v2383, 0.0
        %v3581 = vsel %vm3485, %v2384, 0.0
        %v3582 = vsel %vm3486, %v2385, 0.0
        %v3583 = vsel %vm3487, %v2386, 0.0
        %v3584 = vsel %vm3488, %v2387, 0.0
        %v3585 = vsel %vm3489, %v2388, 0.0
        %v3586 = vsel %vm3490, %v2389, 0.0
        %v3587 = vsel %vm3491, %v2390, 0.0
        %v3588 = vsel %vm3492, %v2391, 0.0
        %v3589 = vsel %vm3493, %v2392, 0.0
        %v3590 = vsel %vm3494, %v2393, 0.0
        %v3591 = vsel %vm3495, %v2394, 0.0
        %v3592 = vsel %vm3496, %v2395, 0.0
        %v3593 = vsel %vm3497, %v2396, 0.0
        %v3594 = vsel %vm3498, %v2397, 0.0
        %v3595 = vsel %vm3499, %v2398, 0.0
        %v3596 = vsel %vm3500, %v2399, 0.0
        %v3597 = vsel %vm3501, %v2400, 0.0
        %v3598 = vsel %vm3502, %v2401, 0.0
        %v3599 = vsel %vm3503, %v2402, 0.0
        %v3600 = vsel %vm3504, %v2403, 0.0
        %v3601 = vsel %vm3505, %v2404, 0.0
        %v3602 = vsel %vm3506, %v2405, 0.0
        %v3603 = vsel %vm3507, %v2406, 0.0
        %v3604 = vsel %vm3508, %v2407, 0.0
        %v3605 = vsel %vm3509, %v2408, 0.0
        %v3606 = vsel %vm3510, %v2409, 0.0
        %v3607 = vsel %vm3511, %v2410, 0.0
        %v3608 = vsel %vm3512, %v2411, 0.0
        %v3609 = vsel %vm3513, %v2412, 0.0
        %v3610 = vsel %vm3514, %v2413, 0.0
        %v3611 = vsel %vm3515, %v2414, 0.0
        %v3612 = vsel %vm3516, %v2415, 0.0
        %v3613 = vsel %vm3517, %v2416, 0.0
        %v3614 = vsel %vm3518, %v2417, 0.0
        %v3615 = vsel %vm3519, %v2418, 0.0
        %v3616 = vsel %vm3520, %v2419, 0.0
        %v3617 = vsel %vm3521, %v2420, 0.0
        %v3618 = vsel %vm3522, %v2421, 0.0
        %v3619 = vsel %vm3523, %v2422, 0.0
        %v3620 = vsel %vm3524, %v2423, 0.0
        %v3621 = vsel %vm3525, %v2424, 0.0
        %v3622 = vsel %vm3526, %v2425, 0.0
        %v3623 = vsel %vm3527, %v2426, 0.0
        %v3624 = vsel %vm3528, %v2427, 0.0
        %v3625 = vsel %vm3529, %v2428, 0.0
        %v3626 = vsel %vm3530, %v2429, 0.0
        %v3627 = vsel %vm3531, %v2430, 0.0
        %v3628 = vsel %vm3532, %v2431, 0.0
        %v3629 = vsel %vm3533, %v2432, 0.0
        %v3630 = vsel %vm3534, %v2433, 0.0
        %v3631 = vsel %vm3535, %v2434, 0.0
        %v3632 = vsel %vm3536, %v2435, 0.0
        %v3633 = vsel %vm3537, %v2436, 0.0
        %v3634 = vsel %vm3538, %v2437, 0.0
        %v3635 = vsel %vm3539, %v2438, 0.0
        %v3636 = vsel %vm3540, %v2439, 0.0
        %v3637 = vsel %vm3541, %v2440, 0.0
        %v3638 = vsel %vm3542, %v2441, 0.0
        %v3639 = vsel %vm3543, %v2442, 0.0
        %v3640 = vsel %vm3544, %v2443, 0.0
        %v3641 = vsel %vm3545, %v2444, 0.0
        %v3642 = vsel %vm3546, %v2445, 0.0
        %v3643 = vsel %vm3547, %v2446, 0.0
        %v3644 = vsel %vm3548, %v2447, 0.0
        %v3645 = vsel %vm3549, %v2448, 0.0
        %v3646 = vsel %vm3550, %v2449, 0.0
        %v3647 = vsel %vm3551, %v2450, 0.0
        %v3648 = vsel %vm3552, %v2451, 0.0
        %v3649 = vsel %vm3553, %v2452, 0.0
        %v3650 = vsel %vm3554, %v2453, 0.0
        %v3651 = vsel %vm3555, %v2454, 0.0
        %v3652 = vsel %vm3556, %v2455, 0.0
        %v3653 = vsel %vm3557, %v2456, 0.0
        %v3654 = vsel %vm3558, %v2457, 0.0
        %v3655 = vsel %vm3559, %v2458, 0.0
        %v3656 = vsel %vm3560, %v2459, 0.0
        %v3657 = vsel %vm3561, %v2460, 0.0
        %v3658 = vsel %vm3562, %v2461, 0.0
        %v3659 = vsel %vm3563, %v2462, 0.0
        %v3660 = vsel %vm3564, %v2463, 0.0
        %v3661 = vsel %vm3565, %v2464, 0.0
        %v3662 = vsel %vm3566, %v2465, 0.0
        %v3663 = vsel %vm3567, %v2466, 0.0
        %v3664 = vsel %vm3568, %v2467, 0.0
        %v3665 = vsel %vm3569, %v2468, 0.0
        %v3666 = vadd.f32 %v3570, %v3602
        %v3667 = vsel %vm2470, %v3634, 0.0
        %v3668 = vadd.f32 %v3666, %v3667
        %v3669 = vrot.slane %v3668, 4
        %v3670 = vadd.f32 %v3668, %v3669
        %v3671 = vrot.slane %v3670, 2
        %v3672 = vadd.f32 %v3670, %v3671
        %v3673 = vrot.slane %v3672, 1
        %v3674 = vadd.f32 %v3672, %v3673
        %v3675 = vadd.f32 %v3571, %v3603
        %v3676 = vsel %vm2470, %v3635, 0.0
        %v3677 = vadd.f32 %v3675, %v3676
        %v3678 = vrot.slane %v3677, 4
        %v3679 = vadd.f32 %v3677, %v3678
        %v3680 = vrot.slane %v3679, 2
        %v3681 = vadd.f32 %v3679, %v3680
        %v3682 = vrot.slane %v3681, 1
        %v3683 = vadd.f32 %v3681, %v3682
        %v3684 = vadd.f32 %v3572, %v3604
        %v3685 = vsel %vm2470, %v3636, 0.0
        %v3686 = vadd.f32 %v3684, %v3685
        %v3687 = vrot.slane %v3686, 4
        %v3688 = vadd.f32 %v3686, %v3687
        %v3689 = vrot.slane %v3688, 2
        %v3690 = vadd.f32 %v3688, %v3689
        %v3691 = vrot.slane %v3690, 1
        %v3692 = vadd.f32 %v3690, %v3691
        %v3693 = vadd.f32 %v3573, %v3605
        %v3694 = vsel %vm2470, %v3637, 0.0
        %v3695 = vadd.f32 %v3693, %v3694
        %v3696 = vrot.slane %v3695, 4
        %v3697 = vadd.f32 %v3695, %v3696
        %v3698 = vrot.slane %v3697, 2
        %v3699 = vadd.f32 %v3697, %v3698
        %v3700 = vrot.slane %v3699, 1
        %v3701 = vadd.f32 %v3699, %v3700
        %v3702 = vadd.f32 %v3574, %v3606
        %v3703 = vsel %vm2470, %v3638, 0.0
        %v3704 = vadd.f32 %v3702, %v3703
        %v3705 = vrot.slane %v3704, 4
        %v3706 = vadd.f32 %v3704, %v3705
        %v3707 = vrot.slane %v3706, 2
        %v3708 = vadd.f32 %v3706, %v3707
        %v3709 = vrot.slane %v3708, 1
        %v3710 = vadd.f32 %v3708, %v3709
        %v3711 = vadd.f32 %v3575, %v3607
        %v3712 = vsel %vm2470, %v3639, 0.0
        %v3713 = vadd.f32 %v3711, %v3712
        %v3714 = vrot.slane %v3713, 4
        %v3715 = vadd.f32 %v3713, %v3714
        %v3716 = vrot.slane %v3715, 2
        %v3717 = vadd.f32 %v3715, %v3716
        %v3718 = vrot.slane %v3717, 1
        %v3719 = vadd.f32 %v3717, %v3718
        %v3720 = vadd.f32 %v3576, %v3608
        %v3721 = vsel %vm2470, %v3640, 0.0
        %v3722 = vadd.f32 %v3720, %v3721
        %v3723 = vrot.slane %v3722, 4
        %v3724 = vadd.f32 %v3722, %v3723
        %v3725 = vrot.slane %v3724, 2
        %v3726 = vadd.f32 %v3724, %v3725
        %v3727 = vrot.slane %v3726, 1
        %v3728 = vadd.f32 %v3726, %v3727
        %v3729 = vadd.f32 %v3577, %v3609
        %v3730 = vsel %vm2470, %v3641, 0.0
        %v3731 = vadd.f32 %v3729, %v3730
        %v3732 = vrot.slane %v3731, 4
        %v3733 = vadd.f32 %v3731, %v3732
        %v3734 = vrot.slane %v3733, 2
        %v3735 = vadd.f32 %v3733, %v3734
        %v3736 = vrot.slane %v3735, 1
        %v3737 = vadd.f32 %v3735, %v3736
        %v3738 = vadd.f32 %v3578, %v3610
        %v3739 = vsel %vm2470, %v3642, 0.0
        %v3740 = vadd.f32 %v3738, %v3739
        %v3741 = vrot.slane %v3740, 4
        %v3742 = vadd.f32 %v3740, %v3741
        %v3743 = vrot.slane %v3742, 2
        %v3744 = vadd.f32 %v3742, %v3743
        %v3745 = vrot.slane %v3744, 1
        %v3746 = vadd.f32 %v3744, %v3745
        %v3747 = vadd.f32 %v3579, %v3611
        %v3748 = vsel %vm2470, %v3643, 0.0
        %v3749 = vadd.f32 %v3747, %v3748
        %v3750 = vrot.slane %v3749, 4
        %v3751 = vadd.f32 %v3749, %v3750
        %v3752 = vrot.slane %v3751, 2
        %v3753 = vadd.f32 %v3751, %v3752
        %v3754 = vrot.slane %v3753, 1
        %v3755 = vadd.f32 %v3753, %v3754
        %v3756 = vadd.f32 %v3580, %v3612
        %v3757 = vsel %vm2470, %v3644, 0.0
        %v3758 = vadd.f32 %v3756, %v3757
        %v3759 = vrot.slane %v3758, 4
        %v3760 = vadd.f32 %v3758, %v3759
        %v3761 = vrot.slane %v3760, 2
        %v3762 = vadd.f32 %v3760, %v3761
        %v3763 = vrot.slane %v3762, 1
        %v3764 = vadd.f32 %v3762, %v3763
        %v3765 = vadd.f32 %v3581, %v3613
        %v3766 = vsel %vm2470, %v3645, 0.0
        %v3767 = vadd.f32 %v3765, %v3766
        %v3768 = vrot.slane %v3767, 4
        %v3769 = vadd.f32 %v3767, %v3768
        %v3770 = vrot.slane %v3769, 2
        %v3771 = vadd.f32 %v3769, %v3770
        %v3772 = vrot.slane %v3771, 1
        %v3773 = vadd.f32 %v3771, %v3772
        %v3774 = vadd.f32 %v3582, %v3614
        %v3775 = vsel %vm2470, %v3646, 0.0
        %v3776 = vadd.f32 %v3774, %v3775
        %v3777 = vrot.slane %v3776, 4
        %v3778 = vadd.f32 %v3776, %v3777
        %v3779 = vrot.slane %v3778, 2
        %v3780 = vadd.f32 %v3778, %v3779
        %v3781 = vrot.slane %v3780, 1
        %v3782 = vadd.f32 %v3780, %v3781
        %v3783 = vadd.f32 %v3583, %v3615
        %v3784 = vsel %vm2470, %v3647, 0.0
        %v3785 = vadd.f32 %v3783, %v3784
        %v3786 = vrot.slane %v3785, 4
        %v3787 = vadd.f32 %v3785, %v3786
        %v3788 = vrot.slane %v3787, 2
        %v3789 = vadd.f32 %v3787, %v3788
        %v3790 = vrot.slane %v3789, 1
        %v3791 = vadd.f32 %v3789, %v3790
        %v3792 = vadd.f32 %v3584, %v3616
        %v3793 = vsel %vm2470, %v3648, 0.0
        %v3794 = vadd.f32 %v3792, %v3793
        %v3795 = vrot.slane %v3794, 4
        %v3796 = vadd.f32 %v3794, %v3795
        %v3797 = vrot.slane %v3796, 2
        %v3798 = vadd.f32 %v3796, %v3797
        %v3799 = vrot.slane %v3798, 1
        %v3800 = vadd.f32 %v3798, %v3799
        %v3801 = vadd.f32 %v3585, %v3617
        %v3802 = vsel %vm2470, %v3649, 0.0
        %v3803 = vadd.f32 %v3801, %v3802
        %v3804 = vrot.slane %v3803, 4
        %v3805 = vadd.f32 %v3803, %v3804
        %v3806 = vrot.slane %v3805, 2
        %v3807 = vadd.f32 %v3805, %v3806
        %v3808 = vrot.slane %v3807, 1
        %v3809 = vadd.f32 %v3807, %v3808
        %v3810 = vadd.f32 %v3586, %v3618
        %v3811 = vsel %vm2470, %v3650, 0.0
        %v3812 = vadd.f32 %v3810, %v3811
        %v3813 = vrot.slane %v3812, 4
        %v3814 = vadd.f32 %v3812, %v3813
        %v3815 = vrot.slane %v3814, 2
        %v3816 = vadd.f32 %v3814, %v3815
        %v3817 = vrot.slane %v3816, 1
        %v3818 = vadd.f32 %v3816, %v3817
        %v3819 = vadd.f32 %v3587, %v3619
        %v3820 = vsel %vm2470, %v3651, 0.0
        %v3821 = vadd.f32 %v3819, %v3820
        %v3822 = vrot.slane %v3821, 4
        %v3823 = vadd.f32 %v3821, %v3822
        %v3824 = vrot.slane %v3823, 2
        %v3825 = vadd.f32 %v3823, %v3824
        %v3826 = vrot.slane %v3825, 1
        %v3827 = vadd.f32 %v3825, %v3826
        %v3828 = vadd.f32 %v3588, %v3620
        %v3829 = vsel %vm2470, %v3652, 0.0
        %v3830 = vadd.f32 %v3828, %v3829
        %v3831 = vrot.slane %v3830, 4
        %v3832 = vadd.f32 %v3830, %v3831
        %v3833 = vrot.slane %v3832, 2
        %v3834 = vadd.f32 %v3832, %v3833
        %v3835 = vrot.slane %v3834, 1
        %v3836 = vadd.f32 %v3834, %v3835
        %v3837 = vadd.f32 %v3589, %v3621
        %v3838 = vsel %vm2470, %v3653, 0.0
        %v3839 = vadd.f32 %v3837, %v3838
        %v3840 = vrot.slane %v3839, 4
        %v3841 = vadd.f32 %v3839, %v3840
        %v3842 = vrot.slane %v3841, 2
        %v3843 = vadd.f32 %v3841, %v3842
        %v3844 = vrot.slane %v3843, 1
        %v3845 = vadd.f32 %v3843, %v3844
        %v3846 = vadd.f32 %v3590, %v3622
        %v3847 = vsel %vm2470, %v3654, 0.0
        %v3848 = vadd.f32 %v3846, %v3847
        %v3849 = vrot.slane %v3848, 4
        %v3850 = vadd.f32 %v3848, %v3849
        %v3851 = vrot.slane %v3850, 2
        %v3852 = vadd.f32 %v3850, %v3851
        %v3853 = vrot.slane %v3852, 1
        %v3854 = vadd.f32 %v3852, %v3853
        %v3855 = vadd.f32 %v3591, %v3623
        %v3856 = vsel %vm2470, %v3655, 0.0
        %v3857 = vadd.f32 %v3855, %v3856
        %v3858 = vrot.slane %v3857, 4
        %v3859 = vadd.f32 %v3857, %v3858
        %v3860 = vrot.slane %v3859, 2
        %v3861 = vadd.f32 %v3859, %v3860
        %v3862 = vrot.slane %v3861, 1
        %v3863 = vadd.f32 %v3861, %v3862
        %v3864 = vadd.f32 %v3592, %v3624
        %v3865 = vsel %vm2470, %v3656, 0.0
        %v3866 = vadd.f32 %v3864, %v3865
        %v3867 = vrot.slane %v3866, 4
        %v3868 = vadd.f32 %v3866, %v3867
        %v3869 = vrot.slane %v3868, 2
        %v3870 = vadd.f32 %v3868, %v3869
        %v3871 = vrot.slane %v3870, 1
        %v3872 = vadd.f32 %v3870, %v3871
        %v3873 = vadd.f32 %v3593, %v3625
        %v3874 = vsel %vm2470, %v3657, 0.0
        %v3875 = vadd.f32 %v3873, %v3874
        %v3876 = vrot.slane %v3875, 4
        %v3877 = vadd.f32 %v3875, %v3876
        %v3878 = vrot.slane %v3877, 2
        %v3879 = vadd.f32 %v3877, %v3878
        %v3880 = vrot.slane %v3879, 1
        %v3881 = vadd.f32 %v3879, %v3880
        %v3882 = vadd.f32 %v3594, %v3626
        %v3883 = vsel %vm2470, %v3658, 0.0
        %v3884 = vadd.f32 %v3882, %v3883
        %v3885 = vrot.slane %v3884, 4
        %v3886 = vadd.f32 %v3884, %v3885
        %v3887 = vrot.slane %v3886, 2
        %v3888 = vadd.f32 %v3886, %v3887
        %v3889 = vrot.slane %v3888, 1
        %v3890 = vadd.f32 %v3888, %v3889
        %v3891 = vadd.f32 %v3595, %v3627
        %v3892 = vsel %vm2470, %v3659, 0.0
        %v3893 = vadd.f32 %v3891, %v3892
        %v3894 = vrot.slane %v3893, 4
        %v3895 = vadd.f32 %v3893, %v3894
        %v3896 = vrot.slane %v3895, 2
        %v3897 = vadd.f32 %v3895, %v3896
        %v3898 = vrot.slane %v3897, 1
        %v3899 = vadd.f32 %v3897, %v3898
        %v3900 = vadd.f32 %v3596, %v3628
        %v3901 = vsel %vm2470, %v3660, 0.0
        %v3902 = vadd.f32 %v3900, %v3901
        %v3903 = vrot.slane %v3902, 4
        %v3904 = vadd.f32 %v3902, %v3903
        %v3905 = vrot.slane %v3904, 2
        %v3906 = vadd.f32 %v3904, %v3905
        %v3907 = vrot.slane %v3906, 1
        %v3908 = vadd.f32 %v3906, %v3907
        %v3909 = vadd.f32 %v3597, %v3629
        %v3910 = vsel %vm2470, %v3661, 0.0
        %v3911 = vadd.f32 %v3909, %v3910
        %v3912 = vrot.slane %v3911, 4
        %v3913 = vadd.f32 %v3911, %v3912
        %v3914 = vrot.slane %v3913, 2
        %v3915 = vadd.f32 %v3913, %v3914
        %v3916 = vrot.slane %v3915, 1
        %v3917 = vadd.f32 %v3915, %v3916
        %v3918 = vadd.f32 %v3598, %v3630
        %v3919 = vsel %vm2470, %v3662, 0.0
        %v3920 = vadd.f32 %v3918, %v3919
        %v3921 = vrot.slane %v3920, 4
        %v3922 = vadd.f32 %v3920, %v3921
        %v3923 = vrot.slane %v3922, 2
        %v3924 = vadd.f32 %v3922, %v3923
        %v3925 = vrot.slane %v3924, 1
        %v3926 = vadd.f32 %v3924, %v3925
        %v3927 = vadd.f32 %v3599, %v3631
        %v3928 = vsel %vm2470, %v3663, 0.0
        %v3929 = vadd.f32 %v3927, %v3928
        %v3930 = vrot.slane %v3929, 4
        %v3931 = vadd.f32 %v3929, %v3930
        %v3932 = vrot.slane %v3931, 2
        %v3933 = vadd.f32 %v3931, %v3932
        %v3934 = vrot.slane %v3933, 1
        %v3935 = vadd.f32 %v3933, %v3934
        %v3936 = vadd.f32 %v3600, %v3632
        %v3937 = vsel %vm2470, %v3664, 0.0
        %v3938 = vadd.f32 %v3936, %v3937
        %v3939 = vrot.slane %v3938, 4
        %v3940 = vadd.f32 %v3938, %v3939
        %v3941 = vrot.slane %v3940, 2
        %v3942 = vadd.f32 %v3940, %v3941
        %v3943 = vrot.slane %v3942, 1
        %v3944 = vadd.f32 %v3942, %v3943
        %v3945 = vadd.f32 %v3601, %v3633
        %v3946 = vsel %vm2470, %v3665, 0.0
        %v3947 = vadd.f32 %v3945, %v3946
        %v3948 = vrot.slane %v3947, 4
        %v3949 = vadd.f32 %v3947, %v3948
        %v3950 = vrot.slane %v3949, 2
        %v3951 = vadd.f32 %v3949, %v3950
        %v3952 = vrot.slane %v3951, 1
        %v3953 = vadd.f32 %v3951, %v3952
        %v3954 = vsub.f32 %v3398, %v3674
        %v3955 = vsub.f32 %v3399, %v3683
        %v3956 = vsub.f32 %v3400, %v3692
        %v3957 = vsub.f32 %v3401, %v3701
        %v3958 = vsub.f32 %v3402, %v3710
        %v3959 = vsub.f32 %v3403, %v3719
        %v3960 = vsub.f32 %v3404, %v3728
        %v3961 = vsub.f32 %v3405, %v3737
        %v3962 = vsub.f32 %v3406, %v3746
        %v3963 = vsub.f32 %v3407, %v3755
        %v3964 = vsub.f32 %v3408, %v3764
        %v3965 = vsub.f32 %v3409, %v3773
        %v3966 = vsub.f32 %v3410, %v3782
        %v3967 = vsub.f32 %v3411, %v3791
        %v3968 = vsub.f32 %v3412, %v3800
        %v3969 = vsub.f32 %v3413, %v3809
        %v3970 = vsub.f32 %v3414, %v3818
        %v3971 = vsub.f32 %v3415, %v3827
        %v3972 = vsub.f32 %v3416, %v3836
        %v3973 = vsub.f32 %v3417, %v3845
        %v3974 = vsub.f32 %v3418, %v3854
        %v3975 = vsub.f32 %v3419, %v3863
        %v3976 = vsub.f32 %v3420, %v3872
        %v3977 = vsub.f32 %v3421, %v3881
        %v3978 = vsub.f32 %v3422, %v3890
        %v3979 = vsub.f32 %v3423, %v3899
        %v3980 = vsub.f32 %v3424, %v3908
        %v3981 = vsub.f32 %v3425, %v3917
        %v3982 = vsub.f32 %v3426, %v3926
        %v3983 = vsub.f32 %v3427, %v3935
        %v3984 = vsub.f32 %v3428, %v3944
        %v3985 = vsub.f32 %v3429, %v3953
        %v4018 = vrot.slane %v3955, 7
        %v4019 = vrot.slane %v3956, 6
        %v4020 = vrot.slane %v3957, 5
        %v4021 = vrot.slane %v3958, 4
        %v4022 = vrot.slane %v3959, 3
        %v4023 = vrot.slane %v3960, 2
        %v4024 = vrot.slane %v3961, 1
        %v4025 = vrot.slane %v3963, 7
        %v4026 = vrot.slane %v3964, 6
        %v4027 = vrot.slane %v3965, 5
        %v4028 = vrot.slane %v3966, 4
        %v4029 = vrot.slane %v3967, 3
        %v4030 = vrot.slane %v3968, 2
        %v4031 = vrot.slane %v3969, 1
        %v4032 = vrot.slane %v3971, 7
        %v4033 = vrot.slane %v3972, 6
        %v4034 = vrot.slane %v3973, 5
        %v4035 = vrot.slane %v3974, 4
        %v4036 = vrot.slane %v3975, 3
        %v4037 = vrot.slane %v3976, 2
        %v4038 = vrot.slane %v3977, 1
        %v4039 = vrot.slane %v3979, 7
        %v4040 = vrot.slane %v3980, 6
        %v4041 = vrot.slane %v3981, 5
        %v4042 = vrot.slane %v3982, 4
        %v4043 = vrot.slane %v3983, 3
        %v4044 = vrot.slane %v3984, 2
        %v4045 = vrot.slane %v3985, 1
        %v4046 = vsel %vm896, %v3954, %v4018
        %v4047 = vsel %vm1506, %v4019, %v4020
        %v4048 = vsel %vm1508, %v4046, %v4047
        %v4049 = vsel %vm1510, %v4021, %v4022
        %v4050 = vsel %vm1512, %v4023, %v4024
        %v4051 = vsel %vm1514, %v4049, %v4050
        %v4052 = vsel %vm1220, %v4048, %v4051
        %v4053 = vsel %vm896, %v3962, %v4025
        %v4054 = vsel %vm1506, %v4026, %v4027
        %v4055 = vsel %vm1508, %v4053, %v4054
        %v4056 = vsel %vm1510, %v4028, %v4029
        %v4057 = vsel %vm1512, %v4030, %v4031
        %v4058 = vsel %vm1514, %v4056, %v4057
        %v4059 = vsel %vm1220, %v4055, %v4058
        %v4060 = vsel %vm896, %v3970, %v4032
        %v4061 = vsel %vm1506, %v4033, %v4034
        %v4062 = vsel %vm1508, %v4060, %v4061
        %v4063 = vsel %vm1510, %v4035, %v4036
        %v4064 = vsel %vm1512, %v4037, %v4038
        %v4065 = vsel %vm1514, %v4063, %v4064
        %v4066 = vsel %vm1220, %v4062, %v4065
        %v4067 = vsel %vm896, %v3978, %v4039
        %v4068 = vsel %vm1506, %v4040, %v4041
        %v4069 = vsel %vm1508, %v4067, %v4068
        %v4070 = vsel %vm1510, %v4042, %v4043
        %v4071 = vsel %vm1512, %v4044, %v4045
        %v4072 = vsel %vm1514, %v4070, %v4071
        %v4073 = vsel %vm1220, %v4069, %v4072
        %4078 = vst [vmem:[%s684] sm:$0xff] %v4052
        %4079 = vst [vmem:[%s684 + $0x8] sm:$0xff] %v4059
        %4080 = vst [vmem:[%s684 + $0x10] sm:$0xff] %v4066
        %4081 = vst [vmem:[%s684 + $0x18] sm:$0xff] %v4073
        %v4082 = vlaneseq
        %v4083 = vand.u32 %v4082, 127
        %vm4084 = vcmp.eq.s32.totalorder %v4083, 0
        %v4085 = vstv %s968
        %v4086 = vsel %vm4084, %v4085, 0.0
        %vm4087 = vcmp.eq.s32.totalorder %v4083, 1
        %v4088 = vstv %s1685
        %v4089 = vsel %vm4087, %v4088, 0.0
        %v4090 = vadd.f32 %v4086, %v4089
        %vm4091 = vcmp.eq.s32.totalorder %v4083, 2
        %v4092 = vstv %s2372
        %v4093 = vsel %vm4091, %v4092, 0.0
        %v4094 = vadd.f32 %v4090, %v4093
        %4095 = vst [vmem:[%s688] sm:$0x1] %v4094
        %s4096 = smul.u32 32, %s21
        %p4097 = scmp.lt.s32.totalorder %s4096, 63
        %s4098 = scalar_select %p4097, %s4096, 63
        %s4099 = scalar_lea.vmem %s7, %s4098
        %s4100 = smul.u32 32, %s21
        %p4101 = scmp.lt.s32.totalorder %s4100, 63
        %s4102 = scalar_select %p4101, %s4100, 63
        %s4103 = scalar_lea.vmem %s8, %s4102
        %p4104 = scmp.lt.s32.totalorder %s21, 1
        %s4105 = scalar_select %p4104, %s21, 1
        %s4106 = scalar_lea.vmem %s9, %s4105
        // Predicated region
        $region72: #{focal_loss_forward.1} parent=66 // pred_check
          %p4107 = pneg %p221
        $region73: #{focal_loss_forward.1} parent=66 // pred_check_branch
          %4109 = sbr.rel (%p4107) target = $region75
        $region74: #{focal_loss_forward.1} parent=66 // pred_region
          %s4110 = smul.u32 32, %s21
        $region75: #{focal_loss_forward.1} parent=66 // pred_fallthru
          _
        // Predicated region
        $region76: #{focal_loss_forward.1} parent=66 // pred_check
          %p4111 = pneg %p247
        $region77: #{focal_loss_forward.1} parent=66 // pred_check_branch
          %4113 = sbr.rel (%p4111) target = $region79
        $region78: #{focal_loss_forward.1} parent=66 // pred_region
          %s4114 = smul.u32 32, %s21
        $region79: #{focal_loss_forward.1} parent=66 // pred_fallthru
          _
        // Predicated region
        $region80: #{focal_loss_forward.1} parent=66 // pred_check
          %p4115 = pneg %p273
        $region81: #{focal_loss_forward.1} parent=66 // pred_check_branch
          %4117 = sbr.rel (%p4115) target = $region83
        $region82: #{focal_loss_forward.1} parent=66 // pred_region
          _
        $region83: #{focal_loss_forward.1} parent=66 // pred_fallthru
          _
      $region67: #{focal_loss_forward.1} parent=5 // pred_fallthru
        _
      %p4118 = scmp.le.s32.totalorder 2, %s16
      // Predicated region
      $region84: #{focal_loss_forward.1} parent=5 // pred_check
        %p4119 = pneg %p4118
      $region85: #{focal_loss_forward.1} parent=5 // pred_check_branch
        %4121 = sbr.rel (%p4119) target = $region87
      $region86: #{focal_loss_forward.1} parent=5 // pred_region
        %s4122 = ssub.s32 %s16, 2
        // Predicated region
        $region88: #{focal_loss_forward.1} parent=86 // pred_check
          %p4123 = pneg %p227
        $region89: #{focal_loss_forward.1} parent=86 // pred_check_branch
          %4125 = sbr.rel (%p4123) target = $region91
        $region90: #{focal_loss_forward.1} parent=86 // pred_region
          %s4126 = smul.u32 32, %s22
          %p4127 = scmp.lt.s32.totalorder %s4126, 63
          %s4128 = scalar_select %p4127, %s4126, 63
          %s4129 = scalar_lea.vmem %s7, %s4128
        $region91: #{focal_loss_forward.1} parent=86 // pred_fallthru
          _
        // Predicated region
        $region92: #{focal_loss_forward.1} parent=86 // pred_check
          %p4130 = pneg %p253
        $region93: #{focal_loss_forward.1} parent=86 // pred_check_branch
          %4132 = sbr.rel (%p4130) target = $region95
        $region94: #{focal_loss_forward.1} parent=86 // pred_region
          %s4133 = smul.u32 32, %s22
          %p4134 = scmp.lt.s32.totalorder %s4133, 63
          %s4135 = scalar_select %p4134, %s4133, 63
          %s4136 = scalar_lea.vmem %s8, %s4135
        $region95: #{focal_loss_forward.1} parent=86 // pred_fallthru
          _
        // Predicated region
        $region96: #{focal_loss_forward.1} parent=86 // pred_check
          %p4137 = pneg %p279
        $region97: #{focal_loss_forward.1} parent=86 // pred_check_branch
          %4139 = sbr.rel (%p4137) target = $region99
        $region98: #{focal_loss_forward.1} parent=86 // pred_region
          %p4140 = scmp.lt.s32.totalorder %s22, 1
          %s4141 = scalar_select %p4140, %s22, 1
          %s4142 = scalar_lea.vmem %s9, %s4141
        $region99: #{focal_loss_forward.1} parent=86 // pred_fallthru
          _
      $region87: #{focal_loss_forward.1} parent=5 // pred_fallthru
        _
    $region6: #{focal_loss_forward.1} parent=1 // loop_footer
      %s20 = sadd.s32 1, %s16
    $region7: #{focal_loss_forward.1} parent=1 // loop_footer_branch
      %15 = sbr.rel target = $region3
    $region8: #{focal_loss_forward.1} parent=1 // loop_exit
      _

</llo_original>
